<compile_context>
chip_gen: v6e
topology: v6e:2x2x1
jax: 0.10.0
libtpu: 0.0.40
codegen_flags: <defaults>
</compile_context>

<pallas_src>
import functools

import jax
import jax.numpy as jnp
from jax.experimental import pallas as pl
from jax.experimental.pallas import tpu as pltpu

K = 7
PAD = (K - 1) // 2
EPS = 1e-5

# Per streamed buffer VMEM budget; with input+output double-buffered in pass 2 this
# stays well under the explicit 32 MiB scoped-VMEM limit on all of v5e/v6e/v7x.
_TILE_BUDGET_BYTES = 4 * 1024 * 1024
_VMEM_LIMIT_BYTES = 32 * 1024 * 1024


def _round_up(n, m):
    return ((n + m - 1) // m) * m


def _largest_divisor_at_most(n, cap):
    cap = max(1, min(n, int(cap)))
    for d in range(cap, 0, -1):
        if n % d == 0:
            return d
    return 1


def _conv_logits_kernel(w_ref, x_ref, logit_ref, pad_ref, *, C, H, W):
    """ZPool over channels + 7x7 'same' conv (2->1, no bias) for one B-tile."""
    xf = x_ref[...].astype(jnp.float32)                 # (TB, C, H, W)

    # --- ZPool: channel max / channel mean -> two (TB, H, W) planes ---
    mx = jnp.max(xf, axis=1)
    mn = jnp.mean(xf, axis=1)

    # --- zero-pad only the tiny compressed planes into VMEM scratch ---
    # Re-zero every grid step so a megacore "parallel" split stays correct.
    pad_ref[...] = jnp.zeros_like(pad_ref)
    pad_ref[0, :, PAD:PAD + H, PAD:PAD + W] = mx
    pad_ref[1, :, PAD:PAD + H, PAD:PAD + W] = mn

    # --- hoist all 98 conv weights (SMEM scalar reads) out of the tap loop ---
    wts = [[[w_ref[c * K * K + dh * K + dw] for dw in range(K)]
            for dh in range(K)] for c in range(2)]

    # --- 7x7 valid conv over padded planes ---
    # 14 lane-shifted slabs total (one per (plane, dw)); inner loop uses only cheap
    # sublane (dh) slices. 4 accumulators break the 98-long serial madd chain.
    TB = logit_ref.shape[0]
    accs = [jnp.zeros((TB, H, W), jnp.float32) for _ in range(4)]
    t = 0
    for c in range(2):
        for dw in range(K):
            slab = pad_ref[c, :, :, dw:dw + W]          # (TB, H+6, W): one lane shift
            for dh in range(K):
                accs[t % 4] = accs[t % 4] + wts[c][dh][dw] * slab[:, dh:dh + H, :]
                t += 1
    logit_ref[...] = (accs[0] + accs[1]) + (accs[2] + accs[3])


def _gate_kernel(ab_ref, logit_ref, x_ref, out_ref):
    """out = x * sigmoid(a * conv_logit + b), broadcast over channels (lane-dense H*W)."""
    a = ab_ref[0]
    b = ab_ref[1]
    scale = jax.nn.sigmoid(a * logit_ref[...] + b)      # (TB, 1, HW), f32
    out_ref[...] = (x_ref[...] * scale.astype(x_ref.dtype)).astype(out_ref.dtype)


def attention_gate(x, w, gamma, beta):
    """x: (B, C, H, W). w: (1, 2, 7, 7) PyTorch-OIHW conv weight. gamma/beta: BN affine."""
    B, C, H, W = x.shape
    HW = H * W
    Hp, Wp = H + 2 * PAD, W + 2 * PAD
    itemsize = jnp.dtype(x.dtype).itemsize

    # ---------------- pass 1: ZPool + 7x7 conv -> logits (B, H, W) ----------------
    w_flat = w.reshape(-1).astype(jnp.float32)                          # (2*7*7,)
    # Per-batch-row VMEM footprint (last two dims padded to (8, 128) tiles).
    per_b_bytes = C * _round_up(H, 8) * _round_up(W, 128) * itemsize
    # Note: if a single batch row (C*H*W) ever exceeded the budget, pass 1 would also
    # need C-tiling with running max/sum accumulation; not needed for typical shapes.
    tb = _largest_divisor_at_most(B, _TILE_BUDGET_BYTES // max(per_b_bytes, 1))
    kernel1 = functools.partial(_conv_logits_kernel, C=C, H=H, W=W)
    logits = pl.pallas_call(
        kernel1,
        out_shape=jax.ShapeDtypeStruct((B, H, W), jnp.float32),
        grid=(B // tb,),
        in_specs=[
            pl.BlockSpec(memory_space=pltpu.MemorySpace.SMEM),          # conv weights
            pl.BlockSpec((tb, C, H, W), lambda i: (i, 0, 0, 0)),        # x B-tile
        ],
        out_specs=pl.BlockSpec((tb, H, W), lambda i: (i, 0, 0)),
        scratch_shapes=[pltpu.VMEM((2, tb, Hp, Wp), jnp.float32)],
        compiler_params=pltpu.CompilerParams(
            dimension_semantics=("parallel",),
            vmem_limit_bytes=_VMEM_LIMIT_BYTES),
    )(w_flat, x)

    # ------- BatchNorm2d(1), training-mode batch stats (tiny global reduction) -------
    m = jnp.mean(logits)
    v = jnp.mean(jnp.square(logits - m))                                # biased variance
    a = jnp.asarray(gamma, jnp.float32) * jax.lax.rsqrt(v + EPS)
    b = jnp.asarray(beta, jnp.float32) - m * a
    ab = jnp.stack([a, b])                                              # (2,)

    # ---------------- pass 2: sigmoid gate, lane-dense (H*W last dim) ----------------
    x_flat = x.reshape(B, C, HW)
    lg = logits.reshape(B, 1, HW)
    row_bytes = _round_up(HW, 128) * itemsize
    if C * row_bytes <= _TILE_BUDGET_BYTES:
        tc = C
        tb2 = _largest_divisor_at_most(B, _TILE_BUDGET_BYTES // (C * row_bytes))
    else:
        # A partial C block must keep its (second-to-last) dim a multiple of 8.
        cands = [d for d in range(8, C, 8)
                 if C % d == 0 and d * row_bytes <= _TILE_BUDGET_BYTES]
        tc = max(cands) if cands else C
        tb2 = 1
    out_flat = pl.pallas_call(
        _gate_kernel,
        out_shape=jax.ShapeDtypeStruct((B, C, HW), x.dtype),
        grid=(B // tb2, C // tc),
        in_specs=[
            pl.BlockSpec(memory_space=pltpu.MemorySpace.SMEM),          # (a, b)
            pl.BlockSpec((tb2, 1, HW), lambda i, j: (i, 0, 0)),         # conv logits
            pl.BlockSpec((tb2, tc, HW), lambda i, j: (i, j, 0)),        # x
        ],
        out_specs=pl.BlockSpec((tb2, tc, HW), lambda i, j: (i, j, 0)),
        compiler_params=pltpu.CompilerParams(
            dimension_semantics=("parallel", "parallel"),
            vmem_limit_bytes=_VMEM_LIMIT_BYTES),
    )(ab, lg, x_flat)
    return out_flat.reshape(B, C, H, W)


def attention_gate_ref(x, w, gamma, beta):
    """Pure-JAX reference (mirrors the PyTorch forward in training mode)."""
    mx = jnp.max(x, axis=1, keepdims=True)
    mn = jnp.mean(x, axis=1, keepdims=True)
    comp = jnp.concatenate([mx, mn], axis=1)                            # (B, 2, H, W)
    conv = jax.lax.conv_general_dilated(
        comp, w, window_strides=(1, 1), padding=[(PAD, PAD), (PAD, PAD)],
        dimension_numbers=("NCHW", "OIHW", "NCHW"))                     # (B, 1, H, W)
    m = jnp.mean(conv)
    v = jnp.mean(jnp.square(conv - m))
    bn = (conv - m) * jax.lax.rsqrt(v + EPS) * gamma + beta
    return x * jax.nn.sigmoid(bn)


if __name__ == "__main__":
    B, C, H, W = 2, 4, 16, 16
    key = jax.random.PRNGKey(0)
    kx, kw = jax.random.split(key)

    x = jax.random.normal(kx, (B, C, H, W), dtype=jnp.float32)

    # Deterministic conv weight init (kaiming_uniform-like bound = 1/sqrt(fan_in))
    fan_in = 2 * K * K
    bound = 1.0 / jnp.sqrt(jnp.float32(fan_in))
    w = jax.random.uniform(kw, (1, 2, K, K), dtype=jnp.float32,
                           minval=-bound, maxval=bound)
    gamma = jnp.float32(1.0)   # BatchNorm2d affine defaults
    beta = jnp.float32(0.0)

    out = attention_gate(x, w, gamma, beta)
    out = jax.block_until_ready(out)

    ref = attention_gate_ref(x, w, gamma, beta)
    assert out.shape == (B, C, H, W)
    assert jnp.allclose(out, ref, rtol=1e-4, atol=1e-5), "mismatch vs reference"

    print("KERNEL_OK")
</pallas_src>

<mosaic_0001>
module attributes {stable_mosaic.version = 11 : i64} {
  func.func @_conv_logits_kernel(%arg0: i32, %arg1: memref<98xf32, #tpu.memory_space<smem>>, %arg2: memref<2x4x16x16xf32, #tpu.memory_space<vmem>>, %arg3: memref<2x16x16xf32, #tpu.memory_space<vmem>>, %arg4: memref<2x2x22x22xf32, #tpu.memory_space<vmem>>) attributes {dimension_semantics = [#tpu.dimension_semantics<parallel>], iteration_bounds = array<i64: 1>, scalar_prefetch = 0 : i64, scratch_operands = 1 : i64, tpu.core_type = #tpu.core_type<tc>, window_params = [{transform_indices = @transform_0, window_bounds = array<i64: 98>}, {transform_indices = @transform_1, window_bounds = array<i64: 2, 4, 16, 16>}, {transform_indices = @transform_2, window_bounds = array<i64: 2, 16, 16>}]} {
    %c0 = arith.constant 0 : index
    %c0_0 = arith.constant 0 : index
    %c0_1 = arith.constant 0 : index
    %c0_2 = arith.constant 0 : index
    %0 = vector.load %arg2[%c0, %c0_0, %c0_1, %c0_2] : memref<2x4x16x16xf32, #tpu.memory_space<vmem>>, vector<2x4x16x16xf32>
    %cst = arith.constant dense<0xFF800000> : vector<2x16x16xf32>
    %1 = vector.multi_reduction <maximumf>, %0, %cst [1] : vector<2x4x16x16xf32> to vector<2x16x16xf32>
    %cst_3 = arith.constant dense<0.000000e+00> : vector<2x16x16xf32>
    %2 = vector.multi_reduction <add>, %0, %cst_3 [1] : vector<2x4x16x16xf32> to vector<2x16x16xf32>
    %cst_4 = arith.constant 4.000000e+00 : f32
    %3 = vector.broadcast %cst_4 : f32 to vector<2x16x16xf32>
    %4 = arith.divf %2, %3 : vector<2x16x16xf32>
    %cst_5 = arith.constant 0.000000e+00 : f32
    %5 = vector.broadcast %cst_5 : f32 to vector<2x2x22x22xf32>
    %c0_6 = arith.constant 0 : index
    %c0_7 = arith.constant 0 : index
    %c0_8 = arith.constant 0 : index
    %c0_9 = arith.constant 0 : index
    %6 = vector.load %arg4[%c0_6, %c0_7, %c0_8, %c0_9] : memref<2x2x22x22xf32, #tpu.memory_space<vmem>>, vector<2x2x22x22xf32>
    tpu.vector_store %arg4[%c0_6, %c0_7, %c0_8, %c0_9], %5 {strides = array<i32>} : memref<2x2x22x22xf32, #tpu.memory_space<vmem>>, vector<2x2x22x22xf32>,
    %c0_10 = arith.constant 0 : index
    %c0_11 = arith.constant 0 : index
    %c3 = arith.constant 3 : index
    %c3_12 = arith.constant 3 : index
    %7 = vector.load %arg4[%c0_10, %c0_11, %c3, %c3_12] : memref<2x2x22x22xf32, #tpu.memory_space<vmem>>, vector<1x2x16x16xf32>
    %8 = vector.shape_cast %7 : vector<1x2x16x16xf32> to vector<2x16x16xf32>
    %9 = vector.shape_cast %1 : vector<2x16x16xf32> to vector<1x2x16x16xf32>
    tpu.vector_store %arg4[%c0_10, %c0_11, %c3, %c3_12], %9 {strides = array<i32>} : memref<2x2x22x22xf32, #tpu.memory_space<vmem>>, vector<1x2x16x16xf32>,
    %c1 = arith.constant 1 : index
    %c0_13 = arith.constant 0 : index
    %c3_14 = arith.constant 3 : index
    %c3_15 = arith.constant 3 : index
    %10 = vector.load %arg4[%c1, %c0_13, %c3_14, %c3_15] : memref<2x2x22x22xf32, #tpu.memory_space<vmem>>, vector<1x2x16x16xf32>
    %11 = vector.shape_cast %10 : vector<1x2x16x16xf32> to vector<2x16x16xf32>
    %12 = vector.shape_cast %4 : vector<2x16x16xf32> to vector<1x2x16x16xf32>
    tpu.vector_store %arg4[%c1, %c0_13, %c3_14, %c3_15], %12 {strides = array<i32>} : memref<2x2x22x22xf32, #tpu.memory_space<vmem>>, vector<1x2x16x16xf32>,
    %c0_16 = arith.constant 0 : index
    %13 = memref.load %arg1[%c0_16] : memref<98xf32, #tpu.memory_space<smem>>
    %c1_17 = arith.constant 1 : index
    %14 = memref.load %arg1[%c1_17] : memref<98xf32, #tpu.memory_space<smem>>
    %c2 = arith.constant 2 : index
    %15 = memref.load %arg1[%c2] : memref<98xf32, #tpu.memory_space<smem>>
    %c3_18 = arith.constant 3 : index
    %16 = memref.load %arg1[%c3_18] : memref<98xf32, #tpu.memory_space<smem>>
    %c4 = arith.constant 4 : index
    %17 = memref.load %arg1[%c4] : memref<98xf32, #tpu.memory_space<smem>>
    %c5 = arith.constant 5 : index
    %18 = memref.load %arg1[%c5] : memref<98xf32, #tpu.memory_space<smem>>
    %c6 = arith.constant 6 : index
    %19 = memref.load %arg1[%c6] : memref<98xf32, #tpu.memory_space<smem>>
    %c7 = arith.constant 7 : index
    %20 = memref.load %arg1[%c7] : memref<98xf32, #tpu.memory_space<smem>>
    %c8 = arith.constant 8 : index
    %21 = memref.load %arg1[%c8] : memref<98xf32, #tpu.memory_space<smem>>
    %c9 = arith.constant 9 : index
    %22 = memref.load %arg1[%c9] : memref<98xf32, #tpu.memory_space<smem>>
    %c10 = arith.constant 10 : index
    %23 = memref.load %arg1[%c10] : memref<98xf32, #tpu.memory_space<smem>>
    %c11 = arith.constant 11 : index
    %24 = memref.load %arg1[%c11] : memref<98xf32, #tpu.memory_space<smem>>
    %c12 = arith.constant 12 : index
    %25 = memref.load %arg1[%c12] : memref<98xf32, #tpu.memory_space<smem>>
    %c13 = arith.constant 13 : index
    %26 = memref.load %arg1[%c13] : memref<98xf32, #tpu.memory_space<smem>>
    %c14 = arith.constant 14 : index
    %27 = memref.load %arg1[%c14] : memref<98xf32, #tpu.memory_space<smem>>
    %c15 = arith.constant 15 : index
    %28 = memref.load %arg1[%c15] : memref<98xf32, #tpu.memory_space<smem>>
    %c16 = arith.constant 16 : index
    %29 = memref.load %arg1[%c16] : memref<98xf32, #tpu.memory_space<smem>>
    %c17 = arith.constant 17 : index
    %30 = memref.load %arg1[%c17] : memref<98xf32, #tpu.memory_space<smem>>
    %c18 = arith.constant 18 : index
    %31 = memref.load %arg1[%c18] : memref<98xf32, #tpu.memory_space<smem>>
    %c19 = arith.constant 19 : index
    %32 = memref.load %arg1[%c19] : memref<98xf32, #tpu.memory_space<smem>>
    %c20 = arith.constant 20 : index
    %33 = memref.load %arg1[%c20] : memref<98xf32, #tpu.memory_space<smem>>
    %c21 = arith.constant 21 : index
    %34 = memref.load %arg1[%c21] : memref<98xf32, #tpu.memory_space<smem>>
    %c22 = arith.constant 22 : index
    %35 = memref.load %arg1[%c22] : memref<98xf32, #tpu.memory_space<smem>>
    %c23 = arith.constant 23 : index
    %36 = memref.load %arg1[%c23] : memref<98xf32, #tpu.memory_space<smem>>
    %c24 = arith.constant 24 : index
    %37 = memref.load %arg1[%c24] : memref<98xf32, #tpu.memory_space<smem>>
    %c25 = arith.constant 25 : index
    %38 = memref.load %arg1[%c25] : memref<98xf32, #tpu.memory_space<smem>>
    %c26 = arith.constant 26 : index
    %39 = memref.load %arg1[%c26] : memref<98xf32, #tpu.memory_space<smem>>
    %c27 = arith.constant 27 : index
    %40 = memref.load %arg1[%c27] : memref<98xf32, #tpu.memory_space<smem>>
    %c28 = arith.constant 28 : index
    %41 = memref.load %arg1[%c28] : memref<98xf32, #tpu.memory_space<smem>>
    %c29 = arith.constant 29 : index
    %42 = memref.load %arg1[%c29] : memref<98xf32, #tpu.memory_space<smem>>
    %c30 = arith.constant 30 : index
    %43 = memref.load %arg1[%c30] : memref<98xf32, #tpu.memory_space<smem>>
    %c31 = arith.constant 31 : index
    %44 = memref.load %arg1[%c31] : memref<98xf32, #tpu.memory_space<smem>>
    %c32 = arith.constant 32 : index
    %45 = memref.load %arg1[%c32] : memref<98xf32, #tpu.memory_space<smem>>
    %c33 = arith.constant 33 : index
    %46 = memref.load %arg1[%c33] : memref<98xf32, #tpu.memory_space<smem>>
    %c34 = arith.constant 34 : index
    %47 = memref.load %arg1[%c34] : memref<98xf32, #tpu.memory_space<smem>>
    %c35 = arith.constant 35 : index
    %48 = memref.load %arg1[%c35] : memref<98xf32, #tpu.memory_space<smem>>
    %c36 = arith.constant 36 : index
    %49 = memref.load %arg1[%c36] : memref<98xf32, #tpu.memory_space<smem>>
    %c37 = arith.constant 37 : index
    %50 = memref.load %arg1[%c37] : memref<98xf32, #tpu.memory_space<smem>>
    %c38 = arith.constant 38 : index
    %51 = memref.load %arg1[%c38] : memref<98xf32, #tpu.memory_space<smem>>
    %c39 = arith.constant 39 : index
    %52 = memref.load %arg1[%c39] : memref<98xf32, #tpu.memory_space<smem>>
    %c40 = arith.constant 40 : index
    %53 = memref.load %arg1[%c40] : memref<98xf32, #tpu.memory_space<smem>>
    %c41 = arith.constant 41 : index
    %54 = memref.load %arg1[%c41] : memref<98xf32, #tpu.memory_space<smem>>
    %c42 = arith.constant 42 : index
    %55 = memref.load %arg1[%c42] : memref<98xf32, #tpu.memory_space<smem>>
    %c43 = arith.constant 43 : index
    %56 = memref.load %arg1[%c43] : memref<98xf32, #tpu.memory_space<smem>>
    %c44 = arith.constant 44 : index
    %57 = memref.load %arg1[%c44] : memref<98xf32, #tpu.memory_space<smem>>
    %c45 = arith.constant 45 : index
    %58 = memref.load %arg1[%c45] : memref<98xf32, #tpu.memory_space<smem>>
    %c46 = arith.constant 46 : index
    %59 = memref.load %arg1[%c46] : memref<98xf32, #tpu.memory_space<smem>>
    %c47 = arith.constant 47 : index
    %60 = memref.load %arg1[%c47] : memref<98xf32, #tpu.memory_space<smem>>
    %c48 = arith.constant 48 : index
    %61 = memref.load %arg1[%c48] : memref<98xf32, #tpu.memory_space<smem>>
    %c49 = arith.constant 49 : index
    %62 = memref.load %arg1[%c49] : memref<98xf32, #tpu.memory_space<smem>>
    %c50 = arith.constant 50 : index
    %63 = memref.load %arg1[%c50] : memref<98xf32, #tpu.memory_space<smem>>
    %c51 = arith.constant 51 : index
    %64 = memref.load %arg1[%c51] : memref<98xf32, #tpu.memory_space<smem>>
    %c52 = arith.constant 52 : index
    %65 = memref.load %arg1[%c52] : memref<98xf32, #tpu.memory_space<smem>>
    %c53 = arith.constant 53 : index
    %66 = memref.load %arg1[%c53] : memref<98xf32, #tpu.memory_space<smem>>
    %c54 = arith.constant 54 : index
    %67 = memref.load %arg1[%c54] : memref<98xf32, #tpu.memory_space<smem>>
    %c55 = arith.constant 55 : index
    %68 = memref.load %arg1[%c55] : memref<98xf32, #tpu.memory_space<smem>>
    %c56 = arith.constant 56 : index
    %69 = memref.load %arg1[%c56] : memref<98xf32, #tpu.memory_space<smem>>
    %c57 = arith.constant 57 : index
    %70 = memref.load %arg1[%c57] : memref<98xf32, #tpu.memory_space<smem>>
    %c58 = arith.constant 58 : index
    %71 = memref.load %arg1[%c58] : memref<98xf32, #tpu.memory_space<smem>>
    %c59 = arith.constant 59 : index
    %72 = memref.load %arg1[%c59] : memref<98xf32, #tpu.memory_space<smem>>
    %c60 = arith.constant 60 : index
    %73 = memref.load %arg1[%c60] : memref<98xf32, #tpu.memory_space<smem>>
    %c61 = arith.constant 61 : index
    %74 = memref.load %arg1[%c61] : memref<98xf32, #tpu.memory_space<smem>>
    %c62 = arith.constant 62 : index
    %75 = memref.load %arg1[%c62] : memref<98xf32, #tpu.memory_space<smem>>
    %c63 = arith.constant 63 : index
    %76 = memref.load %arg1[%c63] : memref<98xf32, #tpu.memory_space<smem>>
    %c64 = arith.constant 64 : index
    %77 = memref.load %arg1[%c64] : memref<98xf32, #tpu.memory_space<smem>>
    %c65 = arith.constant 65 : index
    %78 = memref.load %arg1[%c65] : memref<98xf32, #tpu.memory_space<smem>>
    %c66 = arith.constant 66 : index
    %79 = memref.load %arg1[%c66] : memref<98xf32, #tpu.memory_space<smem>>
    %c67 = arith.constant 67 : index
    %80 = memref.load %arg1[%c67] : memref<98xf32, #tpu.memory_space<smem>>
    %c68 = arith.constant 68 : index
    %81 = memref.load %arg1[%c68] : memref<98xf32, #tpu.memory_space<smem>>
    %c69 = arith.constant 69 : index
    %82 = memref.load %arg1[%c69] : memref<98xf32, #tpu.memory_space<smem>>
    %c70 = arith.constant 70 : index
    %83 = memref.load %arg1[%c70] : memref<98xf32, #tpu.memory_space<smem>>
    %c71 = arith.constant 71 : index
    %84 = memref.load %arg1[%c71] : memref<98xf32, #tpu.memory_space<smem>>
    %c72 = arith.constant 72 : index
    %85 = memref.load %arg1[%c72] : memref<98xf32, #tpu.memory_space<smem>>
    %c73 = arith.constant 73 : index
    %86 = memref.load %arg1[%c73] : memref<98xf32, #tpu.memory_space<smem>>
    %c74 = arith.constant 74 : index
    %87 = memref.load %arg1[%c74] : memref<98xf32, #tpu.memory_space<smem>>
    %c75 = arith.constant 75 : index
    %88 = memref.load %arg1[%c75] : memref<98xf32, #tpu.memory_space<smem>>
    %c76 = arith.constant 76 : index
    %89 = memref.load %arg1[%c76] : memref<98xf32, #tpu.memory_space<smem>>
    %c77 = arith.constant 77 : index
    %90 = memref.load %arg1[%c77] : memref<98xf32, #tpu.memory_space<smem>>
    %c78 = arith.constant 78 : index
    %91 = memref.load %arg1[%c78] : memref<98xf32, #tpu.memory_space<smem>>
    %c79 = arith.constant 79 : index
    %92 = memref.load %arg1[%c79] : memref<98xf32, #tpu.memory_space<smem>>
    %c80 = arith.constant 80 : index
    %93 = memref.load %arg1[%c80] : memref<98xf32, #tpu.memory_space<smem>>
    %c81 = arith.constant 81 : index
    %94 = memref.load %arg1[%c81] : memref<98xf32, #tpu.memory_space<smem>>
    %c82 = arith.constant 82 : index
    %95 = memref.load %arg1[%c82] : memref<98xf32, #tpu.memory_space<smem>>
    %c83 = arith.constant 83 : index
    %96 = memref.load %arg1[%c83] : memref<98xf32, #tpu.memory_space<smem>>
    %c84 = arith.constant 84 : index
    %97 = memref.load %arg1[%c84] : memref<98xf32, #tpu.memory_space<smem>>
    %c85 = arith.constant 85 : index
    %98 = memref.load %arg1[%c85] : memref<98xf32, #tpu.memory_space<smem>>
    %c86 = arith.constant 86 : index
    %99 = memref.load %arg1[%c86] : memref<98xf32, #tpu.memory_space<smem>>
    %c87 = arith.constant 87 : index
    %100 = memref.load %arg1[%c87] : memref<98xf32, #tpu.memory_space<smem>>
    %c88 = arith.constant 88 : index
    %101 = memref.load %arg1[%c88] : memref<98xf32, #tpu.memory_space<smem>>
    %c89 = arith.constant 89 : index
    %102 = memref.load %arg1[%c89] : memref<98xf32, #tpu.memory_space<smem>>
    %c90 = arith.constant 90 : index
    %103 = memref.load %arg1[%c90] : memref<98xf32, #tpu.memory_space<smem>>
    %c91 = arith.constant 91 : index
    %104 = memref.load %arg1[%c91] : memref<98xf32, #tpu.memory_space<smem>>
    %c92 = arith.constant 92 : index
    %105 = memref.load %arg1[%c92] : memref<98xf32, #tpu.memory_space<smem>>
    %c93 = arith.constant 93 : index
    %106 = memref.load %arg1[%c93] : memref<98xf32, #tpu.memory_space<smem>>
    %c94 = arith.constant 94 : index
    %107 = memref.load %arg1[%c94] : memref<98xf32, #tpu.memory_space<smem>>
    %c95 = arith.constant 95 : index
    %108 = memref.load %arg1[%c95] : memref<98xf32, #tpu.memory_space<smem>>
    %c96 = arith.constant 96 : index
    %109 = memref.load %arg1[%c96] : memref<98xf32, #tpu.memory_space<smem>>
    %c97 = arith.constant 97 : index
    %110 = memref.load %arg1[%c97] : memref<98xf32, #tpu.memory_space<smem>>
    %cst_19 = arith.constant 0.000000e+00 : f32
    %111 = vector.broadcast %cst_19 : f32 to vector<2x16x16xf32>
    %cst_20 = arith.constant 0.000000e+00 : f32
    %112 = vector.broadcast %cst_20 : f32 to vector<2x16x16xf32>
    %cst_21 = arith.constant 0.000000e+00 : f32
    %113 = vector.broadcast %cst_21 : f32 to vector<2x16x16xf32>
    %cst_22 = arith.constant 0.000000e+00 : f32
    %114 = vector.broadcast %cst_22 : f32 to vector<2x16x16xf32>
    %c0_23 = arith.constant 0 : index
    %c0_24 = arith.constant 0 : index
    %c0_25 = arith.constant 0 : index
    %c0_26 = arith.constant 0 : index
    %115 = vector.load %arg4[%c0_23, %c0_24, %c0_25, %c0_26] : memref<2x2x22x22xf32, #tpu.memory_space<vmem>>, vector<1x2x22x16xf32>
    %116 = vector.shape_cast %115 : vector<1x2x22x16xf32> to vector<2x22x16xf32>
    %117 = vector.extract_strided_slice %116 {offsets = [0, 0, 0], sizes = [2, 16, 16], strides = [1, 1, 1]} : vector<2x22x16xf32> to vector<2x16x16xf32>
    %118 = vector.broadcast %13 : f32 to vector<2x16x16xf32>
    %119 = arith.mulf %118, %117 : vector<2x16x16xf32>
    %120 = arith.addf %111, %119 : vector<2x16x16xf32>
    %121 = vector.extract_strided_slice %116 {offsets = [0, 1, 0], sizes = [2, 16, 16], strides = [1, 1, 1]} : vector<2x22x16xf32> to vector<2x16x16xf32>
    %122 = vector.broadcast %20 : f32 to vector<2x16x16xf32>
    %123 = arith.mulf %122, %121 : vector<2x16x16xf32>
    %124 = arith.addf %112, %123 : vector<2x16x16xf32>
    %125 = vector.extract_strided_slice %116 {offsets = [0, 2, 0], sizes = [2, 16, 16], strides = [1, 1, 1]} : vector<2x22x16xf32> to vector<2x16x16xf32>
    %126 = vector.broadcast %27 : f32 to vector<2x16x16xf32>
    %127 = arith.mulf %126, %125 : vector<2x16x16xf32>
    %128 = arith.addf %113, %127 : vector<2x16x16xf32>
    %129 = vector.extract_strided_slice %116 {offsets = [0, 3, 0], sizes = [2, 16, 16], strides = [1, 1, 1]} : vector<2x22x16xf32> to vector<2x16x16xf32>
    %130 = vector.broadcast %34 : f32 to vector<2x16x16xf32>
    %131 = arith.mulf %130, %129 : vector<2x16x16xf32>
    %132 = arith.addf %114, %131 : vector<2x16x16xf32>
    %133 = vector.extract_strided_slice %116 {offsets = [0, 4, 0], sizes = [2, 16, 16], strides = [1, 1, 1]} : vector<2x22x16xf32> to vector<2x16x16xf32>
    %134 = vector.broadcast %41 : f32 to vector<2x16x16xf32>
    %135 = arith.mulf %134, %133 : vector<2x16x16xf32>
    %136 = arith.addf %120, %135 : vector<2x16x16xf32>
    %137 = vector.extract_strided_slice %116 {offsets = [0, 5, 0], sizes = [2, 16, 16], strides = [1, 1, 1]} : vector<2x22x16xf32> to vector<2x16x16xf32>
    %138 = vector.broadcast %48 : f32 to vector<2x16x16xf32>
    %139 = arith.mulf %138, %137 : vector<2x16x16xf32>
    %140 = arith.addf %124, %139 : vector<2x16x16xf32>
    %141 = vector.extract_strided_slice %116 {offsets = [0, 6, 0], sizes = [2, 16, 16], strides = [1, 1, 1]} : vector<2x22x16xf32> to vector<2x16x16xf32>
    %142 = vector.broadcast %55 : f32 to vector<2x16x16xf32>
    %143 = arith.mulf %142, %141 : vector<2x16x16xf32>
    %144 = arith.addf %128, %143 : vector<2x16x16xf32>
    %c0_27 = arith.constant 0 : index
    %c0_28 = arith.constant 0 : index
    %c0_29 = arith.constant 0 : index
    %c1_30 = arith.constant 1 : index
    %145 = vector.load %arg4[%c0_27, %c0_28, %c0_29, %c1_30] : memref<2x2x22x22xf32, #tpu.memory_space<vmem>>, vector<1x2x22x16xf32>
    %146 = vector.shape_cast %145 : vector<1x2x22x16xf32> to vector<2x22x16xf32>
    %147 = vector.extract_strided_slice %146 {offsets = [0, 0, 0], sizes = [2, 16, 16], strides = [1, 1, 1]} : vector<2x22x16xf32> to vector<2x16x16xf32>
    %148 = vector.broadcast %14 : f32 to vector<2x16x16xf32>
    %149 = arith.mulf %148, %147 : vector<2x16x16xf32>
    %150 = arith.addf %132, %149 : vector<2x16x16xf32>
    %151 = vector.extract_strided_slice %146 {offsets = [0, 1, 0], sizes = [2, 16, 16], strides = [1, 1, 1]} : vector<2x22x16xf32> to vector<2x16x16xf32>
    %152 = vector.broadcast %21 : f32 to vector<2x16x16xf32>
    %153 = arith.mulf %152, %151 : vector<2x16x16xf32>
    %154 = arith.addf %136, %153 : vector<2x16x16xf32>
    %155 = vector.extract_strided_slice %146 {offsets = [0, 2, 0], sizes = [2, 16, 16], strides = [1, 1, 1]} : vector<2x22x16xf32> to vector<2x16x16xf32>
    %156 = vector.broadcast %28 : f32 to vector<2x16x16xf32>
    %157 = arith.mulf %156, %155 : vector<2x16x16xf32>
    %158 = arith.addf %140, %157 : vector<2x16x16xf32>
    %159 = vector.extract_strided_slice %146 {offsets = [0, 3, 0], sizes = [2, 16, 16], strides = [1, 1, 1]} : vector<2x22x16xf32> to vector<2x16x16xf32>
    %160 = vector.broadcast %35 : f32 to vector<2x16x16xf32>
    %161 = arith.mulf %160, %159 : vector<2x16x16xf32>
    %162 = arith.addf %144, %161 : vector<2x16x16xf32>
    %163 = vector.extract_strided_slice %146 {offsets = [0, 4, 0], sizes = [2, 16, 16], strides = [1, 1, 1]} : vector<2x22x16xf32> to vector<2x16x16xf32>
    %164 = vector.broadcast %42 : f32 to vector<2x16x16xf32>
    %165 = arith.mulf %164, %163 : vector<2x16x16xf32>
    %166 = arith.addf %150, %165 : vector<2x16x16xf32>
    %167 = vector.extract_strided_slice %146 {offsets = [0, 5, 0], sizes = [2, 16, 16], strides = [1, 1, 1]} : vector<2x22x16xf32> to vector<2x16x16xf32>
    %168 = vector.broadcast %49 : f32 to vector<2x16x16xf32>
    %169 = arith.mulf %168, %167 : vector<2x16x16xf32>
    %170 = arith.addf %154, %169 : vector<2x16x16xf32>
    %171 = vector.extract_strided_slice %146 {offsets = [0, 6, 0], sizes = [2, 16, 16], strides = [1, 1, 1]} : vector<2x22x16xf32> to vector<2x16x16xf32>
    %172 = vector.broadcast %56 : f32 to vector<2x16x16xf32>
    %173 = arith.mulf %172, %171 : vector<2x16x16xf32>
    %174 = arith.addf %158, %173 : vector<2x16x16xf32>
    %c0_31 = arith.constant 0 : index
    %c0_32 = arith.constant 0 : index
    %c0_33 = arith.constant 0 : index
    %c2_34 = arith.constant 2 : index
    %175 = vector.load %arg4[%c0_31, %c0_32, %c0_33, %c2_34] : memref<2x2x22x22xf32, #tpu.memory_space<vmem>>, vector<1x2x22x16xf32>
    %176 = vector.shape_cast %175 : vector<1x2x22x16xf32> to vector<2x22x16xf32>
    %177 = vector.extract_strided_slice %176 {offsets = [0, 0, 0], sizes = [2, 16, 16], strides = [1, 1, 1]} : vector<2x22x16xf32> to vector<2x16x16xf32>
    %178 = vector.broadcast %15 : f32 to vector<2x16x16xf32>
    %179 = arith.mulf %178, %177 : vector<2x16x16xf32>
    %180 = arith.addf %162, %179 : vector<2x16x16xf32>
    %181 = vector.extract_strided_slice %176 {offsets = [0, 1, 0], sizes = [2, 16, 16], strides = [1, 1, 1]} : vector<2x22x16xf32> to vector<2x16x16xf32>
    %182 = vector.broadcast %22 : f32 to vector<2x16x16xf32>
    %183 = arith.mulf %182, %181 : vector<2x16x16xf32>
    %184 = arith.addf %166, %183 : vector<2x16x16xf32>
    %185 = vector.extract_strided_slice %176 {offsets = [0, 2, 0], sizes = [2, 16, 16], strides = [1, 1, 1]} : vector<2x22x16xf32> to vector<2x16x16xf32>
    %186 = vector.broadcast %29 : f32 to vector<2x16x16xf32>
    %187 = arith.mulf %186, %185 : vector<2x16x16xf32>
    %188 = arith.addf %170, %187 : vector<2x16x16xf32>
    %189 = vector.extract_strided_slice %176 {offsets = [0, 3, 0], sizes = [2, 16, 16], strides = [1, 1, 1]} : vector<2x22x16xf32> to vector<2x16x16xf32>
    %190 = vector.broadcast %36 : f32 to vector<2x16x16xf32>
    %191 = arith.mulf %190, %189 : vector<2x16x16xf32>
    %192 = arith.addf %174, %191 : vector<2x16x16xf32>
    %193 = vector.extract_strided_slice %176 {offsets = [0, 4, 0], sizes = [2, 16, 16], strides = [1, 1, 1]} : vector<2x22x16xf32> to vector<2x16x16xf32>
    %194 = vector.broadcast %43 : f32 to vector<2x16x16xf32>
    %195 = arith.mulf %194, %193 : vector<2x16x16xf32>
    %196 = arith.addf %180, %195 : vector<2x16x16xf32>
    %197 = vector.extract_strided_slice %176 {offsets = [0, 5, 0], sizes = [2, 16, 16], strides = [1, 1, 1]} : vector<2x22x16xf32> to vector<2x16x16xf32>
    %198 = vector.broadcast %50 : f32 to vector<2x16x16xf32>
    %199 = arith.mulf %198, %197 : vector<2x16x16xf32>
    %200 = arith.addf %184, %199 : vector<2x16x16xf32>
    %201 = vector.extract_strided_slice %176 {offsets = [0, 6, 0], sizes = [2, 16, 16], strides = [1, 1, 1]} : vector<2x22x16xf32> to vector<2x16x16xf32>
    %202 = vector.broadcast %57 : f32 to vector<2x16x16xf32>
    %203 = arith.mulf %202, %201 : vector<2x16x16xf32>
    %204 = arith.addf %188, %203 : vector<2x16x16xf32>
    %c0_35 = arith.constant 0 : index
    %c0_36 = arith.constant 0 : index
    %c0_37 = arith.constant 0 : index
    %c3_38 = arith.constant 3 : index
    %205 = vector.load %arg4[%c0_35, %c0_36, %c0_37, %c3_38] : memref<2x2x22x22xf32, #tpu.memory_space<vmem>>, vector<1x2x22x16xf32>
    %206 = vector.shape_cast %205 : vector<1x2x22x16xf32> to vector<2x22x16xf32>
    %207 = vector.extract_strided_slice %206 {offsets = [0, 0, 0], sizes = [2, 16, 16], strides = [1, 1, 1]} : vector<2x22x16xf32> to vector<2x16x16xf32>
    %208 = vector.broadcast %16 : f32 to vector<2x16x16xf32>
    %209 = arith.mulf %208, %207 : vector<2x16x16xf32>
    %210 = arith.addf %192, %209 : vector<2x16x16xf32>
    %211 = vector.extract_strided_slice %206 {offsets = [0, 1, 0], sizes = [2, 16, 16], strides = [1, 1, 1]} : vector<2x22x16xf32> to vector<2x16x16xf32>
    %212 = vector.broadcast %23 : f32 to vector<2x16x16xf32>
    %213 = arith.mulf %212, %211 : vector<2x16x16xf32>
    %214 = arith.addf %196, %213 : vector<2x16x16xf32>
    %215 = vector.extract_strided_slice %206 {offsets = [0, 2, 0], sizes = [2, 16, 16], strides = [1, 1, 1]} : vector<2x22x16xf32> to vector<2x16x16xf32>
    %216 = vector.broadcast %30 : f32 to vector<2x16x16xf32>
    %217 = arith.mulf %216, %215 : vector<2x16x16xf32>
    %218 = arith.addf %200, %217 : vector<2x16x16xf32>
    %219 = vector.extract_strided_slice %206 {offsets = [0, 3, 0], sizes = [2, 16, 16], strides = [1, 1, 1]} : vector<2x22x16xf32> to vector<2x16x16xf32>
    %220 = vector.broadcast %37 : f32 to vector<2x16x16xf32>
    %221 = arith.mulf %220, %219 : vector<2x16x16xf32>
    %222 = arith.addf %204, %221 : vector<2x16x16xf32>
    %223 = vector.extract_strided_slice %206 {offsets = [0, 4, 0], sizes = [2, 16, 16], strides = [1, 1, 1]} : vector<2x22x16xf32> to vector<2x16x16xf32>
    %224 = vector.broadcast %44 : f32 to vector<2x16x16xf32>
    %225 = arith.mulf %224, %223 : vector<2x16x16xf32>
    %226 = arith.addf %210, %225 : vector<2x16x16xf32>
    %227 = vector.extract_strided_slice %206 {offsets = [0, 5, 0], sizes = [2, 16, 16], strides = [1, 1, 1]} : vector<2x22x16xf32> to vector<2x16x16xf32>
    %228 = vector.broadcast %51 : f32 to vector<2x16x16xf32>
    %229 = arith.mulf %228, %227 : vector<2x16x16xf32>
    %230 = arith.addf %214, %229 : vector<2x16x16xf32>
    %231 = vector.extract_strided_slice %206 {offsets = [0, 6, 0], sizes = [2, 16, 16], strides = [1, 1, 1]} : vector<2x22x16xf32> to vector<2x16x16xf32>
    %232 = vector.broadcast %58 : f32 to vector<2x16x16xf32>
    %233 = arith.mulf %232, %231 : vector<2x16x16xf32>
    %234 = arith.addf %218, %233 : vector<2x16x16xf32>
    %c0_39 = arith.constant 0 : index
    %c0_40 = arith.constant 0 : index
    %c0_41 = arith.constant 0 : index
    %c4_42 = arith.constant 4 : index
    %235 = vector.load %arg4[%c0_39, %c0_40, %c0_41, %c4_42] : memref<2x2x22x22xf32, #tpu.memory_space<vmem>>, vector<1x2x22x16xf32>
    %236 = vector.shape_cast %235 : vector<1x2x22x16xf32> to vector<2x22x16xf32>
    %237 = vector.extract_strided_slice %236 {offsets = [0, 0, 0], sizes = [2, 16, 16], strides = [1, 1, 1]} : vector<2x22x16xf32> to vector<2x16x16xf32>
    %238 = vector.broadcast %17 : f32 to vector<2x16x16xf32>
    %239 = arith.mulf %238, %237 : vector<2x16x16xf32>
    %240 = arith.addf %222, %239 : vector<2x16x16xf32>
    %241 = vector.extract_strided_slice %236 {offsets = [0, 1, 0], sizes = [2, 16, 16], strides = [1, 1, 1]} : vector<2x22x16xf32> to vector<2x16x16xf32>
    %242 = vector.broadcast %24 : f32 to vector<2x16x16xf32>
    %243 = arith.mulf %242, %241 : vector<2x16x16xf32>
    %244 = arith.addf %226, %243 : vector<2x16x16xf32>
    %245 = vector.extract_strided_slice %236 {offsets = [0, 2, 0], sizes = [2, 16, 16], strides = [1, 1, 1]} : vector<2x22x16xf32> to vector<2x16x16xf32>
    %246 = vector.broadcast %31 : f32 to vector<2x16x16xf32>
    %247 = arith.mulf %246, %245 : vector<2x16x16xf32>
    %248 = arith.addf %230, %247 : vector<2x16x16xf32>
    %249 = vector.extract_strided_slice %236 {offsets = [0, 3, 0], sizes = [2, 16, 16], strides = [1, 1, 1]} : vector<2x22x16xf32> to vector<2x16x16xf32>
    %250 = vector.broadcast %38 : f32 to vector<2x16x16xf32>
    %251 = arith.mulf %250, %249 : vector<2x16x16xf32>
    %252 = arith.addf %234, %251 : vector<2x16x16xf32>
    %253 = vector.extract_strided_slice %236 {offsets = [0, 4, 0], sizes = [2, 16, 16], strides = [1, 1, 1]} : vector<2x22x16xf32> to vector<2x16x16xf32>
    %254 = vector.broadcast %45 : f32 to vector<2x16x16xf32>
    %255 = arith.mulf %254, %253 : vector<2x16x16xf32>
    %256 = arith.addf %240, %255 : vector<2x16x16xf32>
    %257 = vector.extract_strided_slice %236 {offsets = [0, 5, 0], sizes = [2, 16, 16], strides = [1, 1, 1]} : vector<2x22x16xf32> to vector<2x16x16xf32>
    %258 = vector.broadcast %52 : f32 to vector<2x16x16xf32>
    %259 = arith.mulf %258, %257 : vector<2x16x16xf32>
    %260 = arith.addf %244, %259 : vector<2x16x16xf32>
    %261 = vector.extract_strided_slice %236 {offsets = [0, 6, 0], sizes = [2, 16, 16], strides = [1, 1, 1]} : vector<2x22x16xf32> to vector<2x16x16xf32>
    %262 = vector.broadcast %59 : f32 to vector<2x16x16xf32>
    %263 = arith.mulf %262, %261 : vector<2x16x16xf32>
    %264 = arith.addf %248, %263 : vector<2x16x16xf32>
    %c0_43 = arith.constant 0 : index
    %c0_44 = arith.constant 0 : index
    %c0_45 = arith.constant 0 : index
    %c5_46 = arith.constant 5 : index
    %265 = vector.load %arg4[%c0_43, %c0_44, %c0_45, %c5_46] : memref<2x2x22x22xf32, #tpu.memory_space<vmem>>, vector<1x2x22x16xf32>
    %266 = vector.shape_cast %265 : vector<1x2x22x16xf32> to vector<2x22x16xf32>
    %267 = vector.extract_strided_slice %266 {offsets = [0, 0, 0], sizes = [2, 16, 16], strides = [1, 1, 1]} : vector<2x22x16xf32> to vector<2x16x16xf32>
    %268 = vector.broadcast %18 : f32 to vector<2x16x16xf32>
    %269 = arith.mulf %268, %267 : vector<2x16x16xf32>
    %270 = arith.addf %252, %269 : vector<2x16x16xf32>
    %271 = vector.extract_strided_slice %266 {offsets = [0, 1, 0], sizes = [2, 16, 16], strides = [1, 1, 1]} : vector<2x22x16xf32> to vector<2x16x16xf32>
    %272 = vector.broadcast %25 : f32 to vector<2x16x16xf32>
    %273 = arith.mulf %272, %271 : vector<2x16x16xf32>
    %274 = arith.addf %256, %273 : vector<2x16x16xf32>
    %275 = vector.extract_strided_slice %266 {offsets = [0, 2, 0], sizes = [2, 16, 16], strides = [1, 1, 1]} : vector<2x22x16xf32> to vector<2x16x16xf32>
    %276 = vector.broadcast %32 : f32 to vector<2x16x16xf32>
    %277 = arith.mulf %276, %275 : vector<2x16x16xf32>
    %278 = arith.addf %260, %277 : vector<2x16x16xf32>
    %279 = vector.extract_strided_slice %266 {offsets = [0, 3, 0], sizes = [2, 16, 16], strides = [1, 1, 1]} : vector<2x22x16xf32> to vector<2x16x16xf32>
    %280 = vector.broadcast %39 : f32 to vector<2x16x16xf32>
    %281 = arith.mulf %280, %279 : vector<2x16x16xf32>
    %282 = arith.addf %264, %281 : vector<2x16x16xf32>
    %283 = vector.extract_strided_slice %266 {offsets = [0, 4, 0], sizes = [2, 16, 16], strides = [1, 1, 1]} : vector<2x22x16xf32> to vector<2x16x16xf32>
    %284 = vector.broadcast %46 : f32 to vector<2x16x16xf32>
    %285 = arith.mulf %284, %283 : vector<2x16x16xf32>
    %286 = arith.addf %270, %285 : vector<2x16x16xf32>
    %287 = vector.extract_strided_slice %266 {offsets = [0, 5, 0], sizes = [2, 16, 16], strides = [1, 1, 1]} : vector<2x22x16xf32> to vector<2x16x16xf32>
    %288 = vector.broadcast %53 : f32 to vector<2x16x16xf32>
    %289 = arith.mulf %288, %287 : vector<2x16x16xf32>
    %290 = arith.addf %274, %289 : vector<2x16x16xf32>
    %291 = vector.extract_strided_slice %266 {offsets = [0, 6, 0], sizes = [2, 16, 16], strides = [1, 1, 1]} : vector<2x22x16xf32> to vector<2x16x16xf32>
    %292 = vector.broadcast %60 : f32 to vector<2x16x16xf32>
    %293 = arith.mulf %292, %291 : vector<2x16x16xf32>
    %294 = arith.addf %278, %293 : vector<2x16x16xf32>
    %c0_47 = arith.constant 0 : index
    %c0_48 = arith.constant 0 : index
    %c0_49 = arith.constant 0 : index
    %c6_50 = arith.constant 6 : index
    %295 = vector.load %arg4[%c0_47, %c0_48, %c0_49, %c6_50] : memref<2x2x22x22xf32, #tpu.memory_space<vmem>>, vector<1x2x22x16xf32>
    %296 = vector.shape_cast %295 : vector<1x2x22x16xf32> to vector<2x22x16xf32>
    %297 = vector.extract_strided_slice %296 {offsets = [0, 0, 0], sizes = [2, 16, 16], strides = [1, 1, 1]} : vector<2x22x16xf32> to vector<2x16x16xf32>
    %298 = vector.broadcast %19 : f32 to vector<2x16x16xf32>
    %299 = arith.mulf %298, %297 : vector<2x16x16xf32>
    %300 = arith.addf %282, %299 : vector<2x16x16xf32>
    %301 = vector.extract_strided_slice %296 {offsets = [0, 1, 0], sizes = [2, 16, 16], strides = [1, 1, 1]} : vector<2x22x16xf32> to vector<2x16x16xf32>
    %302 = vector.broadcast %26 : f32 to vector<2x16x16xf32>
    %303 = arith.mulf %302, %301 : vector<2x16x16xf32>
    %304 = arith.addf %286, %303 : vector<2x16x16xf32>
    %305 = vector.extract_strided_slice %296 {offsets = [0, 2, 0], sizes = [2, 16, 16], strides = [1, 1, 1]} : vector<2x22x16xf32> to vector<2x16x16xf32>
    %306 = vector.broadcast %33 : f32 to vector<2x16x16xf32>
    %307 = arith.mulf %306, %305 : vector<2x16x16xf32>
    %308 = arith.addf %290, %307 : vector<2x16x16xf32>
    %309 = vector.extract_strided_slice %296 {offsets = [0, 3, 0], sizes = [2, 16, 16], strides = [1, 1, 1]} : vector<2x22x16xf32> to vector<2x16x16xf32>
    %310 = vector.broadcast %40 : f32 to vector<2x16x16xf32>
    %311 = arith.mulf %310, %309 : vector<2x16x16xf32>
    %312 = arith.addf %294, %311 : vector<2x16x16xf32>
    %313 = vector.extract_strided_slice %296 {offsets = [0, 4, 0], sizes = [2, 16, 16], strides = [1, 1, 1]} : vector<2x22x16xf32> to vector<2x16x16xf32>
    %314 = vector.broadcast %47 : f32 to vector<2x16x16xf32>
    %315 = arith.mulf %314, %313 : vector<2x16x16xf32>
    %316 = arith.addf %300, %315 : vector<2x16x16xf32>
    %317 = vector.extract_strided_slice %296 {offsets = [0, 5, 0], sizes = [2, 16, 16], strides = [1, 1, 1]} : vector<2x22x16xf32> to vector<2x16x16xf32>
    %318 = vector.broadcast %54 : f32 to vector<2x16x16xf32>
    %319 = arith.mulf %318, %317 : vector<2x16x16xf32>
    %320 = arith.addf %304, %319 : vector<2x16x16xf32>
    %321 = vector.extract_strided_slice %296 {offsets = [0, 6, 0], sizes = [2, 16, 16], strides = [1, 1, 1]} : vector<2x22x16xf32> to vector<2x16x16xf32>
    %322 = vector.broadcast %61 : f32 to vector<2x16x16xf32>
    %323 = arith.mulf %322, %321 : vector<2x16x16xf32>
    %324 = arith.addf %308, %323 : vector<2x16x16xf32>
    %c1_51 = arith.constant 1 : index
    %c0_52 = arith.constant 0 : index
    %c0_53 = arith.constant 0 : index
    %c0_54 = arith.constant 0 : index
    %325 = vector.load %arg4[%c1_51, %c0_52, %c0_53, %c0_54] : memref<2x2x22x22xf32, #tpu.memory_space<vmem>>, vector<1x2x22x16xf32>
    %326 = vector.shape_cast %325 : vector<1x2x22x16xf32> to vector<2x22x16xf32>
    %327 = vector.extract_strided_slice %326 {offsets = [0, 0, 0], sizes = [2, 16, 16], strides = [1, 1, 1]} : vector<2x22x16xf32> to vector<2x16x16xf32>
    %328 = vector.broadcast %62 : f32 to vector<2x16x16xf32>
    %329 = arith.mulf %328, %327 : vector<2x16x16xf32>
    %330 = arith.addf %312, %329 : vector<2x16x16xf32>
    %331 = vector.extract_strided_slice %326 {offsets = [0, 1, 0], sizes = [2, 16, 16], strides = [1, 1, 1]} : vector<2x22x16xf32> to vector<2x16x16xf32>
    %332 = vector.broadcast %69 : f32 to vector<2x16x16xf32>
    %333 = arith.mulf %332, %331 : vector<2x16x16xf32>
    %334 = arith.addf %316, %333 : vector<2x16x16xf32>
    %335 = vector.extract_strided_slice %326 {offsets = [0, 2, 0], sizes = [2, 16, 16], strides = [1, 1, 1]} : vector<2x22x16xf32> to vector<2x16x16xf32>
    %336 = vector.broadcast %76 : f32 to vector<2x16x16xf32>
    %337 = arith.mulf %336, %335 : vector<2x16x16xf32>
    %338 = arith.addf %320, %337 : vector<2x16x16xf32>
    %339 = vector.extract_strided_slice %326 {offsets = [0, 3, 0], sizes = [2, 16, 16], strides = [1, 1, 1]} : vector<2x22x16xf32> to vector<2x16x16xf32>
    %340 = vector.broadcast %83 : f32 to vector<2x16x16xf32>
    %341 = arith.mulf %340, %339 : vector<2x16x16xf32>
    %342 = arith.addf %324, %341 : vector<2x16x16xf32>
    %343 = vector.extract_strided_slice %326 {offsets = [0, 4, 0], sizes = [2, 16, 16], strides = [1, 1, 1]} : vector<2x22x16xf32> to vector<2x16x16xf32>
    %344 = vector.broadcast %90 : f32 to vector<2x16x16xf32>
    %345 = arith.mulf %344, %343 : vector<2x16x16xf32>
    %346 = arith.addf %330, %345 : vector<2x16x16xf32>
    %347 = vector.extract_strided_slice %326 {offsets = [0, 5, 0], sizes = [2, 16, 16], strides = [1, 1, 1]} : vector<2x22x16xf32> to vector<2x16x16xf32>
    %348 = vector.broadcast %97 : f32 to vector<2x16x16xf32>
    %349 = arith.mulf %348, %347 : vector<2x16x16xf32>
    %350 = arith.addf %334, %349 : vector<2x16x16xf32>
    %351 = vector.extract_strided_slice %326 {offsets = [0, 6, 0], sizes = [2, 16, 16], strides = [1, 1, 1]} : vector<2x22x16xf32> to vector<2x16x16xf32>
    %352 = vector.broadcast %104 : f32 to vector<2x16x16xf32>
    %353 = arith.mulf %352, %351 : vector<2x16x16xf32>
    %354 = arith.addf %338, %353 : vector<2x16x16xf32>
    %c1_55 = arith.constant 1 : index
    %c0_56 = arith.constant 0 : index
    %c0_57 = arith.constant 0 : index
    %c1_58 = arith.constant 1 : index
    %355 = vector.load %arg4[%c1_55, %c0_56, %c0_57, %c1_58] : memref<2x2x22x22xf32, #tpu.memory_space<vmem>>, vector<1x2x22x16xf32>
    %356 = vector.shape_cast %355 : vector<1x2x22x16xf32> to vector<2x22x16xf32>
    %357 = vector.extract_strided_slice %356 {offsets = [0, 0, 0], sizes = [2, 16, 16], strides = [1, 1, 1]} : vector<2x22x16xf32> to vector<2x16x16xf32>
    %358 = vector.broadcast %63 : f32 to vector<2x16x16xf32>
    %359 = arith.mulf %358, %357 : vector<2x16x16xf32>
    %360 = arith.addf %342, %359 : vector<2x16x16xf32>
    %361 = vector.extract_strided_slice %356 {offsets = [0, 1, 0], sizes = [2, 16, 16], strides = [1, 1, 1]} : vector<2x22x16xf32> to vector<2x16x16xf32>
    %362 = vector.broadcast %70 : f32 to vector<2x16x16xf32>
    %363 = arith.mulf %362, %361 : vector<2x16x16xf32>
    %364 = arith.addf %346, %363 : vector<2x16x16xf32>
    %365 = vector.extract_strided_slice %356 {offsets = [0, 2, 0], sizes = [2, 16, 16], strides = [1, 1, 1]} : vector<2x22x16xf32> to vector<2x16x16xf32>
    %366 = vector.broadcast %77 : f32 to vector<2x16x16xf32>
    %367 = arith.mulf %366, %365 : vector<2x16x16xf32>
    %368 = arith.addf %350, %367 : vector<2x16x16xf32>
    %369 = vector.extract_strided_slice %356 {offsets = [0, 3, 0], sizes = [2, 16, 16], strides = [1, 1, 1]} : vector<2x22x16xf32> to vector<2x16x16xf32>
    %370 = vector.broadcast %84 : f32 to vector<2x16x16xf32>
    %371 = arith.mulf %370, %369 : vector<2x16x16xf32>
    %372 = arith.addf %354, %371 : vector<2x16x16xf32>
    %373 = vector.extract_strided_slice %356 {offsets = [0, 4, 0], sizes = [2, 16, 16], strides = [1, 1, 1]} : vector<2x22x16xf32> to vector<2x16x16xf32>
    %374 = vector.broadcast %91 : f32 to vector<2x16x16xf32>
    %375 = arith.mulf %374, %373 : vector<2x16x16xf32>
    %376 = arith.addf %360, %375 : vector<2x16x16xf32>
    %377 = vector.extract_strided_slice %356 {offsets = [0, 5, 0], sizes = [2, 16, 16], strides = [1, 1, 1]} : vector<2x22x16xf32> to vector<2x16x16xf32>
    %378 = vector.broadcast %98 : f32 to vector<2x16x16xf32>
    %379 = arith.mulf %378, %377 : vector<2x16x16xf32>
    %380 = arith.addf %364, %379 : vector<2x16x16xf32>
    %381 = vector.extract_strided_slice %356 {offsets = [0, 6, 0], sizes = [2, 16, 16], strides = [1, 1, 1]} : vector<2x22x16xf32> to vector<2x16x16xf32>
    %382 = vector.broadcast %105 : f32 to vector<2x16x16xf32>
    %383 = arith.mulf %382, %381 : vector<2x16x16xf32>
    %384 = arith.addf %368, %383 : vector<2x16x16xf32>
    %c1_59 = arith.constant 1 : index
    %c0_60 = arith.constant 0 : index
    %c0_61 = arith.constant 0 : index
    %c2_62 = arith.constant 2 : index
    %385 = vector.load %arg4[%c1_59, %c0_60, %c0_61, %c2_62] : memref<2x2x22x22xf32, #tpu.memory_space<vmem>>, vector<1x2x22x16xf32>
    %386 = vector.shape_cast %385 : vector<1x2x22x16xf32> to vector<2x22x16xf32>
    %387 = vector.extract_strided_slice %386 {offsets = [0, 0, 0], sizes = [2, 16, 16], strides = [1, 1, 1]} : vector<2x22x16xf32> to vector<2x16x16xf32>
    %388 = vector.broadcast %64 : f32 to vector<2x16x16xf32>
    %389 = arith.mulf %388, %387 : vector<2x16x16xf32>
    %390 = arith.addf %372, %389 : vector<2x16x16xf32>
    %391 = vector.extract_strided_slice %386 {offsets = [0, 1, 0], sizes = [2, 16, 16], strides = [1, 1, 1]} : vector<2x22x16xf32> to vector<2x16x16xf32>
    %392 = vector.broadcast %71 : f32 to vector<2x16x16xf32>
    %393 = arith.mulf %392, %391 : vector<2x16x16xf32>
    %394 = arith.addf %376, %393 : vector<2x16x16xf32>
    %395 = vector.extract_strided_slice %386 {offsets = [0, 2, 0], sizes = [2, 16, 16], strides = [1, 1, 1]} : vector<2x22x16xf32> to vector<2x16x16xf32>
    %396 = vector.broadcast %78 : f32 to vector<2x16x16xf32>
    %397 = arith.mulf %396, %395 : vector<2x16x16xf32>
    %398 = arith.addf %380, %397 : vector<2x16x16xf32>
    %399 = vector.extract_strided_slice %386 {offsets = [0, 3, 0], sizes = [2, 16, 16], strides = [1, 1, 1]} : vector<2x22x16xf32> to vector<2x16x16xf32>
    %400 = vector.broadcast %85 : f32 to vector<2x16x16xf32>
    %401 = arith.mulf %400, %399 : vector<2x16x16xf32>
    %402 = arith.addf %384, %401 : vector<2x16x16xf32>
    %403 = vector.extract_strided_slice %386 {offsets = [0, 4, 0], sizes = [2, 16, 16], strides = [1, 1, 1]} : vector<2x22x16xf32> to vector<2x16x16xf32>
    %404 = vector.broadcast %92 : f32 to vector<2x16x16xf32>
    %405 = arith.mulf %404, %403 : vector<2x16x16xf32>
    %406 = arith.addf %390, %405 : vector<2x16x16xf32>
    %407 = vector.extract_strided_slice %386 {offsets = [0, 5, 0], sizes = [2, 16, 16], strides = [1, 1, 1]} : vector<2x22x16xf32> to vector<2x16x16xf32>
    %408 = vector.broadcast %99 : f32 to vector<2x16x16xf32>
    %409 = arith.mulf %408, %407 : vector<2x16x16xf32>
    %410 = arith.addf %394, %409 : vector<2x16x16xf32>
    %411 = vector.extract_strided_slice %386 {offsets = [0, 6, 0], sizes = [2, 16, 16], strides = [1, 1, 1]} : vector<2x22x16xf32> to vector<2x16x16xf32>
    %412 = vector.broadcast %106 : f32 to vector<2x16x16xf32>
    %413 = arith.mulf %412, %411 : vector<2x16x16xf32>
    %414 = arith.addf %398, %413 : vector<2x16x16xf32>
    %c1_63 = arith.constant 1 : index
    %c0_64 = arith.constant 0 : index
    %c0_65 = arith.constant 0 : index
    %c3_66 = arith.constant 3 : index
    %415 = vector.load %arg4[%c1_63, %c0_64, %c0_65, %c3_66] : memref<2x2x22x22xf32, #tpu.memory_space<vmem>>, vector<1x2x22x16xf32>
    %416 = vector.shape_cast %415 : vector<1x2x22x16xf32> to vector<2x22x16xf32>
    %417 = vector.extract_strided_slice %416 {offsets = [0, 0, 0], sizes = [2, 16, 16], strides = [1, 1, 1]} : vector<2x22x16xf32> to vector<2x16x16xf32>
    %418 = vector.broadcast %65 : f32 to vector<2x16x16xf32>
    %419 = arith.mulf %418, %417 : vector<2x16x16xf32>
    %420 = arith.addf %402, %419 : vector<2x16x16xf32>
    %421 = vector.extract_strided_slice %416 {offsets = [0, 1, 0], sizes = [2, 16, 16], strides = [1, 1, 1]} : vector<2x22x16xf32> to vector<2x16x16xf32>
    %422 = vector.broadcast %72 : f32 to vector<2x16x16xf32>
    %423 = arith.mulf %422, %421 : vector<2x16x16xf32>
    %424 = arith.addf %406, %423 : vector<2x16x16xf32>
    %425 = vector.extract_strided_slice %416 {offsets = [0, 2, 0], sizes = [2, 16, 16], strides = [1, 1, 1]} : vector<2x22x16xf32> to vector<2x16x16xf32>
    %426 = vector.broadcast %79 : f32 to vector<2x16x16xf32>
    %427 = arith.mulf %426, %425 : vector<2x16x16xf32>
    %428 = arith.addf %410, %427 : vector<2x16x16xf32>
    %429 = vector.extract_strided_slice %416 {offsets = [0, 3, 0], sizes = [2, 16, 16], strides = [1, 1, 1]} : vector<2x22x16xf32> to vector<2x16x16xf32>
    %430 = vector.broadcast %86 : f32 to vector<2x16x16xf32>
    %431 = arith.mulf %430, %429 : vector<2x16x16xf32>
    %432 = arith.addf %414, %431 : vector<2x16x16xf32>
    %433 = vector.extract_strided_slice %416 {offsets = [0, 4, 0], sizes = [2, 16, 16], strides = [1, 1, 1]} : vector<2x22x16xf32> to vector<2x16x16xf32>
    %434 = vector.broadcast %93 : f32 to vector<2x16x16xf32>
    %435 = arith.mulf %434, %433 : vector<2x16x16xf32>
    %436 = arith.addf %420, %435 : vector<2x16x16xf32>
    %437 = vector.extract_strided_slice %416 {offsets = [0, 5, 0], sizes = [2, 16, 16], strides = [1, 1, 1]} : vector<2x22x16xf32> to vector<2x16x16xf32>
    %438 = vector.broadcast %100 : f32 to vector<2x16x16xf32>
    %439 = arith.mulf %438, %437 : vector<2x16x16xf32>
    %440 = arith.addf %424, %439 : vector<2x16x16xf32>
    %441 = vector.extract_strided_slice %416 {offsets = [0, 6, 0], sizes = [2, 16, 16], strides = [1, 1, 1]} : vector<2x22x16xf32> to vector<2x16x16xf32>
    %442 = vector.broadcast %107 : f32 to vector<2x16x16xf32>
    %443 = arith.mulf %442, %441 : vector<2x16x16xf32>
    %444 = arith.addf %428, %443 : vector<2x16x16xf32>
    %c1_67 = arith.constant 1 : index
    %c0_68 = arith.constant 0 : index
    %c0_69 = arith.constant 0 : index
    %c4_70 = arith.constant 4 : index
    %445 = vector.load %arg4[%c1_67, %c0_68, %c0_69, %c4_70] : memref<2x2x22x22xf32, #tpu.memory_space<vmem>>, vector<1x2x22x16xf32>
    %446 = vector.shape_cast %445 : vector<1x2x22x16xf32> to vector<2x22x16xf32>
    %447 = vector.extract_strided_slice %446 {offsets = [0, 0, 0], sizes = [2, 16, 16], strides = [1, 1, 1]} : vector<2x22x16xf32> to vector<2x16x16xf32>
    %448 = vector.broadcast %66 : f32 to vector<2x16x16xf32>
    %449 = arith.mulf %448, %447 : vector<2x16x16xf32>
    %450 = arith.addf %432, %449 : vector<2x16x16xf32>
    %451 = vector.extract_strided_slice %446 {offsets = [0, 1, 0], sizes = [2, 16, 16], strides = [1, 1, 1]} : vector<2x22x16xf32> to vector<2x16x16xf32>
    %452 = vector.broadcast %73 : f32 to vector<2x16x16xf32>
    %453 = arith.mulf %452, %451 : vector<2x16x16xf32>
    %454 = arith.addf %436, %453 : vector<2x16x16xf32>
    %455 = vector.extract_strided_slice %446 {offsets = [0, 2, 0], sizes = [2, 16, 16], strides = [1, 1, 1]} : vector<2x22x16xf32> to vector<2x16x16xf32>
    %456 = vector.broadcast %80 : f32 to vector<2x16x16xf32>
    %457 = arith.mulf %456, %455 : vector<2x16x16xf32>
    %458 = arith.addf %440, %457 : vector<2x16x16xf32>
    %459 = vector.extract_strided_slice %446 {offsets = [0, 3, 0], sizes = [2, 16, 16], strides = [1, 1, 1]} : vector<2x22x16xf32> to vector<2x16x16xf32>
    %460 = vector.broadcast %87 : f32 to vector<2x16x16xf32>
    %461 = arith.mulf %460, %459 : vector<2x16x16xf32>
    %462 = arith.addf %444, %461 : vector<2x16x16xf32>
    %463 = vector.extract_strided_slice %446 {offsets = [0, 4, 0], sizes = [2, 16, 16], strides = [1, 1, 1]} : vector<2x22x16xf32> to vector<2x16x16xf32>
    %464 = vector.broadcast %94 : f32 to vector<2x16x16xf32>
    %465 = arith.mulf %464, %463 : vector<2x16x16xf32>
    %466 = arith.addf %450, %465 : vector<2x16x16xf32>
    %467 = vector.extract_strided_slice %446 {offsets = [0, 5, 0], sizes = [2, 16, 16], strides = [1, 1, 1]} : vector<2x22x16xf32> to vector<2x16x16xf32>
    %468 = vector.broadcast %101 : f32 to vector<2x16x16xf32>
    %469 = arith.mulf %468, %467 : vector<2x16x16xf32>
    %470 = arith.addf %454, %469 : vector<2x16x16xf32>
    %471 = vector.extract_strided_slice %446 {offsets = [0, 6, 0], sizes = [2, 16, 16], strides = [1, 1, 1]} : vector<2x22x16xf32> to vector<2x16x16xf32>
    %472 = vector.broadcast %108 : f32 to vector<2x16x16xf32>
    %473 = arith.mulf %472, %471 : vector<2x16x16xf32>
    %474 = arith.addf %458, %473 : vector<2x16x16xf32>
    %c1_71 = arith.constant 1 : index
    %c0_72 = arith.constant 0 : index
    %c0_73 = arith.constant 0 : index
    %c5_74 = arith.constant 5 : index
    %475 = vector.load %arg4[%c1_71, %c0_72, %c0_73, %c5_74] : memref<2x2x22x22xf32, #tpu.memory_space<vmem>>, vector<1x2x22x16xf32>
    %476 = vector.shape_cast %475 : vector<1x2x22x16xf32> to vector<2x22x16xf32>
    %477 = vector.extract_strided_slice %476 {offsets = [0, 0, 0], sizes = [2, 16, 16], strides = [1, 1, 1]} : vector<2x22x16xf32> to vector<2x16x16xf32>
    %478 = vector.broadcast %67 : f32 to vector<2x16x16xf32>
    %479 = arith.mulf %478, %477 : vector<2x16x16xf32>
    %480 = arith.addf %462, %479 : vector<2x16x16xf32>
    %481 = vector.extract_strided_slice %476 {offsets = [0, 1, 0], sizes = [2, 16, 16], strides = [1, 1, 1]} : vector<2x22x16xf32> to vector<2x16x16xf32>
    %482 = vector.broadcast %74 : f32 to vector<2x16x16xf32>
    %483 = arith.mulf %482, %481 : vector<2x16x16xf32>
    %484 = arith.addf %466, %483 : vector<2x16x16xf32>
    %485 = vector.extract_strided_slice %476 {offsets = [0, 2, 0], sizes = [2, 16, 16], strides = [1, 1, 1]} : vector<2x22x16xf32> to vector<2x16x16xf32>
    %486 = vector.broadcast %81 : f32 to vector<2x16x16xf32>
    %487 = arith.mulf %486, %485 : vector<2x16x16xf32>
    %488 = arith.addf %470, %487 : vector<2x16x16xf32>
    %489 = vector.extract_strided_slice %476 {offsets = [0, 3, 0], sizes = [2, 16, 16], strides = [1, 1, 1]} : vector<2x22x16xf32> to vector<2x16x16xf32>
    %490 = vector.broadcast %88 : f32 to vector<2x16x16xf32>
    %491 = arith.mulf %490, %489 : vector<2x16x16xf32>
    %492 = arith.addf %474, %491 : vector<2x16x16xf32>
    %493 = vector.extract_strided_slice %476 {offsets = [0, 4, 0], sizes = [2, 16, 16], strides = [1, 1, 1]} : vector<2x22x16xf32> to vector<2x16x16xf32>
    %494 = vector.broadcast %95 : f32 to vector<2x16x16xf32>
    %495 = arith.mulf %494, %493 : vector<2x16x16xf32>
    %496 = arith.addf %480, %495 : vector<2x16x16xf32>
    %497 = vector.extract_strided_slice %476 {offsets = [0, 5, 0], sizes = [2, 16, 16], strides = [1, 1, 1]} : vector<2x22x16xf32> to vector<2x16x16xf32>
    %498 = vector.broadcast %102 : f32 to vector<2x16x16xf32>
    %499 = arith.mulf %498, %497 : vector<2x16x16xf32>
    %500 = arith.addf %484, %499 : vector<2x16x16xf32>
    %501 = vector.extract_strided_slice %476 {offsets = [0, 6, 0], sizes = [2, 16, 16], strides = [1, 1, 1]} : vector<2x22x16xf32> to vector<2x16x16xf32>
    %502 = vector.broadcast %109 : f32 to vector<2x16x16xf32>
    %503 = arith.mulf %502, %501 : vector<2x16x16xf32>
    %504 = arith.addf %488, %503 : vector<2x16x16xf32>
    %c1_75 = arith.constant 1 : index
    %c0_76 = arith.constant 0 : index
    %c0_77 = arith.constant 0 : index
    %c6_78 = arith.constant 6 : index
    %505 = vector.load %arg4[%c1_75, %c0_76, %c0_77, %c6_78] : memref<2x2x22x22xf32, #tpu.memory_space<vmem>>, vector<1x2x22x16xf32>
    %506 = vector.shape_cast %505 : vector<1x2x22x16xf32> to vector<2x22x16xf32>
    %507 = vector.extract_strided_slice %506 {offsets = [0, 0, 0], sizes = [2, 16, 16], strides = [1, 1, 1]} : vector<2x22x16xf32> to vector<2x16x16xf32>
    %508 = vector.broadcast %68 : f32 to vector<2x16x16xf32>
    %509 = arith.mulf %508, %507 : vector<2x16x16xf32>
    %510 = arith.addf %492, %509 : vector<2x16x16xf32>
    %511 = vector.extract_strided_slice %506 {offsets = [0, 1, 0], sizes = [2, 16, 16], strides = [1, 1, 1]} : vector<2x22x16xf32> to vector<2x16x16xf32>
    %512 = vector.broadcast %75 : f32 to vector<2x16x16xf32>
    %513 = arith.mulf %512, %511 : vector<2x16x16xf32>
    %514 = arith.addf %496, %513 : vector<2x16x16xf32>
    %515 = vector.extract_strided_slice %506 {offsets = [0, 2, 0], sizes = [2, 16, 16], strides = [1, 1, 1]} : vector<2x22x16xf32> to vector<2x16x16xf32>
    %516 = vector.broadcast %82 : f32 to vector<2x16x16xf32>
    %517 = arith.mulf %516, %515 : vector<2x16x16xf32>
    %518 = arith.addf %500, %517 : vector<2x16x16xf32>
    %519 = vector.extract_strided_slice %506 {offsets = [0, 3, 0], sizes = [2, 16, 16], strides = [1, 1, 1]} : vector<2x22x16xf32> to vector<2x16x16xf32>
    %520 = vector.broadcast %89 : f32 to vector<2x16x16xf32>
    %521 = arith.mulf %520, %519 : vector<2x16x16xf32>
    %522 = arith.addf %504, %521 : vector<2x16x16xf32>
    %523 = vector.extract_strided_slice %506 {offsets = [0, 4, 0], sizes = [2, 16, 16], strides = [1, 1, 1]} : vector<2x22x16xf32> to vector<2x16x16xf32>
    %524 = vector.broadcast %96 : f32 to vector<2x16x16xf32>
    %525 = arith.mulf %524, %523 : vector<2x16x16xf32>
    %526 = arith.addf %510, %525 : vector<2x16x16xf32>
    %527 = vector.extract_strided_slice %506 {offsets = [0, 5, 0], sizes = [2, 16, 16], strides = [1, 1, 1]} : vector<2x22x16xf32> to vector<2x16x16xf32>
    %528 = vector.broadcast %103 : f32 to vector<2x16x16xf32>
    %529 = arith.mulf %528, %527 : vector<2x16x16xf32>
    %530 = arith.addf %514, %529 : vector<2x16x16xf32>
    %531 = vector.extract_strided_slice %506 {offsets = [0, 6, 0], sizes = [2, 16, 16], strides = [1, 1, 1]} : vector<2x22x16xf32> to vector<2x16x16xf32>
    %532 = vector.broadcast %110 : f32 to vector<2x16x16xf32>
    %533 = arith.mulf %532, %531 : vector<2x16x16xf32>
    %534 = arith.addf %518, %533 : vector<2x16x16xf32>
    %535 = arith.addf %530, %534 : vector<2x16x16xf32>
    %536 = arith.addf %522, %526 : vector<2x16x16xf32>
    %537 = arith.addf %535, %536 : vector<2x16x16xf32>
    %c0_79 = arith.constant 0 : index
    %c0_80 = arith.constant 0 : index
    %c0_81 = arith.constant 0 : index
    %538 = vector.load %arg3[%c0_79, %c0_80, %c0_81] : memref<2x16x16xf32, #tpu.memory_space<vmem>>, vector<2x16x16xf32>
    tpu.vector_store %arg3[%c0_79, %c0_80, %c0_81], %537 {strides = array<i32>} : memref<2x16x16xf32, #tpu.memory_space<vmem>>, vector<2x16x16xf32>,
    return
  }
  func.func @transform_0(%arg0: i32) -> i32 {
    %c0_i32 = arith.constant 0 : i32
    %c0_i32_0 = arith.constant 0 : i32
    return %c0_i32 : i32
  }
  func.func @transform_1(%arg0: i32) -> (i32, i32, i32, i32) {
    %c0_i32 = arith.constant 0 : i32
    %c0_i32_0 = arith.constant 0 : i32
    %c0_i32_1 = arith.constant 0 : i32
    %c0_i32_2 = arith.constant 0 : i32
    return %arg0, %c0_i32, %c0_i32_0, %c0_i32_1 : i32, i32, i32, i32
  }
  func.func @transform_2(%arg0: i32) -> (i32, i32, i32) {
    %c0_i32 = arith.constant 0 : i32
    %c0_i32_0 = arith.constant 0 : i32
    %c0_i32_1 = arith.constant 0 : i32
    return %arg0, %c0_i32, %c0_i32_0 : i32, i32, i32
  }
}

</mosaic_0001>

<llo_original>
// kernel: tpu_custom_call.1
$region0: #{tpu_custom_call.1}
  #allocation0 [shape = 'u32[]', space=smem, size = 0x4, offset = 0x4, fixed_abs, tag = 'smem constant byte address 0x4 - core index']
  #allocation1 [shape = 'u32[144,128]{1,0:T(1,128)}', space=vmem, size = 0x12000, scoped, tag = 'internal scratch']
  #allocation2 [shape = 'f32[2,2,22,22]{3,2,1,0:T(8,128)}', space=vmem, size = 0xc000, scoped, tag = 'scratch operand']
  %s0 = inlined_call_operand.hbm [shape: f32[98], index: 0, kind: input, shape index: {}]
  %s1 = inlined_call_operand.hbm [shape: f32[2,4,16,16], index: 1, kind: input, shape index: {}]
  %s2 = inlined_call_operand.hbm [shape: f32[2,16,16], index: 2, kind: output, shape index: {}]
  %s3 = sld [smem:[#allocation0]]
  $region26: #{tpu_custom_call.1} parent=0
    _
  %s5 = ssub.s32 1, %s3
  %s6 = scalar_select 0, %s5, %s3
  $region1: #{tpu_custom_call.1} parent=0
    #allocation3 [shape = 'u8[512]{0}', space=smem, size = 0x200, scoped, tag = 'input window, operand 0, single buffered']
    #allocation4 [shape = 's32[1]{0}', space=sflag, size = 0x4, scoped, tag = 'scoped memory for tpu_custom_call.1']
    #allocation5 [shape = 's32[1]{0}', space=sflag, size = 0x4, scoped, tag = 'scoped memory for tpu_custom_call.1']
    #allocation6 [shape = 's32[1]{0}', space=sflag, size = 0x4, scoped, tag = 'scoped memory for tpu_custom_call.1']
    #allocation7 [shape = 'u8[65536]{0}', space=vmem, size = 0x10000, scoped, tag = 'input window, operand 1, single buffered']
    #allocation8 [shape = 'u8[16384]{0}', space=vmem, size = 0x4000, scoped, tag = 'output window, operand 0, single buffered']
    %7 = vsyncpa [#allocation6], 0
    %8 = vsyncpa [#allocation4], 0
    %9 = vsyncpa [#allocation5], 0
    // Predicated region
    $region2: #{tpu_custom_call.1} parent=1 // pred_check
      _
    $region3: #{tpu_custom_call.1} parent=1 // pred_check_branch
      %11 = sbr.rel (0) target = $region5
    $region4: #{tpu_custom_call.1} parent=1 // pred_region
      %s13 = ssub.s32 16, 16
      %14 = vsyncadd [#allocation6], %s13
      %17 = dma.hbm_to_smem %s0, 16, [#allocation3], [#allocation6]
    $region5: #{tpu_custom_call.1} parent=1 // pred_fallthru
      _
    // Predicated region
    $region6: #{tpu_custom_call.1} parent=1 // pred_check
      _
    $region7: #{tpu_custom_call.1} parent=1 // pred_check_branch
      %19 = sbr.rel (0) target = $region9
    $region8: #{tpu_custom_call.1} parent=1 // pred_region
      %s21 = ssub.s32 2048, 2048
      %22 = vsyncadd [#allocation4], %s21
      %s23 = sshll.u32 [#allocation7], 4
      %s24 = int_to_ptr.vmem [resolvable:$true] %s23
      %29 = dma.hbm_to_vmem [thread:$0]  %s1, 2048, %s24, [#allocation4], 128, 128, 8
    $region9: #{tpu_custom_call.1} parent=1 // pred_fallthru
      _
    // Predicated region
    $region10: #{tpu_custom_call.1} parent=1 // pred_check
      _
    $region11: #{tpu_custom_call.1} parent=1 // pred_check_branch
      %31 = sbr.rel (0) target = $region13
    $region12: #{tpu_custom_call.1} parent=1 // pred_region
      %32 = dma.done [#allocation6], 16
    $region13: #{tpu_custom_call.1} parent=1 // pred_fallthru
      _
    // Predicated region
    $region14: #{tpu_custom_call.1} parent=1 // pred_check
      _
    $region15: #{tpu_custom_call.1} parent=1 // pred_check_branch
      %34 = sbr.rel (0) target = $region17
    $region16: #{tpu_custom_call.1} parent=1 // pred_region
      %35 = dma.done [#allocation4], 2048
    $region17: #{tpu_custom_call.1} parent=1 // pred_fallthru
      _
    %36 = sfence
    %v37 = vld [vmem:[#allocation7] sm:$0xff]
    %v38 = vld [vmem:[#allocation7 + $0x8] sm:$0xff]
    %v39 = vld [vmem:[#allocation7 + $0x10] sm:$0xff]
    %v40 = vld [vmem:[#allocation7 + $0x18] sm:$0xff]
    %v41 = vld [vmem:[#allocation7 + $0x20] sm:$0xff]
    %v42 = vld [vmem:[#allocation7 + $0x28] sm:$0xff]
    %v43 = vld [vmem:[#allocation7 + $0x30] sm:$0xff]
    %v44 = vld [vmem:[#allocation7 + $0x38] sm:$0xff]
    %v45 = vld [vmem:[#allocation7 + $0x40] sm:$0xff]
    %v46 = vld [vmem:[#allocation7 + $0x48] sm:$0xff]
    %v47 = vld [vmem:[#allocation7 + $0x50] sm:$0xff]
    %v48 = vld [vmem:[#allocation7 + $0x58] sm:$0xff]
    %v49 = vld [vmem:[#allocation7 + $0x60] sm:$0xff]
    %v50 = vld [vmem:[#allocation7 + $0x68] sm:$0xff]
    %v51 = vld [vmem:[#allocation7 + $0x70] sm:$0xff]
    %v52 = vld [vmem:[#allocation7 + $0x78] sm:$0xff]
    %vm53 = vcmask 130048
    %v54 = vsel %vm53, %v37, -inf
    %v55 = vsel %vm53, %v39, -inf
    %v56 = vmax.f32 %v54, %v55
    %v57 = vsel %vm53, %v41, -inf
    %v58 = vmax.f32 %v56, %v57
    %v59 = vsel %vm53, %v43, -inf
    %v60 = vmax.f32 %v58, %v59
    %v61 = vsel %vm53, %v38, -inf
    %v62 = vsel %vm53, %v40, -inf
    %v63 = vmax.f32 %v61, %v62
    %v64 = vsel %vm53, %v42, -inf
    %v65 = vmax.f32 %v63, %v64
    %v66 = vsel %vm53, %v44, -inf
    %v67 = vmax.f32 %v65, %v66
    %v68 = vsel %vm53, %v45, -inf
    %v69 = vsel %vm53, %v47, -inf
    %v70 = vmax.f32 %v68, %v69
    %v71 = vsel %vm53, %v49, -inf
    %v72 = vmax.f32 %v70, %v71
    %v73 = vsel %vm53, %v51, -inf
    %v74 = vmax.f32 %v72, %v73
    %v75 = vsel %vm53, %v46, -inf
    %v76 = vsel %vm53, %v48, -inf
    %v77 = vmax.f32 %v75, %v76
    %v78 = vsel %vm53, %v50, -inf
    %v79 = vmax.f32 %v77, %v78
    %v80 = vsel %vm53, %v52, -inf
    %v81 = vmax.f32 %v79, %v80
    %v82 = vsel %vm53, %v37, 0.0
    %v83 = vsel %vm53, %v39, 0.0
    %v84 = vadd.f32 %v82, %v83
    %v85 = vsel %vm53, %v41, 0.0
    %v86 = vadd.f32 %v84, %v85
    %v87 = vsel %vm53, %v43, 0.0
    %v88 = vadd.f32 %v86, %v87
    %v89 = vsel %vm53, %v38, 0.0
    %v90 = vsel %vm53, %v40, 0.0
    %v91 = vadd.f32 %v89, %v90
    %v92 = vsel %vm53, %v42, 0.0
    %v93 = vadd.f32 %v91, %v92
    %v94 = vsel %vm53, %v44, 0.0
    %v95 = vadd.f32 %v93, %v94
    %v96 = vsel %vm53, %v45, 0.0
    %v97 = vsel %vm53, %v47, 0.0
    %v98 = vadd.f32 %v96, %v97
    %v99 = vsel %vm53, %v49, 0.0
    %v100 = vadd.f32 %v98, %v99
    %v101 = vsel %vm53, %v51, 0.0
    %v102 = vadd.f32 %v100, %v101
    %v103 = vsel %vm53, %v46, 0.0
    %v104 = vsel %vm53, %v48, 0.0
    %v105 = vadd.f32 %v103, %v104
    %v106 = vsel %vm53, %v50, 0.0
    %v107 = vadd.f32 %v105, %v106
    %v108 = vsel %vm53, %v52, 0.0
    %v109 = vadd.f32 %v107, %v108
    %v110 = vrcp.pop 4.0
    %v111 = vmul.f32 %v88, %v110
    %v112 = vmul.f32 %v95, %v110
    %v113 = vmul.f32 %v102, %v110
    %v114 = vmul.f32 %v109, %v110
    %vm115 = vcmask 179200
    %116 = vst.msk [vmem:[#allocation2] sm:$0xff] %vm115, 0.0
    %117 = vst.msk [vmem:[#allocation2 + $0x8] sm:$0xff] %vm115, 0.0
    %vm118 = vcmask 177152
    %119 = vst.msk [vmem:[#allocation2 + $0x10] sm:$0x3f] %vm118, 0.0
    %120 = vst.msk [vmem:[#allocation2 + $0x18] sm:$0xff] %vm115, 0.0
    %121 = vst.msk [vmem:[#allocation2 + $0x20] sm:$0xff] %vm115, 0.0
    %122 = vst.msk [vmem:[#allocation2 + $0x28] sm:$0x3f] %vm118, 0.0
    %123 = vst.msk [vmem:[#allocation2 + $0x30] sm:$0xff] %vm115, 0.0
    %124 = vst.msk [vmem:[#allocation2 + $0x38] sm:$0xff] %vm115, 0.0
    %125 = vst.msk [vmem:[#allocation2 + $0x40] sm:$0x3f] %vm118, 0.0
    %126 = vst.msk [vmem:[#allocation2 + $0x48] sm:$0xff] %vm115, 0.0
    %127 = vst.msk [vmem:[#allocation2 + $0x50] sm:$0xff] %vm115, 0.0
    %128 = vst.msk [vmem:[#allocation2 + $0x58] sm:$0x3f] %vm118, 0.0
    %133 = vrot.lane.b32.xlu0 %v60, 3
    %v134 = vpop.permute.xlu0 %133
    %135 = vrot.lane.b32.xlu0 %v67, 3
    %v136 = vpop.permute.xlu0 %135
    %137 = vrot.lane.b32.xlu0 %v74, 3
    %v138 = vpop.permute.xlu0 %137
    %139 = vrot.lane.b32.xlu0 %v81, 3
    %v140 = vpop.permute.xlu0 %139
    %vm145 = vcmask 154648
    %146 = vst.msk [vmem:[#allocation2 + $0x3] sm:$0xff] %vm145, %v134
    %147 = vst.msk [vmem:[#allocation2 + $0xb] sm:$0xff] %vm145, %v136
    %148 = vst.msk [vmem:[#allocation2 + $0x1b] sm:$0xff] %vm145, %v138
    %149 = vst.msk [vmem:[#allocation2 + $0x23] sm:$0xff] %vm145, %v140
    %154 = vrot.lane.b32.xlu0 %v111, 3
    %v155 = vpop.permute.xlu0 %154
    %156 = vrot.lane.b32.xlu0 %v112, 3
    %v157 = vpop.permute.xlu0 %156
    %158 = vrot.lane.b32.xlu0 %v113, 3
    %v159 = vpop.permute.xlu0 %158
    %160 = vrot.lane.b32.xlu0 %v114, 3
    %v161 = vpop.permute.xlu0 %160
    %s166 = scalar_lea.vmem [#allocation2], 48
    %167 = vst.msk [vmem:[%s166 + $0x3] sm:$0xff] %vm145, %v155
    %168 = vst.msk [vmem:[%s166 + $0xb] sm:$0xff] %vm145, %v157
    %169 = vst.msk [vmem:[%s166 + $0x1b] sm:$0xff] %vm145, %v159
    %170 = vst.msk [vmem:[%s166 + $0x23] sm:$0xff] %vm145, %v161
    %s171 = sld [smem:[#allocation3]]
    %s172 = sld [smem:[#allocation3 + $0x1]]
    %s173 = sld [smem:[#allocation3 + $0x2]]
    %s174 = sld [smem:[#allocation3 + $0x3]]
    %s175 = sld [smem:[#allocation3 + $0x4]]
    %s176 = sld [smem:[#allocation3 + $0x5]]
    %s177 = sld [smem:[#allocation3 + $0x6]]
    %s178 = sld [smem:[#allocation3 + $0x7]]
    %s179 = sld [smem:[#allocation3 + $0x8]]
    %s180 = sld [smem:[#allocation3 + $0x9]]
    %s181 = sld [smem:[#allocation3 + $0xa]]
    %s182 = sld [smem:[#allocation3 + $0xb]]
    %s183 = sld [smem:[#allocation3 + $0xc]]
    %s184 = sld [smem:[#allocation3 + $0xd]]
    %s185 = sld [smem:[#allocation3 + $0xe]]
    %s186 = sld [smem:[#allocation3 + $0xf]]
    %s187 = sld [smem:[#allocation3 + $0x10]]
    %s188 = sld [smem:[#allocation3 + $0x11]]
    %s189 = sld [smem:[#allocation3 + $0x12]]
    %s190 = sld [smem:[#allocation3 + $0x13]]
    %s191 = sld [smem:[#allocation3 + $0x14]]
    %s192 = sld [smem:[#allocation3 + $0x15]]
    %s193 = sld [smem:[#allocation3 + $0x16]]
    %s194 = sld [smem:[#allocation3 + $0x17]]
    %s195 = sld [smem:[#allocation3 + $0x18]]
    %s196 = sld [smem:[#allocation3 + $0x19]]
    %s197 = sld [smem:[#allocation3 + $0x1a]]
    %s198 = sld [smem:[#allocation3 + $0x1b]]
    %s199 = sld [smem:[#allocation3 + $0x1c]]
    %s200 = sld [smem:[#allocation3 + $0x1d]]
    %s201 = sld [smem:[#allocation3 + $0x1e]]
    %s202 = sld [smem:[#allocation3 + $0x1f]]
    %s203 = sld [smem:[#allocation3 + $0x20]]
    %s204 = sld [smem:[#allocation3 + $0x21]]
    %s205 = sld [smem:[#allocation3 + $0x22]]
    %s206 = sld [smem:[#allocation3 + $0x23]]
    %s207 = sld [smem:[#allocation3 + $0x24]]
    %s208 = sld [smem:[#allocation3 + $0x25]]
    %s209 = sld [smem:[#allocation3 + $0x26]]
    %s210 = sld [smem:[#allocation3 + $0x27]]
    %s211 = sld [smem:[#allocation3 + $0x28]]
    %s212 = sld [smem:[#allocation3 + $0x29]]
    %s213 = sld [smem:[#allocation3 + $0x2a]]
    %s214 = sld [smem:[#allocation3 + $0x2b]]
    %s215 = sld [smem:[#allocation3 + $0x2c]]
    %s216 = sld [smem:[#allocation3 + $0x2d]]
    %s217 = sld [smem:[#allocation3 + $0x2e]]
    %s218 = sld [smem:[#allocation3 + $0x2f]]
    %s219 = sld [smem:[#allocation3 + $0x30]]
    %s220 = sld [smem:[#allocation3 + $0x31]]
    %s221 = sld [smem:[#allocation3 + $0x32]]
    %s222 = sld [smem:[#allocation3 + $0x33]]
    %s223 = sld [smem:[#allocation3 + $0x34]]
    %s224 = sld [smem:[#allocation3 + $0x35]]
    %s225 = sld [smem:[#allocation3 + $0x36]]
    %s226 = sld [smem:[#allocation3 + $0x37]]
    %s227 = sld [smem:[#allocation3 + $0x38]]
    %s228 = sld [smem:[#allocation3 + $0x39]]
    %s229 = sld [smem:[#allocation3 + $0x3a]]
    %s230 = sld [smem:[#allocation3 + $0x3b]]
    %s231 = sld [smem:[#allocation3 + $0x3c]]
    %s232 = sld [smem:[#allocation3 + $0x3d]]
    %s233 = sld [smem:[#allocation3 + $0x3e]]
    %s234 = sld [smem:[#allocation3 + $0x3f]]
    %s235 = sld [smem:[#allocation3 + $0x40]]
    %s236 = sld [smem:[#allocation3 + $0x41]]
    %s237 = sld [smem:[#allocation3 + $0x42]]
    %s238 = sld [smem:[#allocation3 + $0x43]]
    %s239 = sld [smem:[#allocation3 + $0x44]]
    %s240 = sld [smem:[#allocation3 + $0x45]]
    %s241 = sld [smem:[#allocation3 + $0x46]]
    %s242 = sld [smem:[#allocation3 + $0x47]]
    %s243 = sld [smem:[#allocation3 + $0x48]]
    %s244 = sld [smem:[#allocation3 + $0x49]]
    %s245 = sld [smem:[#allocation3 + $0x4a]]
    %s246 = sld [smem:[#allocation3 + $0x4b]]
    %s247 = sld [smem:[#allocation3 + $0x4c]]
    %s248 = sld [smem:[#allocation3 + $0x4d]]
    %s249 = sld [smem:[#allocation3 + $0x4e]]
    %s250 = sld [smem:[#allocation3 + $0x4f]]
    %s251 = sld [smem:[#allocation3 + $0x50]]
    %s252 = sld [smem:[#allocation3 + $0x51]]
    %s253 = sld [smem:[#allocation3 + $0x52]]
    %s254 = sld [smem:[#allocation3 + $0x53]]
    %s255 = sld [smem:[#allocation3 + $0x54]]
    %s256 = sld [smem:[#allocation3 + $0x55]]
    %s257 = sld [smem:[#allocation3 + $0x56]]
    %s258 = sld [smem:[#allocation3 + $0x57]]
    %s259 = sld [smem:[#allocation3 + $0x58]]
    %s260 = sld [smem:[#allocation3 + $0x59]]
    %s261 = sld [smem:[#allocation3 + $0x5a]]
    %s262 = sld [smem:[#allocation3 + $0x5b]]
    %s263 = sld [smem:[#allocation3 + $0x5c]]
    %s264 = sld [smem:[#allocation3 + $0x5d]]
    %s265 = sld [smem:[#allocation3 + $0x5e]]
    %s266 = sld [smem:[#allocation3 + $0x5f]]
    %s267 = sld [smem:[#allocation3 + $0x60]]
    %s268 = sld [smem:[#allocation3 + $0x61]]
    %v269 = vld [vmem:[#allocation2] sm:$0xff]
    %v270 = vld [vmem:[#allocation2 + $0x8] sm:$0xff]
    %v271 = vld [vmem:[#allocation2 + $0x10] sm:$0x3f]
    %v272 = vld [vmem:[#allocation2 + $0x18] sm:$0xff]
    %v273 = vld [vmem:[#allocation2 + $0x20] sm:$0xff]
    %v274 = vld [vmem:[#allocation2 + $0x28] sm:$0x3f]
    %v275 = vstv %s171
    %v276 = vmul.f32 %v275, %v269
    %v277 = vmul.f32 %v275, %v270
    %v278 = vmul.f32 %v275, %v272
    %v279 = vmul.f32 %v275, %v273
    %v280 = vadd.f32 %v276, 0.0
    %v281 = vadd.f32 %v277, 0.0
    %v282 = vadd.f32 %v278, 0.0
    %v283 = vadd.f32 %v279, 0.0
    %v284 = vstv %s178
    %v285 = vmul.f32 %v284, %v269
    %v286 = vmul.f32 %v284, %v270
    %v287 = vmul.f32 %v284, %v271
    %v288 = vmul.f32 %v284, %v272
    %v289 = vmul.f32 %v284, %v273
    %v290 = vmul.f32 %v284, %v274
    %v291 = vadd.f32 %v285, 0.0
    %v292 = vadd.f32 %v286, 0.0
    %v293 = vadd.f32 %v287, 0.0
    %v294 = vadd.f32 %v288, 0.0
    %v295 = vadd.f32 %v289, 0.0
    %v296 = vadd.f32 %v290, 0.0
    %v297 = vstv %s185
    %v298 = vmul.f32 %v297, %v269
    %v299 = vmul.f32 %v297, %v270
    %v300 = vmul.f32 %v297, %v271
    %v301 = vmul.f32 %v297, %v272
    %v302 = vmul.f32 %v297, %v273
    %v303 = vmul.f32 %v297, %v274
    %v304 = vadd.f32 %v298, 0.0
    %v305 = vadd.f32 %v299, 0.0
    %v306 = vadd.f32 %v300, 0.0
    %v307 = vadd.f32 %v301, 0.0
    %v308 = vadd.f32 %v302, 0.0
    %v309 = vadd.f32 %v303, 0.0
    %v310 = vstv %s192
    %v311 = vmul.f32 %v310, %v269
    %v312 = vmul.f32 %v310, %v270
    %v313 = vmul.f32 %v310, %v271
    %v314 = vmul.f32 %v310, %v272
    %v315 = vmul.f32 %v310, %v273
    %v316 = vmul.f32 %v310, %v274
    %v317 = vadd.f32 %v311, 0.0
    %v318 = vadd.f32 %v312, 0.0
    %v319 = vadd.f32 %v313, 0.0
    %v320 = vadd.f32 %v314, 0.0
    %v321 = vadd.f32 %v315, 0.0
    %v322 = vadd.f32 %v316, 0.0
    %v323 = vstv %s199
    %v324 = vmul.f32 %v323, %v269
    %v325 = vmul.f32 %v323, %v270
    %v326 = vmul.f32 %v323, %v271
    %v327 = vmul.f32 %v323, %v272
    %v328 = vmul.f32 %v323, %v273
    %v329 = vmul.f32 %v323, %v274
    %vm336 = vcmask 1043456
    %v337 = vrot.slane %v324, 4
    %v338 = vrot.slane %v325, 4
    %v339 = vsel %vm336, %v337, %v338
    %v340 = vrot.slane %v326, 4
    %v341 = vsel %vm336, %v338, %v340
    %v342 = vrot.slane %v327, 4
    %v343 = vrot.slane %v328, 4
    %v344 = vsel %vm336, %v342, %v343
    %v345 = vrot.slane %v329, 4
    %v346 = vsel %vm336, %v343, %v345
    %v351 = vadd.f32 %v280, %v339
    %v352 = vadd.f32 %v281, %v341
    %v353 = vadd.f32 %v282, %v344
    %v354 = vadd.f32 %v283, %v346
    %v355 = vstv %s206
    %v356 = vmul.f32 %v355, %v269
    %v357 = vmul.f32 %v355, %v270
    %v358 = vmul.f32 %v355, %v271
    %v359 = vmul.f32 %v355, %v272
    %v360 = vmul.f32 %v355, %v273
    %v361 = vmul.f32 %v355, %v274
    %v368 = vrot.slane %v356, 4
    %v369 = vrot.slane %v357, 4
    %v370 = vsel %vm336, %v368, %v369
    %v371 = vrot.slane %v358, 4
    %v372 = vsel %vm336, %v369, %v371
    %v373 = vrot.slane %v359, 4
    %v374 = vrot.slane %v360, 4
    %v375 = vsel %vm336, %v373, %v374
    %v376 = vrot.slane %v361, 4
    %v377 = vsel %vm336, %v374, %v376
    %v384 = vadd.f32 %v291, %v370
    %v385 = vadd.f32 %v292, %v372
    %v386 = vadd.f32 %v293, %v371
    %v387 = vadd.f32 %v294, %v375
    %v388 = vadd.f32 %v295, %v377
    %v389 = vadd.f32 %v296, %v376
    %v390 = vstv %s213
    %v391 = vmul.f32 %v390, %v269
    %v392 = vmul.f32 %v390, %v270
    %v393 = vmul.f32 %v390, %v271
    %v394 = vmul.f32 %v390, %v272
    %v395 = vmul.f32 %v390, %v273
    %v396 = vmul.f32 %v390, %v274
    %v403 = vrot.slane %v391, 4
    %v404 = vrot.slane %v392, 4
    %v405 = vsel %vm336, %v403, %v404
    %v406 = vrot.slane %v393, 4
    %v407 = vsel %vm336, %v404, %v406
    %v408 = vrot.slane %v394, 4
    %v409 = vrot.slane %v395, 4
    %v410 = vsel %vm336, %v408, %v409
    %v411 = vrot.slane %v396, 4
    %v412 = vsel %vm336, %v409, %v411
    %v419 = vadd.f32 %v304, %v405
    %v420 = vadd.f32 %v305, %v407
    %v421 = vadd.f32 %v306, %v406
    %v422 = vadd.f32 %v307, %v410
    %v423 = vadd.f32 %v308, %v412
    %v424 = vadd.f32 %v309, %v411
    %v425 = vstv %s172
    %v426 = vmul.f32 %v425, %v269
    %v427 = vmul.f32 %v425, %v270
    %v428 = vmul.f32 %v425, %v272
    %v429 = vmul.f32 %v425, %v273
    %vm434 = vcmask 1042432
    %v435 = vrot.slane %v426, 5
    %v436 = vrot.slane %v427, 5
    %v437 = vsel %vm434, %v435, %v436
    %v438 = vrot.slane %v428, 5
    %v439 = vrot.slane %v429, 5
    %v440 = vsel %vm434, %v438, %v439
    %441 = vrot.lane.b32.xlu0 %v435, 127
    %v442 = vpop.permute.xlu0 %441
    %443 = vrot.lane.b32.xlu0 %v437, 127
    %v444 = vpop.permute.xlu0 %443
    %445 = vrot.lane.b32.xlu0 %v436, 127
    %v446 = vpop.permute.xlu0 %445
    %447 = vrot.lane.b32.xlu0 %v438, 127
    %v448 = vpop.permute.xlu0 %447
    %449 = vrot.lane.b32.xlu0 %v440, 127
    %v450 = vpop.permute.xlu0 %449
    %451 = vrot.lane.b32.xlu0 %v439, 127
    %v452 = vpop.permute.xlu0 %451
    %v459 = vadd.f32 %v317, %v442
    %v460 = vadd.f32 %v318, %v444
    %v461 = vadd.f32 %v319, %v446
    %v462 = vadd.f32 %v320, %v448
    %v463 = vadd.f32 %v321, %v450
    %v464 = vadd.f32 %v322, %v452
    %v465 = vstv %s179
    %v466 = vmul.f32 %v465, %v269
    %v467 = vmul.f32 %v465, %v270
    %v468 = vmul.f32 %v465, %v271
    %v469 = vmul.f32 %v465, %v272
    %v470 = vmul.f32 %v465, %v273
    %v471 = vmul.f32 %v465, %v274
    %vm478 = vcmask 1046528
    %v479 = vrot.slane %v466, 1
    %v480 = vrot.slane %v467, 1
    %v481 = vsel %vm478, %v479, %v480
    %v482 = vrot.slane %v468, 1
    %v483 = vsel %vm478, %v480, %v482
    %v484 = vrot.slane %v469, 1
    %v485 = vrot.slane %v470, 1
    %v486 = vsel %vm478, %v484, %v485
    %v487 = vrot.slane %v471, 1
    %v488 = vsel %vm478, %v485, %v487
    %489 = vrot.lane.b32.xlu0 %v481, 127
    %v490 = vpop.permute.xlu0 %489
    %491 = vrot.lane.b32.xlu0 %v483, 127
    %v492 = vpop.permute.xlu0 %491
    %493 = vrot.lane.b32.xlu0 %v486, 127
    %v494 = vpop.permute.xlu0 %493
    %495 = vrot.lane.b32.xlu0 %v488, 127
    %v496 = vpop.permute.xlu0 %495
    %v501 = vadd.f32 %v351, %v490
    %v502 = vadd.f32 %v352, %v492
    %v503 = vadd.f32 %v353, %v494
    %v504 = vadd.f32 %v354, %v496
    %v505 = vstv %s186
    %v506 = vmul.f32 %v505, %v269
    %v507 = vmul.f32 %v505, %v270
    %v508 = vmul.f32 %v505, %v271
    %v509 = vmul.f32 %v505, %v272
    %v510 = vmul.f32 %v505, %v273
    %v511 = vmul.f32 %v505, %v274
    %v518 = vrot.slane %v506, 1
    %v519 = vrot.slane %v507, 1
    %v520 = vsel %vm478, %v518, %v519
    %v521 = vrot.slane %v508, 1
    %v522 = vsel %vm478, %v519, %v521
    %v523 = vrot.slane %v509, 1
    %v524 = vrot.slane %v510, 1
    %v525 = vsel %vm478, %v523, %v524
    %v526 = vrot.slane %v511, 1
    %v527 = vsel %vm478, %v524, %v526
    %528 = vrot.lane.b32.xlu0 %v520, 127
    %v529 = vpop.permute.xlu0 %528
    %530 = vrot.lane.b32.xlu0 %v522, 127
    %v531 = vpop.permute.xlu0 %530
    %532 = vrot.lane.b32.xlu0 %v521, 127
    %v533 = vpop.permute.xlu0 %532
    %534 = vrot.lane.b32.xlu0 %v525, 127
    %v535 = vpop.permute.xlu0 %534
    %536 = vrot.lane.b32.xlu0 %v527, 127
    %v537 = vpop.permute.xlu0 %536
    %538 = vrot.lane.b32.xlu0 %v526, 127
    %v539 = vpop.permute.xlu0 %538
    %v546 = vadd.f32 %v384, %v529
    %v547 = vadd.f32 %v385, %v531
    %v548 = vadd.f32 %v386, %v533
    %v549 = vadd.f32 %v387, %v535
    %v550 = vadd.f32 %v388, %v537
    %v551 = vadd.f32 %v389, %v539
    %v552 = vstv %s193
    %v553 = vmul.f32 %v552, %v269
    %v554 = vmul.f32 %v552, %v270
    %v555 = vmul.f32 %v552, %v271
    %v556 = vmul.f32 %v552, %v272
    %v557 = vmul.f32 %v552, %v273
    %v558 = vmul.f32 %v552, %v274
    %v565 = vrot.slane %v553, 1
    %v566 = vrot.slane %v554, 1
    %v567 = vsel %vm478, %v565, %v566
    %v568 = vrot.slane %v555, 1
    %v569 = vsel %vm478, %v566, %v568
    %v570 = vrot.slane %v556, 1
    %v571 = vrot.slane %v557, 1
    %v572 = vsel %vm478, %v570, %v571
    %v573 = vrot.slane %v558, 1
    %v574 = vsel %vm478, %v571, %v573
    %575 = vrot.lane.b32.xlu0 %v567, 127
    %v576 = vpop.permute.xlu0 %575
    %577 = vrot.lane.b32.xlu0 %v569, 127
    %v578 = vpop.permute.xlu0 %577
    %579 = vrot.lane.b32.xlu0 %v568, 127
    %v580 = vpop.permute.xlu0 %579
    %581 = vrot.lane.b32.xlu0 %v572, 127
    %v582 = vpop.permute.xlu0 %581
    %583 = vrot.lane.b32.xlu0 %v574, 127
    %v584 = vpop.permute.xlu0 %583
    %585 = vrot.lane.b32.xlu0 %v573, 127
    %v586 = vpop.permute.xlu0 %585
    %v593 = vadd.f32 %v419, %v576
    %v594 = vadd.f32 %v420, %v578
    %v595 = vadd.f32 %v421, %v580
    %v596 = vadd.f32 %v422, %v582
    %v597 = vadd.f32 %v423, %v584
    %v598 = vadd.f32 %v424, %v586
    %v599 = vstv %s200
    %v600 = vmul.f32 %v599, %v269
    %v601 = vmul.f32 %v599, %v270
    %v602 = vmul.f32 %v599, %v271
    %v603 = vmul.f32 %v599, %v272
    %v604 = vmul.f32 %v599, %v273
    %v605 = vmul.f32 %v599, %v274
    %v612 = vrot.slane %v600, 1
    %v613 = vrot.slane %v601, 1
    %v614 = vsel %vm478, %v612, %v613
    %v615 = vrot.slane %v602, 1
    %v616 = vsel %vm478, %v613, %v615
    %v617 = vrot.slane %v603, 1
    %v618 = vrot.slane %v604, 1
    %v619 = vsel %vm478, %v617, %v618
    %v620 = vrot.slane %v605, 1
    %v621 = vsel %vm478, %v618, %v620
    %622 = vrot.lane.b32.xlu0 %v614, 127
    %v623 = vpop.permute.xlu0 %622
    %624 = vrot.lane.b32.xlu0 %v616, 127
    %v625 = vpop.permute.xlu0 %624
    %626 = vrot.lane.b32.xlu0 %v615, 127
    %v627 = vpop.permute.xlu0 %626
    %628 = vrot.lane.b32.xlu0 %v619, 127
    %v629 = vpop.permute.xlu0 %628
    %630 = vrot.lane.b32.xlu0 %v621, 127
    %v631 = vpop.permute.xlu0 %630
    %632 = vrot.lane.b32.xlu0 %v620, 127
    %v633 = vpop.permute.xlu0 %632
    %v640 = vadd.f32 %v459, %v623
    %v641 = vadd.f32 %v460, %v625
    %v642 = vadd.f32 %v461, %v627
    %v643 = vadd.f32 %v462, %v629
    %v644 = vadd.f32 %v463, %v631
    %v645 = vadd.f32 %v464, %v633
    %v646 = vstv %s207
    %v647 = vmul.f32 %v646, %v269
    %v648 = vmul.f32 %v646, %v270
    %v649 = vmul.f32 %v646, %v271
    %v650 = vmul.f32 %v646, %v272
    %v651 = vmul.f32 %v646, %v273
    %v652 = vmul.f32 %v646, %v274
    %v659 = vrot.slane %v647, 5
    %v660 = vrot.slane %v648, 5
    %v661 = vsel %vm434, %v659, %v660
    %v662 = vrot.slane %v649, 5
    %v663 = vsel %vm434, %v660, %v662
    %v664 = vrot.slane %v650, 5
    %v665 = vrot.slane %v651, 5
    %v666 = vsel %vm434, %v664, %v665
    %v667 = vrot.slane %v652, 5
    %v668 = vsel %vm434, %v665, %v667
    %669 = vrot.lane.b32.xlu0 %v661, 127
    %v670 = vpop.permute.xlu0 %669
    %671 = vrot.lane.b32.xlu0 %v663, 127
    %v672 = vpop.permute.xlu0 %671
    %673 = vrot.lane.b32.xlu0 %v666, 127
    %v674 = vpop.permute.xlu0 %673
    %675 = vrot.lane.b32.xlu0 %v668, 127
    %v676 = vpop.permute.xlu0 %675
    %v681 = vadd.f32 %v501, %v670
    %v682 = vadd.f32 %v502, %v672
    %v683 = vadd.f32 %v503, %v674
    %v684 = vadd.f32 %v504, %v676
    %v685 = vstv %s214
    %v686 = vmul.f32 %v685, %v269
    %v687 = vmul.f32 %v685, %v270
    %v688 = vmul.f32 %v685, %v271
    %v689 = vmul.f32 %v685, %v272
    %v690 = vmul.f32 %v685, %v273
    %v691 = vmul.f32 %v685, %v274
    %v698 = vrot.slane %v686, 5
    %v699 = vrot.slane %v687, 5
    %v700 = vsel %vm434, %v698, %v699
    %v701 = vrot.slane %v688, 5
    %v702 = vsel %vm434, %v699, %v701
    %v703 = vrot.slane %v689, 5
    %v704 = vrot.slane %v690, 5
    %v705 = vsel %vm434, %v703, %v704
    %v706 = vrot.slane %v691, 5
    %v707 = vsel %vm434, %v704, %v706
    %708 = vrot.lane.b32.xlu0 %v700, 127
    %v709 = vpop.permute.xlu0 %708
    %710 = vrot.lane.b32.xlu0 %v702, 127
    %v711 = vpop.permute.xlu0 %710
    %712 = vrot.lane.b32.xlu0 %v701, 127
    %v713 = vpop.permute.xlu0 %712
    %714 = vrot.lane.b32.xlu0 %v705, 127
    %v715 = vpop.permute.xlu0 %714
    %716 = vrot.lane.b32.xlu0 %v707, 127
    %v717 = vpop.permute.xlu0 %716
    %718 = vrot.lane.b32.xlu0 %v706, 127
    %v719 = vpop.permute.xlu0 %718
    %v726 = vadd.f32 %v546, %v709
    %v727 = vadd.f32 %v547, %v711
    %v728 = vadd.f32 %v548, %v713
    %v729 = vadd.f32 %v549, %v715
    %v730 = vadd.f32 %v550, %v717
    %v731 = vadd.f32 %v551, %v719
    %v732 = vstv %s173
    %v733 = vmul.f32 %v732, %v269
    %v734 = vmul.f32 %v732, %v270
    %v735 = vmul.f32 %v732, %v272
    %v736 = vmul.f32 %v732, %v273
    %vm741 = vcmask 1041408
    %v742 = vrot.slane %v733, 6
    %v743 = vrot.slane %v734, 6
    %v744 = vsel %vm741, %v742, %v743
    %v745 = vrot.slane %v735, 6
    %v746 = vrot.slane %v736, 6
    %v747 = vsel %vm741, %v745, %v746
    %748 = vrot.lane.b32.xlu0 %v742, 126
    %v749 = vpop.permute.xlu0 %748
    %750 = vrot.lane.b32.xlu0 %v744, 126
    %v751 = vpop.permute.xlu0 %750
    %752 = vrot.lane.b32.xlu0 %v743, 126
    %v753 = vpop.permute.xlu0 %752
    %754 = vrot.lane.b32.xlu0 %v745, 126
    %v755 = vpop.permute.xlu0 %754
    %756 = vrot.lane.b32.xlu0 %v747, 126
    %v757 = vpop.permute.xlu0 %756
    %758 = vrot.lane.b32.xlu0 %v746, 126
    %v759 = vpop.permute.xlu0 %758
    %v766 = vadd.f32 %v593, %v749
    %v767 = vadd.f32 %v594, %v751
    %v768 = vadd.f32 %v595, %v753
    %v769 = vadd.f32 %v596, %v755
    %v770 = vadd.f32 %v597, %v757
    %v771 = vadd.f32 %v598, %v759
    %v772 = vstv %s180
    %v773 = vmul.f32 %v772, %v269
    %v774 = vmul.f32 %v772, %v270
    %v775 = vmul.f32 %v772, %v271
    %v776 = vmul.f32 %v772, %v272
    %v777 = vmul.f32 %v772, %v273
    %v778 = vmul.f32 %v772, %v274
    %v785 = vrot.slane %v773, 6
    %v786 = vrot.slane %v774, 6
    %v787 = vsel %vm741, %v785, %v786
    %v788 = vrot.slane %v775, 6
    %v789 = vsel %vm741, %v786, %v788
    %v790 = vrot.slane %v776, 6
    %v791 = vrot.slane %v777, 6
    %v792 = vsel %vm741, %v790, %v791
    %v793 = vrot.slane %v778, 6
    %v794 = vsel %vm741, %v791, %v793
    %795 = vrot.lane.b32.xlu0 %v785, 126
    %v796 = vpop.permute.xlu0 %795
    %797 = vrot.lane.b32.xlu0 %v787, 126
    %v798 = vpop.permute.xlu0 %797
    %799 = vrot.lane.b32.xlu0 %v789, 126
    %v800 = vpop.permute.xlu0 %799
    %801 = vrot.lane.b32.xlu0 %v790, 126
    %v802 = vpop.permute.xlu0 %801
    %803 = vrot.lane.b32.xlu0 %v792, 126
    %v804 = vpop.permute.xlu0 %803
    %805 = vrot.lane.b32.xlu0 %v794, 126
    %v806 = vpop.permute.xlu0 %805
    %v813 = vadd.f32 %v640, %v796
    %v814 = vadd.f32 %v641, %v798
    %v815 = vadd.f32 %v642, %v800
    %v816 = vadd.f32 %v643, %v802
    %v817 = vadd.f32 %v644, %v804
    %v818 = vadd.f32 %v645, %v806
    %v819 = vstv %s187
    %v820 = vmul.f32 %v819, %v269
    %v821 = vmul.f32 %v819, %v270
    %v822 = vmul.f32 %v819, %v271
    %v823 = vmul.f32 %v819, %v272
    %v824 = vmul.f32 %v819, %v273
    %v825 = vmul.f32 %v819, %v274
    %vm832 = vcmask 1045504
    %v833 = vrot.slane %v820, 2
    %v834 = vrot.slane %v821, 2
    %v835 = vsel %vm832, %v833, %v834
    %v836 = vrot.slane %v822, 2
    %v837 = vsel %vm832, %v834, %v836
    %v838 = vrot.slane %v823, 2
    %v839 = vrot.slane %v824, 2
    %v840 = vsel %vm832, %v838, %v839
    %v841 = vrot.slane %v825, 2
    %v842 = vsel %vm832, %v839, %v841
    %843 = vrot.lane.b32.xlu0 %v835, 126
    %v844 = vpop.permute.xlu0 %843
    %845 = vrot.lane.b32.xlu0 %v837, 126
    %v846 = vpop.permute.xlu0 %845
    %847 = vrot.lane.b32.xlu0 %v840, 126
    %v848 = vpop.permute.xlu0 %847
    %849 = vrot.lane.b32.xlu0 %v842, 126
    %v850 = vpop.permute.xlu0 %849
    %v855 = vadd.f32 %v681, %v844
    %v856 = vadd.f32 %v682, %v846
    %v857 = vadd.f32 %v683, %v848
    %v858 = vadd.f32 %v684, %v850
    %v859 = vstv %s194
    %v860 = vmul.f32 %v859, %v269
    %v861 = vmul.f32 %v859, %v270
    %v862 = vmul.f32 %v859, %v271
    %v863 = vmul.f32 %v859, %v272
    %v864 = vmul.f32 %v859, %v273
    %v865 = vmul.f32 %v859, %v274
    %v872 = vrot.slane %v860, 2
    %v873 = vrot.slane %v861, 2
    %v874 = vsel %vm832, %v872, %v873
    %v875 = vrot.slane %v862, 2
    %v876 = vsel %vm832, %v873, %v875
    %v877 = vrot.slane %v863, 2
    %v878 = vrot.slane %v864, 2
    %v879 = vsel %vm832, %v877, %v878
    %v880 = vrot.slane %v865, 2
    %v881 = vsel %vm832, %v878, %v880
    %882 = vrot.lane.b32.xlu0 %v874, 126
    %v883 = vpop.permute.xlu0 %882
    %884 = vrot.lane.b32.xlu0 %v876, 126
    %v885 = vpop.permute.xlu0 %884
    %886 = vrot.lane.b32.xlu0 %v875, 126
    %v887 = vpop.permute.xlu0 %886
    %888 = vrot.lane.b32.xlu0 %v879, 126
    %v889 = vpop.permute.xlu0 %888
    %890 = vrot.lane.b32.xlu0 %v881, 126
    %v891 = vpop.permute.xlu0 %890
    %892 = vrot.lane.b32.xlu0 %v880, 126
    %v893 = vpop.permute.xlu0 %892
    %v900 = vadd.f32 %v726, %v883
    %v901 = vadd.f32 %v727, %v885
    %v902 = vadd.f32 %v728, %v887
    %v903 = vadd.f32 %v729, %v889
    %v904 = vadd.f32 %v730, %v891
    %v905 = vadd.f32 %v731, %v893
    %v906 = vstv %s201
    %v907 = vmul.f32 %v906, %v269
    %v908 = vmul.f32 %v906, %v270
    %v909 = vmul.f32 %v906, %v271
    %v910 = vmul.f32 %v906, %v272
    %v911 = vmul.f32 %v906, %v273
    %v912 = vmul.f32 %v906, %v274
    %v919 = vrot.slane %v907, 2
    %v920 = vrot.slane %v908, 2
    %v921 = vsel %vm832, %v919, %v920
    %v922 = vrot.slane %v909, 2
    %v923 = vsel %vm832, %v920, %v922
    %v924 = vrot.slane %v910, 2
    %v925 = vrot.slane %v911, 2
    %v926 = vsel %vm832, %v924, %v925
    %v927 = vrot.slane %v912, 2
    %v928 = vsel %vm832, %v925, %v927
    %929 = vrot.lane.b32.xlu0 %v921, 126
    %v930 = vpop.permute.xlu0 %929
    %931 = vrot.lane.b32.xlu0 %v923, 126
    %v932 = vpop.permute.xlu0 %931
    %933 = vrot.lane.b32.xlu0 %v922, 126
    %v934 = vpop.permute.xlu0 %933
    %935 = vrot.lane.b32.xlu0 %v926, 126
    %v936 = vpop.permute.xlu0 %935
    %937 = vrot.lane.b32.xlu0 %v928, 126
    %v938 = vpop.permute.xlu0 %937
    %939 = vrot.lane.b32.xlu0 %v927, 126
    %v940 = vpop.permute.xlu0 %939
    %v947 = vadd.f32 %v766, %v930
    %v948 = vadd.f32 %v767, %v932
    %v949 = vadd.f32 %v768, %v934
    %v950 = vadd.f32 %v769, %v936
    %v951 = vadd.f32 %v770, %v938
    %v952 = vadd.f32 %v771, %v940
    %v953 = vstv %s208
    %v954 = vmul.f32 %v953, %v269
    %v955 = vmul.f32 %v953, %v270
    %v956 = vmul.f32 %v953, %v271
    %v957 = vmul.f32 %v953, %v272
    %v958 = vmul.f32 %v953, %v273
    %v959 = vmul.f32 %v953, %v274
    %v966 = vrot.slane %v954, 2
    %v967 = vrot.slane %v955, 2
    %v968 = vsel %vm832, %v966, %v967
    %v969 = vrot.slane %v956, 2
    %v970 = vsel %vm832, %v967, %v969
    %v971 = vrot.slane %v957, 2
    %v972 = vrot.slane %v958, 2
    %v973 = vsel %vm832, %v971, %v972
    %v974 = vrot.slane %v959, 2
    %v975 = vsel %vm832, %v972, %v974
    %976 = vrot.lane.b32.xlu0 %v968, 126
    %v977 = vpop.permute.xlu0 %976
    %978 = vrot.lane.b32.xlu0 %v970, 126
    %v979 = vpop.permute.xlu0 %978
    %980 = vrot.lane.b32.xlu0 %v969, 126
    %v981 = vpop.permute.xlu0 %980
    %982 = vrot.lane.b32.xlu0 %v973, 126
    %v983 = vpop.permute.xlu0 %982
    %984 = vrot.lane.b32.xlu0 %v975, 126
    %v985 = vpop.permute.xlu0 %984
    %986 = vrot.lane.b32.xlu0 %v974, 126
    %v987 = vpop.permute.xlu0 %986
    %v994 = vadd.f32 %v813, %v977
    %v995 = vadd.f32 %v814, %v979
    %v996 = vadd.f32 %v815, %v981
    %v997 = vadd.f32 %v816, %v983
    %v998 = vadd.f32 %v817, %v985
    %v999 = vadd.f32 %v818, %v987
    %v1000 = vstv %s215
    %v1001 = vmul.f32 %v1000, %v269
    %v1002 = vmul.f32 %v1000, %v270
    %v1003 = vmul.f32 %v1000, %v271
    %v1004 = vmul.f32 %v1000, %v272
    %v1005 = vmul.f32 %v1000, %v273
    %v1006 = vmul.f32 %v1000, %v274
    %v1013 = vrot.slane %v1001, 6
    %v1014 = vrot.slane %v1002, 6
    %v1015 = vsel %vm741, %v1013, %v1014
    %v1016 = vrot.slane %v1003, 6
    %v1017 = vsel %vm741, %v1014, %v1016
    %v1018 = vrot.slane %v1004, 6
    %v1019 = vrot.slane %v1005, 6
    %v1020 = vsel %vm741, %v1018, %v1019
    %v1021 = vrot.slane %v1006, 6
    %v1022 = vsel %vm741, %v1019, %v1021
    %1023 = vrot.lane.b32.xlu0 %v1015, 126
    %v1024 = vpop.permute.xlu0 %1023
    %1025 = vrot.lane.b32.xlu0 %v1017, 126
    %v1026 = vpop.permute.xlu0 %1025
    %1027 = vrot.lane.b32.xlu0 %v1020, 126
    %v1028 = vpop.permute.xlu0 %1027
    %1029 = vrot.lane.b32.xlu0 %v1022, 126
    %v1030 = vpop.permute.xlu0 %1029
    %v1035 = vadd.f32 %v855, %v1024
    %v1036 = vadd.f32 %v856, %v1026
    %v1037 = vadd.f32 %v857, %v1028
    %v1038 = vadd.f32 %v858, %v1030
    %v1039 = vstv %s174
    %v1040 = vmul.f32 %v1039, %v269
    %v1041 = vmul.f32 %v1039, %v270
    %v1042 = vmul.f32 %v1039, %v272
    %v1043 = vmul.f32 %v1039, %v273
    %vm1048 = vcmask 1040384
    %v1049 = vrot.slane %v1040, 7
    %v1050 = vrot.slane %v1041, 7
    %v1051 = vsel %vm1048, %v1049, %v1050
    %v1052 = vrot.slane %v1042, 7
    %v1053 = vrot.slane %v1043, 7
    %v1054 = vsel %vm1048, %v1052, %v1053
    %1055 = vrot.lane.b32.xlu0 %v1049, 125
    %v1056 = vpop.permute.xlu0 %1055
    %1057 = vrot.lane.b32.xlu0 %v1051, 125
    %v1058 = vpop.permute.xlu0 %1057
    %1059 = vrot.lane.b32.xlu0 %v1050, 125
    %v1060 = vpop.permute.xlu0 %1059
    %1061 = vrot.lane.b32.xlu0 %v1052, 125
    %v1062 = vpop.permute.xlu0 %1061
    %1063 = vrot.lane.b32.xlu0 %v1054, 125
    %v1064 = vpop.permute.xlu0 %1063
    %1065 = vrot.lane.b32.xlu0 %v1053, 125
    %v1066 = vpop.permute.xlu0 %1065
    %v1073 = vadd.f32 %v900, %v1056
    %v1074 = vadd.f32 %v901, %v1058
    %v1075 = vadd.f32 %v902, %v1060
    %v1076 = vadd.f32 %v903, %v1062
    %v1077 = vadd.f32 %v904, %v1064
    %v1078 = vadd.f32 %v905, %v1066
    %v1079 = vstv %s181
    %v1080 = vmul.f32 %v1079, %v269
    %v1081 = vmul.f32 %v1079, %v270
    %v1082 = vmul.f32 %v1079, %v271
    %v1083 = vmul.f32 %v1079, %v272
    %v1084 = vmul.f32 %v1079, %v273
    %v1085 = vmul.f32 %v1079, %v274
    %v1092 = vrot.slane %v1080, 7
    %v1093 = vrot.slane %v1081, 7
    %v1094 = vsel %vm1048, %v1092, %v1093
    %v1095 = vrot.slane %v1082, 7
    %v1096 = vsel %vm1048, %v1093, %v1095
    %v1097 = vrot.slane %v1083, 7
    %v1098 = vrot.slane %v1084, 7
    %v1099 = vsel %vm1048, %v1097, %v1098
    %v1100 = vrot.slane %v1085, 7
    %v1101 = vsel %vm1048, %v1098, %v1100
    %1102 = vrot.lane.b32.xlu0 %v1092, 125
    %v1103 = vpop.permute.xlu0 %1102
    %1104 = vrot.lane.b32.xlu0 %v1094, 125
    %v1105 = vpop.permute.xlu0 %1104
    %1106 = vrot.lane.b32.xlu0 %v1096, 125
    %v1107 = vpop.permute.xlu0 %1106
    %1108 = vrot.lane.b32.xlu0 %v1097, 125
    %v1109 = vpop.permute.xlu0 %1108
    %1110 = vrot.lane.b32.xlu0 %v1099, 125
    %v1111 = vpop.permute.xlu0 %1110
    %1112 = vrot.lane.b32.xlu0 %v1101, 125
    %v1113 = vpop.permute.xlu0 %1112
    %v1120 = vadd.f32 %v947, %v1103
    %v1121 = vadd.f32 %v948, %v1105
    %v1122 = vadd.f32 %v949, %v1107
    %v1123 = vadd.f32 %v950, %v1109
    %v1124 = vadd.f32 %v951, %v1111
    %v1125 = vadd.f32 %v952, %v1113
    %v1126 = vstv %s188
    %v1127 = vmul.f32 %v1126, %v269
    %v1128 = vmul.f32 %v1126, %v270
    %v1129 = vmul.f32 %v1126, %v271
    %v1130 = vmul.f32 %v1126, %v272
    %v1131 = vmul.f32 %v1126, %v273
    %v1132 = vmul.f32 %v1126, %v274
    %v1139 = vrot.slane %v1127, 7
    %v1140 = vrot.slane %v1128, 7
    %v1141 = vsel %vm1048, %v1139, %v1140
    %v1142 = vrot.slane %v1129, 7
    %v1143 = vsel %vm1048, %v1140, %v1142
    %v1144 = vrot.slane %v1130, 7
    %v1145 = vrot.slane %v1131, 7
    %v1146 = vsel %vm1048, %v1144, %v1145
    %v1147 = vrot.slane %v1132, 7
    %v1148 = vsel %vm1048, %v1145, %v1147
    %1149 = vrot.lane.b32.xlu0 %v1139, 125
    %v1150 = vpop.permute.xlu0 %1149
    %1151 = vrot.lane.b32.xlu0 %v1141, 125
    %v1152 = vpop.permute.xlu0 %1151
    %1153 = vrot.lane.b32.xlu0 %v1143, 125
    %v1154 = vpop.permute.xlu0 %1153
    %1155 = vrot.lane.b32.xlu0 %v1144, 125
    %v1156 = vpop.permute.xlu0 %1155
    %1157 = vrot.lane.b32.xlu0 %v1146, 125
    %v1158 = vpop.permute.xlu0 %1157
    %1159 = vrot.lane.b32.xlu0 %v1148, 125
    %v1160 = vpop.permute.xlu0 %1159
    %v1167 = vadd.f32 %v994, %v1150
    %v1168 = vadd.f32 %v995, %v1152
    %v1169 = vadd.f32 %v996, %v1154
    %v1170 = vadd.f32 %v997, %v1156
    %v1171 = vadd.f32 %v998, %v1158
    %v1172 = vadd.f32 %v999, %v1160
    %v1173 = vstv %s195
    %v1174 = vmul.f32 %v1173, %v269
    %v1175 = vmul.f32 %v1173, %v270
    %v1176 = vmul.f32 %v1173, %v271
    %v1177 = vmul.f32 %v1173, %v272
    %v1178 = vmul.f32 %v1173, %v273
    %v1179 = vmul.f32 %v1173, %v274
    %vm1186 = vcmask 1044480
    %v1187 = vrot.slane %v1174, 3
    %v1188 = vrot.slane %v1175, 3
    %v1189 = vsel %vm1186, %v1187, %v1188
    %v1190 = vrot.slane %v1176, 3
    %v1191 = vsel %vm1186, %v1188, %v1190
    %v1192 = vrot.slane %v1177, 3
    %v1193 = vrot.slane %v1178, 3
    %v1194 = vsel %vm1186, %v1192, %v1193
    %v1195 = vrot.slane %v1179, 3
    %v1196 = vsel %vm1186, %v1193, %v1195
    %1197 = vrot.lane.b32.xlu0 %v1189, 125
    %v1198 = vpop.permute.xlu0 %1197
    %1199 = vrot.lane.b32.xlu0 %v1191, 125
    %v1200 = vpop.permute.xlu0 %1199
    %1201 = vrot.lane.b32.xlu0 %v1194, 125
    %v1202 = vpop.permute.xlu0 %1201
    %1203 = vrot.lane.b32.xlu0 %v1196, 125
    %v1204 = vpop.permute.xlu0 %1203
    %v1209 = vadd.f32 %v1035, %v1198
    %v1210 = vadd.f32 %v1036, %v1200
    %v1211 = vadd.f32 %v1037, %v1202
    %v1212 = vadd.f32 %v1038, %v1204
    %v1213 = vstv %s202
    %v1214 = vmul.f32 %v1213, %v269
    %v1215 = vmul.f32 %v1213, %v270
    %v1216 = vmul.f32 %v1213, %v271
    %v1217 = vmul.f32 %v1213, %v272
    %v1218 = vmul.f32 %v1213, %v273
    %v1219 = vmul.f32 %v1213, %v274
    %v1226 = vrot.slane %v1214, 3
    %v1227 = vrot.slane %v1215, 3
    %v1228 = vsel %vm1186, %v1226, %v1227
    %v1229 = vrot.slane %v1216, 3
    %v1230 = vsel %vm1186, %v1227, %v1229
    %v1231 = vrot.slane %v1217, 3
    %v1232 = vrot.slane %v1218, 3
    %v1233 = vsel %vm1186, %v1231, %v1232
    %v1234 = vrot.slane %v1219, 3
    %v1235 = vsel %vm1186, %v1232, %v1234
    %1236 = vrot.lane.b32.xlu0 %v1228, 125
    %v1237 = vpop.permute.xlu0 %1236
    %1238 = vrot.lane.b32.xlu0 %v1230, 125
    %v1239 = vpop.permute.xlu0 %1238
    %1240 = vrot.lane.b32.xlu0 %v1229, 125
    %v1241 = vpop.permute.xlu0 %1240
    %1242 = vrot.lane.b32.xlu0 %v1233, 125
    %v1243 = vpop.permute.xlu0 %1242
    %1244 = vrot.lane.b32.xlu0 %v1235, 125
    %v1245 = vpop.permute.xlu0 %1244
    %1246 = vrot.lane.b32.xlu0 %v1234, 125
    %v1247 = vpop.permute.xlu0 %1246
    %v1254 = vadd.f32 %v1073, %v1237
    %v1255 = vadd.f32 %v1074, %v1239
    %v1256 = vadd.f32 %v1075, %v1241
    %v1257 = vadd.f32 %v1076, %v1243
    %v1258 = vadd.f32 %v1077, %v1245
    %v1259 = vadd.f32 %v1078, %v1247
    %v1260 = vstv %s209
    %v1261 = vmul.f32 %v1260, %v269
    %v1262 = vmul.f32 %v1260, %v270
    %v1263 = vmul.f32 %v1260, %v271
    %v1264 = vmul.f32 %v1260, %v272
    %v1265 = vmul.f32 %v1260, %v273
    %v1266 = vmul.f32 %v1260, %v274
    %v1273 = vrot.slane %v1261, 3
    %v1274 = vrot.slane %v1262, 3
    %v1275 = vsel %vm1186, %v1273, %v1274
    %v1276 = vrot.slane %v1263, 3
    %v1277 = vsel %vm1186, %v1274, %v1276
    %v1278 = vrot.slane %v1264, 3
    %v1279 = vrot.slane %v1265, 3
    %v1280 = vsel %vm1186, %v1278, %v1279
    %v1281 = vrot.slane %v1266, 3
    %v1282 = vsel %vm1186, %v1279, %v1281
    %1283 = vrot.lane.b32.xlu0 %v1275, 125
    %v1284 = vpop.permute.xlu0 %1283
    %1285 = vrot.lane.b32.xlu0 %v1277, 125
    %v1286 = vpop.permute.xlu0 %1285
    %1287 = vrot.lane.b32.xlu0 %v1276, 125
    %v1288 = vpop.permute.xlu0 %1287
    %1289 = vrot.lane.b32.xlu0 %v1280, 125
    %v1290 = vpop.permute.xlu0 %1289
    %1291 = vrot.lane.b32.xlu0 %v1282, 125
    %v1292 = vpop.permute.xlu0 %1291
    %1293 = vrot.lane.b32.xlu0 %v1281, 125
    %v1294 = vpop.permute.xlu0 %1293
    %v1301 = vadd.f32 %v1120, %v1284
    %v1302 = vadd.f32 %v1121, %v1286
    %v1303 = vadd.f32 %v1122, %v1288
    %v1304 = vadd.f32 %v1123, %v1290
    %v1305 = vadd.f32 %v1124, %v1292
    %v1306 = vadd.f32 %v1125, %v1294
    %v1307 = vstv %s216
    %v1308 = vmul.f32 %v1307, %v269
    %v1309 = vmul.f32 %v1307, %v270
    %v1310 = vmul.f32 %v1307, %v271
    %v1311 = vmul.f32 %v1307, %v272
    %v1312 = vmul.f32 %v1307, %v273
    %v1313 = vmul.f32 %v1307, %v274
    %v1320 = vrot.slane %v1308, 3
    %v1321 = vrot.slane %v1309, 3
    %v1322 = vsel %vm1186, %v1320, %v1321
    %v1323 = vrot.slane %v1310, 3
    %v1324 = vsel %vm1186, %v1321, %v1323
    %v1325 = vrot.slane %v1311, 3
    %v1326 = vrot.slane %v1312, 3
    %v1327 = vsel %vm1186, %v1325, %v1326
    %v1328 = vrot.slane %v1313, 3
    %v1329 = vsel %vm1186, %v1326, %v1328
    %1330 = vrot.lane.b32.xlu0 %v1322, 125
    %v1331 = vpop.permute.xlu0 %1330
    %1332 = vrot.lane.b32.xlu0 %v1324, 125
    %v1333 = vpop.permute.xlu0 %1332
    %1334 = vrot.lane.b32.xlu0 %v1323, 125
    %v1335 = vpop.permute.xlu0 %1334
    %1336 = vrot.lane.b32.xlu0 %v1327, 125
    %v1337 = vpop.permute.xlu0 %1336
    %1338 = vrot.lane.b32.xlu0 %v1329, 125
    %v1339 = vpop.permute.xlu0 %1338
    %1340 = vrot.lane.b32.xlu0 %v1328, 125
    %v1341 = vpop.permute.xlu0 %1340
    %v1348 = vadd.f32 %v1167, %v1331
    %v1349 = vadd.f32 %v1168, %v1333
    %v1350 = vadd.f32 %v1169, %v1335
    %v1351 = vadd.f32 %v1170, %v1337
    %v1352 = vadd.f32 %v1171, %v1339
    %v1353 = vadd.f32 %v1172, %v1341
    %v1354 = vstv %s175
    %v1355 = vmul.f32 %v1354, %v269
    %v1356 = vmul.f32 %v1354, %v270
    %v1357 = vmul.f32 %v1354, %v272
    %v1358 = vmul.f32 %v1354, %v273
    %1363 = vrot.lane.b32.xlu0 %v1355, 124
    %v1364 = vpop.permute.xlu0 %1363
    %1365 = vrot.lane.b32.xlu0 %v1356, 124
    %v1366 = vpop.permute.xlu0 %1365
    %1367 = vrot.lane.b32.xlu0 %v1357, 124
    %v1368 = vpop.permute.xlu0 %1367
    %1369 = vrot.lane.b32.xlu0 %v1358, 124
    %v1370 = vpop.permute.xlu0 %1369
    %v1375 = vadd.f32 %v1209, %v1364
    %v1376 = vadd.f32 %v1210, %v1366
    %v1377 = vadd.f32 %v1211, %v1368
    %v1378 = vadd.f32 %v1212, %v1370
    %v1379 = vstv %s182
    %v1380 = vmul.f32 %v1379, %v269
    %v1381 = vmul.f32 %v1379, %v270
    %v1382 = vmul.f32 %v1379, %v271
    %v1383 = vmul.f32 %v1379, %v272
    %v1384 = vmul.f32 %v1379, %v273
    %v1385 = vmul.f32 %v1379, %v274
    %1392 = vrot.lane.b32.xlu0 %v1380, 124
    %v1393 = vpop.permute.xlu0 %1392
    %1394 = vrot.lane.b32.xlu0 %v1381, 124
    %v1395 = vpop.permute.xlu0 %1394
    %1396 = vrot.lane.b32.xlu0 %v1382, 124
    %v1397 = vpop.permute.xlu0 %1396
    %1398 = vrot.lane.b32.xlu0 %v1383, 124
    %v1399 = vpop.permute.xlu0 %1398
    %1400 = vrot.lane.b32.xlu0 %v1384, 124
    %v1401 = vpop.permute.xlu0 %1400
    %1402 = vrot.lane.b32.xlu0 %v1385, 124
    %v1403 = vpop.permute.xlu0 %1402
    %v1410 = vadd.f32 %v1254, %v1393
    %v1411 = vadd.f32 %v1255, %v1395
    %v1412 = vadd.f32 %v1256, %v1397
    %v1413 = vadd.f32 %v1257, %v1399
    %v1414 = vadd.f32 %v1258, %v1401
    %v1415 = vadd.f32 %v1259, %v1403
    %v1416 = vstv %s189
    %v1417 = vmul.f32 %v1416, %v269
    %v1418 = vmul.f32 %v1416, %v270
    %v1419 = vmul.f32 %v1416, %v271
    %v1420 = vmul.f32 %v1416, %v272
    %v1421 = vmul.f32 %v1416, %v273
    %v1422 = vmul.f32 %v1416, %v274
    %1429 = vrot.lane.b32.xlu0 %v1417, 124
    %v1430 = vpop.permute.xlu0 %1429
    %1431 = vrot.lane.b32.xlu0 %v1418, 124
    %v1432 = vpop.permute.xlu0 %1431
    %1433 = vrot.lane.b32.xlu0 %v1419, 124
    %v1434 = vpop.permute.xlu0 %1433
    %1435 = vrot.lane.b32.xlu0 %v1420, 124
    %v1436 = vpop.permute.xlu0 %1435
    %1437 = vrot.lane.b32.xlu0 %v1421, 124
    %v1438 = vpop.permute.xlu0 %1437
    %1439 = vrot.lane.b32.xlu0 %v1422, 124
    %v1440 = vpop.permute.xlu0 %1439
    %v1447 = vadd.f32 %v1301, %v1430
    %v1448 = vadd.f32 %v1302, %v1432
    %v1449 = vadd.f32 %v1303, %v1434
    %v1450 = vadd.f32 %v1304, %v1436
    %v1451 = vadd.f32 %v1305, %v1438
    %v1452 = vadd.f32 %v1306, %v1440
    %v1453 = vstv %s196
    %v1454 = vmul.f32 %v1453, %v269
    %v1455 = vmul.f32 %v1453, %v270
    %v1456 = vmul.f32 %v1453, %v271
    %v1457 = vmul.f32 %v1453, %v272
    %v1458 = vmul.f32 %v1453, %v273
    %v1459 = vmul.f32 %v1453, %v274
    %1466 = vrot.lane.b32.xlu0 %v1454, 124
    %v1467 = vpop.permute.xlu0 %1466
    %1468 = vrot.lane.b32.xlu0 %v1455, 124
    %v1469 = vpop.permute.xlu0 %1468
    %1470 = vrot.lane.b32.xlu0 %v1456, 124
    %v1471 = vpop.permute.xlu0 %1470
    %1472 = vrot.lane.b32.xlu0 %v1457, 124
    %v1473 = vpop.permute.xlu0 %1472
    %1474 = vrot.lane.b32.xlu0 %v1458, 124
    %v1475 = vpop.permute.xlu0 %1474
    %1476 = vrot.lane.b32.xlu0 %v1459, 124
    %v1477 = vpop.permute.xlu0 %1476
    %v1484 = vadd.f32 %v1348, %v1467
    %v1485 = vadd.f32 %v1349, %v1469
    %v1486 = vadd.f32 %v1350, %v1471
    %v1487 = vadd.f32 %v1351, %v1473
    %v1488 = vadd.f32 %v1352, %v1475
    %v1489 = vadd.f32 %v1353, %v1477
    %v1490 = vstv %s203
    %v1491 = vmul.f32 %v1490, %v269
    %v1492 = vmul.f32 %v1490, %v270
    %v1493 = vmul.f32 %v1490, %v271
    %v1494 = vmul.f32 %v1490, %v272
    %v1495 = vmul.f32 %v1490, %v273
    %v1496 = vmul.f32 %v1490, %v274
    %v1503 = vrot.slane %v1491, 4
    %v1504 = vrot.slane %v1492, 4
    %v1505 = vsel %vm336, %v1503, %v1504
    %v1506 = vrot.slane %v1493, 4
    %v1507 = vsel %vm336, %v1504, %v1506
    %v1508 = vrot.slane %v1494, 4
    %v1509 = vrot.slane %v1495, 4
    %v1510 = vsel %vm336, %v1508, %v1509
    %v1511 = vrot.slane %v1496, 4
    %v1512 = vsel %vm336, %v1509, %v1511
    %1513 = vrot.lane.b32.xlu0 %v1505, 124
    %v1514 = vpop.permute.xlu0 %1513
    %1515 = vrot.lane.b32.xlu0 %v1507, 124
    %v1516 = vpop.permute.xlu0 %1515
    %1517 = vrot.lane.b32.xlu0 %v1510, 124
    %v1518 = vpop.permute.xlu0 %1517
    %1519 = vrot.lane.b32.xlu0 %v1512, 124
    %v1520 = vpop.permute.xlu0 %1519
    %v1525 = vadd.f32 %v1375, %v1514
    %v1526 = vadd.f32 %v1376, %v1516
    %v1527 = vadd.f32 %v1377, %v1518
    %v1528 = vadd.f32 %v1378, %v1520
    %v1529 = vstv %s210
    %v1530 = vmul.f32 %v1529, %v269
    %v1531 = vmul.f32 %v1529, %v270
    %v1532 = vmul.f32 %v1529, %v271
    %v1533 = vmul.f32 %v1529, %v272
    %v1534 = vmul.f32 %v1529, %v273
    %v1535 = vmul.f32 %v1529, %v274
    %v1542 = vrot.slane %v1530, 4
    %v1543 = vrot.slane %v1531, 4
    %v1544 = vsel %vm336, %v1542, %v1543
    %v1545 = vrot.slane %v1532, 4
    %v1546 = vsel %vm336, %v1543, %v1545
    %v1547 = vrot.slane %v1533, 4
    %v1548 = vrot.slane %v1534, 4
    %v1549 = vsel %vm336, %v1547, %v1548
    %v1550 = vrot.slane %v1535, 4
    %v1551 = vsel %vm336, %v1548, %v1550
    %1552 = vrot.lane.b32.xlu0 %v1544, 124
    %v1553 = vpop.permute.xlu0 %1552
    %1554 = vrot.lane.b32.xlu0 %v1546, 124
    %v1555 = vpop.permute.xlu0 %1554
    %1556 = vrot.lane.b32.xlu0 %v1545, 124
    %v1557 = vpop.permute.xlu0 %1556
    %1558 = vrot.lane.b32.xlu0 %v1549, 124
    %v1559 = vpop.permute.xlu0 %1558
    %1560 = vrot.lane.b32.xlu0 %v1551, 124
    %v1561 = vpop.permute.xlu0 %1560
    %1562 = vrot.lane.b32.xlu0 %v1550, 124
    %v1563 = vpop.permute.xlu0 %1562
    %v1570 = vadd.f32 %v1410, %v1553
    %v1571 = vadd.f32 %v1411, %v1555
    %v1572 = vadd.f32 %v1412, %v1557
    %v1573 = vadd.f32 %v1413, %v1559
    %v1574 = vadd.f32 %v1414, %v1561
    %v1575 = vadd.f32 %v1415, %v1563
    %v1576 = vstv %s217
    %v1577 = vmul.f32 %v1576, %v269
    %v1578 = vmul.f32 %v1576, %v270
    %v1579 = vmul.f32 %v1576, %v271
    %v1580 = vmul.f32 %v1576, %v272
    %v1581 = vmul.f32 %v1576, %v273
    %v1582 = vmul.f32 %v1576, %v274
    %v1589 = vrot.slane %v1577, 4
    %v1590 = vrot.slane %v1578, 4
    %v1591 = vsel %vm336, %v1589, %v1590
    %v1592 = vrot.slane %v1579, 4
    %v1593 = vsel %vm336, %v1590, %v1592
    %v1594 = vrot.slane %v1580, 4
    %v1595 = vrot.slane %v1581, 4
    %v1596 = vsel %vm336, %v1594, %v1595
    %v1597 = vrot.slane %v1582, 4
    %v1598 = vsel %vm336, %v1595, %v1597
    %1599 = vrot.lane.b32.xlu0 %v1591, 124
    %v1600 = vpop.permute.xlu0 %1599
    %1601 = vrot.lane.b32.xlu0 %v1593, 124
    %v1602 = vpop.permute.xlu0 %1601
    %1603 = vrot.lane.b32.xlu0 %v1592, 124
    %v1604 = vpop.permute.xlu0 %1603
    %1605 = vrot.lane.b32.xlu0 %v1596, 124
    %v1606 = vpop.permute.xlu0 %1605
    %1607 = vrot.lane.b32.xlu0 %v1598, 124
    %v1608 = vpop.permute.xlu0 %1607
    %1609 = vrot.lane.b32.xlu0 %v1597, 124
    %v1610 = vpop.permute.xlu0 %1609
    %v1617 = vadd.f32 %v1447, %v1600
    %v1618 = vadd.f32 %v1448, %v1602
    %v1619 = vadd.f32 %v1449, %v1604
    %v1620 = vadd.f32 %v1450, %v1606
    %v1621 = vadd.f32 %v1451, %v1608
    %v1622 = vadd.f32 %v1452, %v1610
    %v1623 = vstv %s176
    %v1624 = vmul.f32 %v1623, %v269
    %v1625 = vmul.f32 %v1623, %v270
    %v1626 = vmul.f32 %v1623, %v272
    %v1627 = vmul.f32 %v1623, %v273
    %v1632 = vrot.slane %v1624, 5
    %v1633 = vrot.slane %v1625, 5
    %v1634 = vsel %vm434, %v1632, %v1633
    %v1635 = vrot.slane %v1626, 5
    %v1636 = vrot.slane %v1627, 5
    %v1637 = vsel %vm434, %v1635, %v1636
    %1638 = vrot.lane.b32.xlu0 %v1632, 123
    %v1639 = vpop.permute.xlu0 %1638
    %1640 = vrot.lane.b32.xlu0 %v1634, 123
    %v1641 = vpop.permute.xlu0 %1640
    %1642 = vrot.lane.b32.xlu0 %v1633, 123
    %v1643 = vpop.permute.xlu0 %1642
    %1644 = vrot.lane.b32.xlu0 %v1635, 123
    %v1645 = vpop.permute.xlu0 %1644
    %1646 = vrot.lane.b32.xlu0 %v1637, 123
    %v1647 = vpop.permute.xlu0 %1646
    %1648 = vrot.lane.b32.xlu0 %v1636, 123
    %v1649 = vpop.permute.xlu0 %1648
    %v1656 = vadd.f32 %v1484, %v1639
    %v1657 = vadd.f32 %v1485, %v1641
    %v1658 = vadd.f32 %v1486, %v1643
    %v1659 = vadd.f32 %v1487, %v1645
    %v1660 = vadd.f32 %v1488, %v1647
    %v1661 = vadd.f32 %v1489, %v1649
    %v1662 = vstv %s183
    %v1663 = vmul.f32 %v1662, %v269
    %v1664 = vmul.f32 %v1662, %v270
    %v1665 = vmul.f32 %v1662, %v271
    %v1666 = vmul.f32 %v1662, %v272
    %v1667 = vmul.f32 %v1662, %v273
    %v1668 = vmul.f32 %v1662, %v274
    %v1675 = vrot.slane %v1663, 1
    %v1676 = vrot.slane %v1664, 1
    %v1677 = vsel %vm478, %v1675, %v1676
    %v1678 = vrot.slane %v1665, 1
    %v1679 = vsel %vm478, %v1676, %v1678
    %v1680 = vrot.slane %v1666, 1
    %v1681 = vrot.slane %v1667, 1
    %v1682 = vsel %vm478, %v1680, %v1681
    %v1683 = vrot.slane %v1668, 1
    %v1684 = vsel %vm478, %v1681, %v1683
    %1685 = vrot.lane.b32.xlu0 %v1677, 123
    %v1686 = vpop.permute.xlu0 %1685
    %1687 = vrot.lane.b32.xlu0 %v1679, 123
    %v1688 = vpop.permute.xlu0 %1687
    %1689 = vrot.lane.b32.xlu0 %v1682, 123
    %v1690 = vpop.permute.xlu0 %1689
    %1691 = vrot.lane.b32.xlu0 %v1684, 123
    %v1692 = vpop.permute.xlu0 %1691
    %v1697 = vadd.f32 %v1525, %v1686
    %v1698 = vadd.f32 %v1526, %v1688
    %v1699 = vadd.f32 %v1527, %v1690
    %v1700 = vadd.f32 %v1528, %v1692
    %v1701 = vstv %s190
    %v1702 = vmul.f32 %v1701, %v269
    %v1703 = vmul.f32 %v1701, %v270
    %v1704 = vmul.f32 %v1701, %v271
    %v1705 = vmul.f32 %v1701, %v272
    %v1706 = vmul.f32 %v1701, %v273
    %v1707 = vmul.f32 %v1701, %v274
    %v1714 = vrot.slane %v1702, 1
    %v1715 = vrot.slane %v1703, 1
    %v1716 = vsel %vm478, %v1714, %v1715
    %v1717 = vrot.slane %v1704, 1
    %v1718 = vsel %vm478, %v1715, %v1717
    %v1719 = vrot.slane %v1705, 1
    %v1720 = vrot.slane %v1706, 1
    %v1721 = vsel %vm478, %v1719, %v1720
    %v1722 = vrot.slane %v1707, 1
    %v1723 = vsel %vm478, %v1720, %v1722
    %1724 = vrot.lane.b32.xlu0 %v1716, 123
    %v1725 = vpop.permute.xlu0 %1724
    %1726 = vrot.lane.b32.xlu0 %v1718, 123
    %v1727 = vpop.permute.xlu0 %1726
    %1728 = vrot.lane.b32.xlu0 %v1717, 123
    %v1729 = vpop.permute.xlu0 %1728
    %1730 = vrot.lane.b32.xlu0 %v1721, 123
    %v1731 = vpop.permute.xlu0 %1730
    %1732 = vrot.lane.b32.xlu0 %v1723, 123
    %v1733 = vpop.permute.xlu0 %1732
    %1734 = vrot.lane.b32.xlu0 %v1722, 123
    %v1735 = vpop.permute.xlu0 %1734
    %v1742 = vadd.f32 %v1570, %v1725
    %v1743 = vadd.f32 %v1571, %v1727
    %v1744 = vadd.f32 %v1572, %v1729
    %v1745 = vadd.f32 %v1573, %v1731
    %v1746 = vadd.f32 %v1574, %v1733
    %v1747 = vadd.f32 %v1575, %v1735
    %v1748 = vstv %s197
    %v1749 = vmul.f32 %v1748, %v269
    %v1750 = vmul.f32 %v1748, %v270
    %v1751 = vmul.f32 %v1748, %v271
    %v1752 = vmul.f32 %v1748, %v272
    %v1753 = vmul.f32 %v1748, %v273
    %v1754 = vmul.f32 %v1748, %v274
    %v1761 = vrot.slane %v1749, 1
    %v1762 = vrot.slane %v1750, 1
    %v1763 = vsel %vm478, %v1761, %v1762
    %v1764 = vrot.slane %v1751, 1
    %v1765 = vsel %vm478, %v1762, %v1764
    %v1766 = vrot.slane %v1752, 1
    %v1767 = vrot.slane %v1753, 1
    %v1768 = vsel %vm478, %v1766, %v1767
    %v1769 = vrot.slane %v1754, 1
    %v1770 = vsel %vm478, %v1767, %v1769
    %1771 = vrot.lane.b32.xlu0 %v1763, 123
    %v1772 = vpop.permute.xlu0 %1771
    %1773 = vrot.lane.b32.xlu0 %v1765, 123
    %v1774 = vpop.permute.xlu0 %1773
    %1775 = vrot.lane.b32.xlu0 %v1764, 123
    %v1776 = vpop.permute.xlu0 %1775
    %1777 = vrot.lane.b32.xlu0 %v1768, 123
    %v1778 = vpop.permute.xlu0 %1777
    %1779 = vrot.lane.b32.xlu0 %v1770, 123
    %v1780 = vpop.permute.xlu0 %1779
    %1781 = vrot.lane.b32.xlu0 %v1769, 123
    %v1782 = vpop.permute.xlu0 %1781
    %v1789 = vadd.f32 %v1617, %v1772
    %v1790 = vadd.f32 %v1618, %v1774
    %v1791 = vadd.f32 %v1619, %v1776
    %v1792 = vadd.f32 %v1620, %v1778
    %v1793 = vadd.f32 %v1621, %v1780
    %v1794 = vadd.f32 %v1622, %v1782
    %v1795 = vstv %s204
    %v1796 = vmul.f32 %v1795, %v269
    %v1797 = vmul.f32 %v1795, %v270
    %v1798 = vmul.f32 %v1795, %v271
    %v1799 = vmul.f32 %v1795, %v272
    %v1800 = vmul.f32 %v1795, %v273
    %v1801 = vmul.f32 %v1795, %v274
    %v1808 = vrot.slane %v1796, 1
    %v1809 = vrot.slane %v1797, 1
    %v1810 = vsel %vm478, %v1808, %v1809
    %v1811 = vrot.slane %v1798, 1
    %v1812 = vsel %vm478, %v1809, %v1811
    %v1813 = vrot.slane %v1799, 1
    %v1814 = vrot.slane %v1800, 1
    %v1815 = vsel %vm478, %v1813, %v1814
    %v1816 = vrot.slane %v1801, 1
    %v1817 = vsel %vm478, %v1814, %v1816
    %1818 = vrot.lane.b32.xlu0 %v1810, 123
    %v1819 = vpop.permute.xlu0 %1818
    %1820 = vrot.lane.b32.xlu0 %v1812, 123
    %v1821 = vpop.permute.xlu0 %1820
    %1822 = vrot.lane.b32.xlu0 %v1811, 123
    %v1823 = vpop.permute.xlu0 %1822
    %1824 = vrot.lane.b32.xlu0 %v1815, 123
    %v1825 = vpop.permute.xlu0 %1824
    %1826 = vrot.lane.b32.xlu0 %v1817, 123
    %v1827 = vpop.permute.xlu0 %1826
    %1828 = vrot.lane.b32.xlu0 %v1816, 123
    %v1829 = vpop.permute.xlu0 %1828
    %v1836 = vadd.f32 %v1656, %v1819
    %v1837 = vadd.f32 %v1657, %v1821
    %v1838 = vadd.f32 %v1658, %v1823
    %v1839 = vadd.f32 %v1659, %v1825
    %v1840 = vadd.f32 %v1660, %v1827
    %v1841 = vadd.f32 %v1661, %v1829
    %v1842 = vstv %s211
    %v1843 = vmul.f32 %v1842, %v269
    %v1844 = vmul.f32 %v1842, %v270
    %v1845 = vmul.f32 %v1842, %v271
    %v1846 = vmul.f32 %v1842, %v272
    %v1847 = vmul.f32 %v1842, %v273
    %v1848 = vmul.f32 %v1842, %v274
    %v1855 = vrot.slane %v1843, 5
    %v1856 = vrot.slane %v1844, 5
    %v1857 = vsel %vm434, %v1855, %v1856
    %v1858 = vrot.slane %v1845, 5
    %v1859 = vsel %vm434, %v1856, %v1858
    %v1860 = vrot.slane %v1846, 5
    %v1861 = vrot.slane %v1847, 5
    %v1862 = vsel %vm434, %v1860, %v1861
    %v1863 = vrot.slane %v1848, 5
    %v1864 = vsel %vm434, %v1861, %v1863
    %1865 = vrot.lane.b32.xlu0 %v1857, 123
    %v1866 = vpop.permute.xlu0 %1865
    %1867 = vrot.lane.b32.xlu0 %v1859, 123
    %v1868 = vpop.permute.xlu0 %1867
    %1869 = vrot.lane.b32.xlu0 %v1862, 123
    %v1870 = vpop.permute.xlu0 %1869
    %1871 = vrot.lane.b32.xlu0 %v1864, 123
    %v1872 = vpop.permute.xlu0 %1871
    %v1877 = vadd.f32 %v1697, %v1866
    %v1878 = vadd.f32 %v1698, %v1868
    %v1879 = vadd.f32 %v1699, %v1870
    %v1880 = vadd.f32 %v1700, %v1872
    %v1881 = vstv %s218
    %v1882 = vmul.f32 %v1881, %v269
    %v1883 = vmul.f32 %v1881, %v270
    %v1884 = vmul.f32 %v1881, %v271
    %v1885 = vmul.f32 %v1881, %v272
    %v1886 = vmul.f32 %v1881, %v273
    %v1887 = vmul.f32 %v1881, %v274
    %v1894 = vrot.slane %v1882, 5
    %v1895 = vrot.slane %v1883, 5
    %v1896 = vsel %vm434, %v1894, %v1895
    %v1897 = vrot.slane %v1884, 5
    %v1898 = vsel %vm434, %v1895, %v1897
    %v1899 = vrot.slane %v1885, 5
    %v1900 = vrot.slane %v1886, 5
    %v1901 = vsel %vm434, %v1899, %v1900
    %v1902 = vrot.slane %v1887, 5
    %v1903 = vsel %vm434, %v1900, %v1902
    %1904 = vrot.lane.b32.xlu0 %v1896, 123
    %v1905 = vpop.permute.xlu0 %1904
    %1906 = vrot.lane.b32.xlu0 %v1898, 123
    %v1907 = vpop.permute.xlu0 %1906
    %1908 = vrot.lane.b32.xlu0 %v1897, 123
    %v1909 = vpop.permute.xlu0 %1908
    %1910 = vrot.lane.b32.xlu0 %v1901, 123
    %v1911 = vpop.permute.xlu0 %1910
    %1912 = vrot.lane.b32.xlu0 %v1903, 123
    %v1913 = vpop.permute.xlu0 %1912
    %1914 = vrot.lane.b32.xlu0 %v1902, 123
    %v1915 = vpop.permute.xlu0 %1914
    %v1922 = vadd.f32 %v1742, %v1905
    %v1923 = vadd.f32 %v1743, %v1907
    %v1924 = vadd.f32 %v1744, %v1909
    %v1925 = vadd.f32 %v1745, %v1911
    %v1926 = vadd.f32 %v1746, %v1913
    %v1927 = vadd.f32 %v1747, %v1915
    %v1928 = vstv %s177
    %v1929 = vmul.f32 %v1928, %v269
    %v1930 = vmul.f32 %v1928, %v270
    %v1931 = vmul.f32 %v1928, %v272
    %v1932 = vmul.f32 %v1928, %v273
    %v1937 = vrot.slane %v1929, 6
    %v1938 = vrot.slane %v1930, 6
    %v1939 = vsel %vm741, %v1937, %v1938
    %v1940 = vrot.slane %v1931, 6
    %v1941 = vrot.slane %v1932, 6
    %v1942 = vsel %vm741, %v1940, %v1941
    %1943 = vrot.lane.b32.xlu0 %v1937, 122
    %v1944 = vpop.permute.xlu0 %1943
    %1945 = vrot.lane.b32.xlu0 %v1939, 122
    %v1946 = vpop.permute.xlu0 %1945
    %1947 = vrot.lane.b32.xlu0 %v1938, 122
    %v1948 = vpop.permute.xlu0 %1947
    %1949 = vrot.lane.b32.xlu0 %v1940, 122
    %v1950 = vpop.permute.xlu0 %1949
    %1951 = vrot.lane.b32.xlu0 %v1942, 122
    %v1952 = vpop.permute.xlu0 %1951
    %1953 = vrot.lane.b32.xlu0 %v1941, 122
    %v1954 = vpop.permute.xlu0 %1953
    %v1961 = vadd.f32 %v1789, %v1944
    %v1962 = vadd.f32 %v1790, %v1946
    %v1963 = vadd.f32 %v1791, %v1948
    %v1964 = vadd.f32 %v1792, %v1950
    %v1965 = vadd.f32 %v1793, %v1952
    %v1966 = vadd.f32 %v1794, %v1954
    %v1967 = vstv %s184
    %v1968 = vmul.f32 %v1967, %v269
    %v1969 = vmul.f32 %v1967, %v270
    %v1970 = vmul.f32 %v1967, %v271
    %v1971 = vmul.f32 %v1967, %v272
    %v1972 = vmul.f32 %v1967, %v273
    %v1973 = vmul.f32 %v1967, %v274
    %v1980 = vrot.slane %v1968, 6
    %v1981 = vrot.slane %v1969, 6
    %v1982 = vsel %vm741, %v1980, %v1981
    %v1983 = vrot.slane %v1970, 6
    %v1984 = vsel %vm741, %v1981, %v1983
    %v1985 = vrot.slane %v1971, 6
    %v1986 = vrot.slane %v1972, 6
    %v1987 = vsel %vm741, %v1985, %v1986
    %v1988 = vrot.slane %v1973, 6
    %v1989 = vsel %vm741, %v1986, %v1988
    %1990 = vrot.lane.b32.xlu0 %v1980, 122
    %v1991 = vpop.permute.xlu0 %1990
    %1992 = vrot.lane.b32.xlu0 %v1982, 122
    %v1993 = vpop.permute.xlu0 %1992
    %1994 = vrot.lane.b32.xlu0 %v1984, 122
    %v1995 = vpop.permute.xlu0 %1994
    %1996 = vrot.lane.b32.xlu0 %v1985, 122
    %v1997 = vpop.permute.xlu0 %1996
    %1998 = vrot.lane.b32.xlu0 %v1987, 122
    %v1999 = vpop.permute.xlu0 %1998
    %2000 = vrot.lane.b32.xlu0 %v1989, 122
    %v2001 = vpop.permute.xlu0 %2000
    %v2008 = vadd.f32 %v1836, %v1991
    %v2009 = vadd.f32 %v1837, %v1993
    %v2010 = vadd.f32 %v1838, %v1995
    %v2011 = vadd.f32 %v1839, %v1997
    %v2012 = vadd.f32 %v1840, %v1999
    %v2013 = vadd.f32 %v1841, %v2001
    %v2014 = vstv %s191
    %v2015 = vmul.f32 %v2014, %v269
    %v2016 = vmul.f32 %v2014, %v270
    %v2017 = vmul.f32 %v2014, %v271
    %v2018 = vmul.f32 %v2014, %v272
    %v2019 = vmul.f32 %v2014, %v273
    %v2020 = vmul.f32 %v2014, %v274
    %v2027 = vrot.slane %v2015, 2
    %v2028 = vrot.slane %v2016, 2
    %v2029 = vsel %vm832, %v2027, %v2028
    %v2030 = vrot.slane %v2017, 2
    %v2031 = vsel %vm832, %v2028, %v2030
    %v2032 = vrot.slane %v2018, 2
    %v2033 = vrot.slane %v2019, 2
    %v2034 = vsel %vm832, %v2032, %v2033
    %v2035 = vrot.slane %v2020, 2
    %v2036 = vsel %vm832, %v2033, %v2035
    %2037 = vrot.lane.b32.xlu0 %v2029, 122
    %v2038 = vpop.permute.xlu0 %2037
    %2039 = vrot.lane.b32.xlu0 %v2031, 122
    %v2040 = vpop.permute.xlu0 %2039
    %2041 = vrot.lane.b32.xlu0 %v2034, 122
    %v2042 = vpop.permute.xlu0 %2041
    %2043 = vrot.lane.b32.xlu0 %v2036, 122
    %v2044 = vpop.permute.xlu0 %2043
    %v2049 = vadd.f32 %v1877, %v2038
    %v2050 = vadd.f32 %v1878, %v2040
    %v2051 = vadd.f32 %v1879, %v2042
    %v2052 = vadd.f32 %v1880, %v2044
    %v2053 = vstv %s198
    %v2054 = vmul.f32 %v2053, %v269
    %v2055 = vmul.f32 %v2053, %v270
    %v2056 = vmul.f32 %v2053, %v271
    %v2057 = vmul.f32 %v2053, %v272
    %v2058 = vmul.f32 %v2053, %v273
    %v2059 = vmul.f32 %v2053, %v274
    %v2066 = vrot.slane %v2054, 2
    %v2067 = vrot.slane %v2055, 2
    %v2068 = vsel %vm832, %v2066, %v2067
    %v2069 = vrot.slane %v2056, 2
    %v2070 = vsel %vm832, %v2067, %v2069
    %v2071 = vrot.slane %v2057, 2
    %v2072 = vrot.slane %v2058, 2
    %v2073 = vsel %vm832, %v2071, %v2072
    %v2074 = vrot.slane %v2059, 2
    %v2075 = vsel %vm832, %v2072, %v2074
    %2076 = vrot.lane.b32.xlu0 %v2068, 122
    %v2077 = vpop.permute.xlu0 %2076
    %2078 = vrot.lane.b32.xlu0 %v2070, 122
    %v2079 = vpop.permute.xlu0 %2078
    %2080 = vrot.lane.b32.xlu0 %v2069, 122
    %v2081 = vpop.permute.xlu0 %2080
    %2082 = vrot.lane.b32.xlu0 %v2073, 122
    %v2083 = vpop.permute.xlu0 %2082
    %2084 = vrot.lane.b32.xlu0 %v2075, 122
    %v2085 = vpop.permute.xlu0 %2084
    %2086 = vrot.lane.b32.xlu0 %v2074, 122
    %v2087 = vpop.permute.xlu0 %2086
    %v2094 = vadd.f32 %v1922, %v2077
    %v2095 = vadd.f32 %v1923, %v2079
    %v2096 = vadd.f32 %v1924, %v2081
    %v2097 = vadd.f32 %v1925, %v2083
    %v2098 = vadd.f32 %v1926, %v2085
    %v2099 = vadd.f32 %v1927, %v2087
    %v2100 = vstv %s205
    %v2101 = vmul.f32 %v2100, %v269
    %v2102 = vmul.f32 %v2100, %v270
    %v2103 = vmul.f32 %v2100, %v271
    %v2104 = vmul.f32 %v2100, %v272
    %v2105 = vmul.f32 %v2100, %v273
    %v2106 = vmul.f32 %v2100, %v274
    %v2113 = vrot.slane %v2101, 2
    %v2114 = vrot.slane %v2102, 2
    %v2115 = vsel %vm832, %v2113, %v2114
    %v2116 = vrot.slane %v2103, 2
    %v2117 = vsel %vm832, %v2114, %v2116
    %v2118 = vrot.slane %v2104, 2
    %v2119 = vrot.slane %v2105, 2
    %v2120 = vsel %vm832, %v2118, %v2119
    %v2121 = vrot.slane %v2106, 2
    %v2122 = vsel %vm832, %v2119, %v2121
    %2123 = vrot.lane.b32.xlu0 %v2115, 122
    %v2124 = vpop.permute.xlu0 %2123
    %2125 = vrot.lane.b32.xlu0 %v2117, 122
    %v2126 = vpop.permute.xlu0 %2125
    %2127 = vrot.lane.b32.xlu0 %v2116, 122
    %v2128 = vpop.permute.xlu0 %2127
    %2129 = vrot.lane.b32.xlu0 %v2120, 122
    %v2130 = vpop.permute.xlu0 %2129
    %2131 = vrot.lane.b32.xlu0 %v2122, 122
    %v2132 = vpop.permute.xlu0 %2131
    %2133 = vrot.lane.b32.xlu0 %v2121, 122
    %v2134 = vpop.permute.xlu0 %2133
    %v2141 = vadd.f32 %v1961, %v2124
    %v2142 = vadd.f32 %v1962, %v2126
    %v2143 = vadd.f32 %v1963, %v2128
    %v2144 = vadd.f32 %v1964, %v2130
    %v2145 = vadd.f32 %v1965, %v2132
    %v2146 = vadd.f32 %v1966, %v2134
    %v2147 = vstv %s212
    %v2148 = vmul.f32 %v2147, %v269
    %v2149 = vmul.f32 %v2147, %v270
    %v2150 = vmul.f32 %v2147, %v271
    %v2151 = vmul.f32 %v2147, %v272
    %v2152 = vmul.f32 %v2147, %v273
    %v2153 = vmul.f32 %v2147, %v274
    %v2160 = vrot.slane %v2148, 2
    %v2161 = vrot.slane %v2149, 2
    %v2162 = vsel %vm832, %v2160, %v2161
    %v2163 = vrot.slane %v2150, 2
    %v2164 = vsel %vm832, %v2161, %v2163
    %v2165 = vrot.slane %v2151, 2
    %v2166 = vrot.slane %v2152, 2
    %v2167 = vsel %vm832, %v2165, %v2166
    %v2168 = vrot.slane %v2153, 2
    %v2169 = vsel %vm832, %v2166, %v2168
    %2170 = vrot.lane.b32.xlu0 %v2162, 122
    %v2171 = vpop.permute.xlu0 %2170
    %2172 = vrot.lane.b32.xlu0 %v2164, 122
    %v2173 = vpop.permute.xlu0 %2172
    %2174 = vrot.lane.b32.xlu0 %v2163, 122
    %v2175 = vpop.permute.xlu0 %2174
    %2176 = vrot.lane.b32.xlu0 %v2167, 122
    %v2177 = vpop.permute.xlu0 %2176
    %2178 = vrot.lane.b32.xlu0 %v2169, 122
    %v2179 = vpop.permute.xlu0 %2178
    %2180 = vrot.lane.b32.xlu0 %v2168, 122
    %v2181 = vpop.permute.xlu0 %2180
    %v2188 = vadd.f32 %v2008, %v2171
    %v2189 = vadd.f32 %v2009, %v2173
    %v2190 = vadd.f32 %v2010, %v2175
    %v2191 = vadd.f32 %v2011, %v2177
    %v2192 = vadd.f32 %v2012, %v2179
    %v2193 = vadd.f32 %v2013, %v2181
    %v2194 = vstv %s219
    %v2195 = vmul.f32 %v2194, %v269
    %v2196 = vmul.f32 %v2194, %v270
    %v2197 = vmul.f32 %v2194, %v271
    %v2198 = vmul.f32 %v2194, %v272
    %v2199 = vmul.f32 %v2194, %v273
    %v2200 = vmul.f32 %v2194, %v274
    %v2207 = vrot.slane %v2195, 6
    %v2208 = vrot.slane %v2196, 6
    %v2209 = vsel %vm741, %v2207, %v2208
    %v2210 = vrot.slane %v2197, 6
    %v2211 = vsel %vm741, %v2208, %v2210
    %v2212 = vrot.slane %v2198, 6
    %v2213 = vrot.slane %v2199, 6
    %v2214 = vsel %vm741, %v2212, %v2213
    %v2215 = vrot.slane %v2200, 6
    %v2216 = vsel %vm741, %v2213, %v2215
    %2217 = vrot.lane.b32.xlu0 %v2209, 122
    %v2218 = vpop.permute.xlu0 %2217
    %2219 = vrot.lane.b32.xlu0 %v2211, 122
    %v2220 = vpop.permute.xlu0 %2219
    %2221 = vrot.lane.b32.xlu0 %v2214, 122
    %v2222 = vpop.permute.xlu0 %2221
    %2223 = vrot.lane.b32.xlu0 %v2216, 122
    %v2224 = vpop.permute.xlu0 %2223
    %v2229 = vadd.f32 %v2049, %v2218
    %v2230 = vadd.f32 %v2050, %v2220
    %v2231 = vadd.f32 %v2051, %v2222
    %v2232 = vadd.f32 %v2052, %v2224
    %v2233 = vld [vmem:[%s166] sm:$0xff]
    %v2234 = vld [vmem:[%s166 + $0x8] sm:$0xff]
    %v2235 = vld [vmem:[%s166 + $0x10] sm:$0x3f]
    %v2236 = vld [vmem:[%s166 + $0x18] sm:$0xff]
    %v2237 = vld [vmem:[%s166 + $0x20] sm:$0xff]
    %v2238 = vld [vmem:[%s166 + $0x28] sm:$0x3f]
    %v2239 = vstv %s220
    %v2240 = vmul.f32 %v2239, %v2233
    %v2241 = vmul.f32 %v2239, %v2234
    %v2242 = vmul.f32 %v2239, %v2236
    %v2243 = vmul.f32 %v2239, %v2237
    %v2248 = vrot.slane %v2240, 7
    %v2249 = vrot.slane %v2241, 7
    %v2250 = vsel %vm1048, %v2248, %v2249
    %v2251 = vrot.slane %v2242, 7
    %v2252 = vrot.slane %v2243, 7
    %v2253 = vsel %vm1048, %v2251, %v2252
    %v2260 = vadd.f32 %v2094, %v2248
    %v2261 = vadd.f32 %v2095, %v2250
    %v2262 = vadd.f32 %v2096, %v2249
    %v2263 = vadd.f32 %v2097, %v2251
    %v2264 = vadd.f32 %v2098, %v2253
    %v2265 = vadd.f32 %v2099, %v2252
    %v2266 = vstv %s227
    %v2267 = vmul.f32 %v2266, %v2233
    %v2268 = vmul.f32 %v2266, %v2234
    %v2269 = vmul.f32 %v2266, %v2235
    %v2270 = vmul.f32 %v2266, %v2236
    %v2271 = vmul.f32 %v2266, %v2237
    %v2272 = vmul.f32 %v2266, %v2238
    %v2279 = vrot.slane %v2267, 7
    %v2280 = vrot.slane %v2268, 7
    %v2281 = vsel %vm1048, %v2279, %v2280
    %v2282 = vrot.slane %v2269, 7
    %v2283 = vsel %vm1048, %v2280, %v2282
    %v2284 = vrot.slane %v2270, 7
    %v2285 = vrot.slane %v2271, 7
    %v2286 = vsel %vm1048, %v2284, %v2285
    %v2287 = vrot.slane %v2272, 7
    %v2288 = vsel %vm1048, %v2285, %v2287
    %v2295 = vadd.f32 %v2141, %v2279
    %v2296 = vadd.f32 %v2142, %v2281
    %v2297 = vadd.f32 %v2143, %v2283
    %v2298 = vadd.f32 %v2144, %v2284
    %v2299 = vadd.f32 %v2145, %v2286
    %v2300 = vadd.f32 %v2146, %v2288
    %v2301 = vstv %s234
    %v2302 = vmul.f32 %v2301, %v2233
    %v2303 = vmul.f32 %v2301, %v2234
    %v2304 = vmul.f32 %v2301, %v2235
    %v2305 = vmul.f32 %v2301, %v2236
    %v2306 = vmul.f32 %v2301, %v2237
    %v2307 = vmul.f32 %v2301, %v2238
    %v2314 = vrot.slane %v2302, 7
    %v2315 = vrot.slane %v2303, 7
    %v2316 = vsel %vm1048, %v2314, %v2315
    %v2317 = vrot.slane %v2304, 7
    %v2318 = vsel %vm1048, %v2315, %v2317
    %v2319 = vrot.slane %v2305, 7
    %v2320 = vrot.slane %v2306, 7
    %v2321 = vsel %vm1048, %v2319, %v2320
    %v2322 = vrot.slane %v2307, 7
    %v2323 = vsel %vm1048, %v2320, %v2322
    %v2330 = vadd.f32 %v2188, %v2314
    %v2331 = vadd.f32 %v2189, %v2316
    %v2332 = vadd.f32 %v2190, %v2318
    %v2333 = vadd.f32 %v2191, %v2319
    %v2334 = vadd.f32 %v2192, %v2321
    %v2335 = vadd.f32 %v2193, %v2323
    %v2336 = vstv %s241
    %v2337 = vmul.f32 %v2336, %v2233
    %v2338 = vmul.f32 %v2336, %v2234
    %v2339 = vmul.f32 %v2336, %v2235
    %v2340 = vmul.f32 %v2336, %v2236
    %v2341 = vmul.f32 %v2336, %v2237
    %v2342 = vmul.f32 %v2336, %v2238
    %v2349 = vrot.slane %v2337, 3
    %v2350 = vrot.slane %v2338, 3
    %v2351 = vsel %vm1186, %v2349, %v2350
    %v2352 = vrot.slane %v2339, 3
    %v2353 = vsel %vm1186, %v2350, %v2352
    %v2354 = vrot.slane %v2340, 3
    %v2355 = vrot.slane %v2341, 3
    %v2356 = vsel %vm1186, %v2354, %v2355
    %v2357 = vrot.slane %v2342, 3
    %v2358 = vsel %vm1186, %v2355, %v2357
    %v2363 = vadd.f32 %v2229, %v2351
    %v2364 = vadd.f32 %v2230, %v2353
    %v2365 = vadd.f32 %v2231, %v2356
    %v2366 = vadd.f32 %v2232, %v2358
    %v2367 = vstv %s248
    %v2368 = vmul.f32 %v2367, %v2233
    %v2369 = vmul.f32 %v2367, %v2234
    %v2370 = vmul.f32 %v2367, %v2235
    %v2371 = vmul.f32 %v2367, %v2236
    %v2372 = vmul.f32 %v2367, %v2237
    %v2373 = vmul.f32 %v2367, %v2238
    %v2380 = vrot.slane %v2368, 3
    %v2381 = vrot.slane %v2369, 3
    %v2382 = vsel %vm1186, %v2380, %v2381
    %v2383 = vrot.slane %v2370, 3
    %v2384 = vsel %vm1186, %v2381, %v2383
    %v2385 = vrot.slane %v2371, 3
    %v2386 = vrot.slane %v2372, 3
    %v2387 = vsel %vm1186, %v2385, %v2386
    %v2388 = vrot.slane %v2373, 3
    %v2389 = vsel %vm1186, %v2386, %v2388
    %v2396 = vadd.f32 %v2260, %v2382
    %v2397 = vadd.f32 %v2261, %v2384
    %v2398 = vadd.f32 %v2262, %v2383
    %v2399 = vadd.f32 %v2263, %v2387
    %v2400 = vadd.f32 %v2264, %v2389
    %v2401 = vadd.f32 %v2265, %v2388
    %v2402 = vstv %s255
    %v2403 = vmul.f32 %v2402, %v2233
    %v2404 = vmul.f32 %v2402, %v2234
    %v2405 = vmul.f32 %v2402, %v2235
    %v2406 = vmul.f32 %v2402, %v2236
    %v2407 = vmul.f32 %v2402, %v2237
    %v2408 = vmul.f32 %v2402, %v2238
    %v2415 = vrot.slane %v2403, 3
    %v2416 = vrot.slane %v2404, 3
    %v2417 = vsel %vm1186, %v2415, %v2416
    %v2418 = vrot.slane %v2405, 3
    %v2419 = vsel %vm1186, %v2416, %v2418
    %v2420 = vrot.slane %v2406, 3
    %v2421 = vrot.slane %v2407, 3
    %v2422 = vsel %vm1186, %v2420, %v2421
    %v2423 = vrot.slane %v2408, 3
    %v2424 = vsel %vm1186, %v2421, %v2423
    %v2431 = vadd.f32 %v2295, %v2417
    %v2432 = vadd.f32 %v2296, %v2419
    %v2433 = vadd.f32 %v2297, %v2418
    %v2434 = vadd.f32 %v2298, %v2422
    %v2435 = vadd.f32 %v2299, %v2424
    %v2436 = vadd.f32 %v2300, %v2423
    %v2437 = vstv %s262
    %v2438 = vmul.f32 %v2437, %v2233
    %v2439 = vmul.f32 %v2437, %v2234
    %v2440 = vmul.f32 %v2437, %v2235
    %v2441 = vmul.f32 %v2437, %v2236
    %v2442 = vmul.f32 %v2437, %v2237
    %v2443 = vmul.f32 %v2437, %v2238
    %v2450 = vrot.slane %v2438, 3
    %v2451 = vrot.slane %v2439, 3
    %v2452 = vsel %vm1186, %v2450, %v2451
    %v2453 = vrot.slane %v2440, 3
    %v2454 = vsel %vm1186, %v2451, %v2453
    %v2455 = vrot.slane %v2441, 3
    %v2456 = vrot.slane %v2442, 3
    %v2457 = vsel %vm1186, %v2455, %v2456
    %v2458 = vrot.slane %v2443, 3
    %v2459 = vsel %vm1186, %v2456, %v2458
    %v2466 = vadd.f32 %v2330, %v2452
    %v2467 = vadd.f32 %v2331, %v2454
    %v2468 = vadd.f32 %v2332, %v2453
    %v2469 = vadd.f32 %v2333, %v2457
    %v2470 = vadd.f32 %v2334, %v2459
    %v2471 = vadd.f32 %v2335, %v2458
    %v2472 = vstv %s221
    %v2473 = vmul.f32 %v2472, %v2233
    %v2474 = vmul.f32 %v2472, %v2234
    %v2475 = vmul.f32 %v2472, %v2236
    %v2476 = vmul.f32 %v2472, %v2237
    %2481 = vrot.lane.b32.xlu0 %v2473, 127
    %v2482 = vpop.permute.xlu0 %2481
    %2483 = vrot.lane.b32.xlu0 %v2474, 127
    %v2484 = vpop.permute.xlu0 %2483
    %2485 = vrot.lane.b32.xlu0 %v2475, 127
    %v2486 = vpop.permute.xlu0 %2485
    %2487 = vrot.lane.b32.xlu0 %v2476, 127
    %v2488 = vpop.permute.xlu0 %2487
    %v2493 = vadd.f32 %v2363, %v2482
    %v2494 = vadd.f32 %v2364, %v2484
    %v2495 = vadd.f32 %v2365, %v2486
    %v2496 = vadd.f32 %v2366, %v2488
    %v2497 = vstv %s228
    %v2498 = vmul.f32 %v2497, %v2233
    %v2499 = vmul.f32 %v2497, %v2234
    %v2500 = vmul.f32 %v2497, %v2235
    %v2501 = vmul.f32 %v2497, %v2236
    %v2502 = vmul.f32 %v2497, %v2237
    %v2503 = vmul.f32 %v2497, %v2238
    %2510 = vrot.lane.b32.xlu0 %v2498, 127
    %v2511 = vpop.permute.xlu0 %2510
    %2512 = vrot.lane.b32.xlu0 %v2499, 127
    %v2513 = vpop.permute.xlu0 %2512
    %2514 = vrot.lane.b32.xlu0 %v2500, 127
    %v2515 = vpop.permute.xlu0 %2514
    %2516 = vrot.lane.b32.xlu0 %v2501, 127
    %v2517 = vpop.permute.xlu0 %2516
    %2518 = vrot.lane.b32.xlu0 %v2502, 127
    %v2519 = vpop.permute.xlu0 %2518
    %2520 = vrot.lane.b32.xlu0 %v2503, 127
    %v2521 = vpop.permute.xlu0 %2520
    %v2528 = vadd.f32 %v2396, %v2511
    %v2529 = vadd.f32 %v2397, %v2513
    %v2530 = vadd.f32 %v2398, %v2515
    %v2531 = vadd.f32 %v2399, %v2517
    %v2532 = vadd.f32 %v2400, %v2519
    %v2533 = vadd.f32 %v2401, %v2521
    %v2534 = vstv %s235
    %v2535 = vmul.f32 %v2534, %v2233
    %v2536 = vmul.f32 %v2534, %v2234
    %v2537 = vmul.f32 %v2534, %v2235
    %v2538 = vmul.f32 %v2534, %v2236
    %v2539 = vmul.f32 %v2534, %v2237
    %v2540 = vmul.f32 %v2534, %v2238
    %2547 = vrot.lane.b32.xlu0 %v2535, 127
    %v2548 = vpop.permute.xlu0 %2547
    %2549 = vrot.lane.b32.xlu0 %v2536, 127
    %v2550 = vpop.permute.xlu0 %2549
    %2551 = vrot.lane.b32.xlu0 %v2537, 127
    %v2552 = vpop.permute.xlu0 %2551
    %2553 = vrot.lane.b32.xlu0 %v2538, 127
    %v2554 = vpop.permute.xlu0 %2553
    %2555 = vrot.lane.b32.xlu0 %v2539, 127
    %v2556 = vpop.permute.xlu0 %2555
    %2557 = vrot.lane.b32.xlu0 %v2540, 127
    %v2558 = vpop.permute.xlu0 %2557
    %v2565 = vadd.f32 %v2431, %v2548
    %v2566 = vadd.f32 %v2432, %v2550
    %v2567 = vadd.f32 %v2433, %v2552
    %v2568 = vadd.f32 %v2434, %v2554
    %v2569 = vadd.f32 %v2435, %v2556
    %v2570 = vadd.f32 %v2436, %v2558
    %v2571 = vstv %s242
    %v2572 = vmul.f32 %v2571, %v2233
    %v2573 = vmul.f32 %v2571, %v2234
    %v2574 = vmul.f32 %v2571, %v2235
    %v2575 = vmul.f32 %v2571, %v2236
    %v2576 = vmul.f32 %v2571, %v2237
    %v2577 = vmul.f32 %v2571, %v2238
    %2584 = vrot.lane.b32.xlu0 %v2572, 127
    %v2585 = vpop.permute.xlu0 %2584
    %2586 = vrot.lane.b32.xlu0 %v2573, 127
    %v2587 = vpop.permute.xlu0 %2586
    %2588 = vrot.lane.b32.xlu0 %v2574, 127
    %v2589 = vpop.permute.xlu0 %2588
    %2590 = vrot.lane.b32.xlu0 %v2575, 127
    %v2591 = vpop.permute.xlu0 %2590
    %2592 = vrot.lane.b32.xlu0 %v2576, 127
    %v2593 = vpop.permute.xlu0 %2592
    %2594 = vrot.lane.b32.xlu0 %v2577, 127
    %v2595 = vpop.permute.xlu0 %2594
    %v2602 = vadd.f32 %v2466, %v2585
    %v2603 = vadd.f32 %v2467, %v2587
    %v2604 = vadd.f32 %v2468, %v2589
    %v2605 = vadd.f32 %v2469, %v2591
    %v2606 = vadd.f32 %v2470, %v2593
    %v2607 = vadd.f32 %v2471, %v2595
    %v2608 = vstv %s249
    %v2609 = vmul.f32 %v2608, %v2233
    %v2610 = vmul.f32 %v2608, %v2234
    %v2611 = vmul.f32 %v2608, %v2235
    %v2612 = vmul.f32 %v2608, %v2236
    %v2613 = vmul.f32 %v2608, %v2237
    %v2614 = vmul.f32 %v2608, %v2238
    %v2621 = vrot.slane %v2609, 4
    %v2622 = vrot.slane %v2610, 4
    %v2623 = vsel %vm336, %v2621, %v2622
    %v2624 = vrot.slane %v2611, 4
    %v2625 = vsel %vm336, %v2622, %v2624
    %v2626 = vrot.slane %v2612, 4
    %v2627 = vrot.slane %v2613, 4
    %v2628 = vsel %vm336, %v2626, %v2627
    %v2629 = vrot.slane %v2614, 4
    %v2630 = vsel %vm336, %v2627, %v2629
    %2631 = vrot.lane.b32.xlu0 %v2623, 127
    %v2632 = vpop.permute.xlu0 %2631
    %2633 = vrot.lane.b32.xlu0 %v2625, 127
    %v2634 = vpop.permute.xlu0 %2633
    %2635 = vrot.lane.b32.xlu0 %v2628, 127
    %v2636 = vpop.permute.xlu0 %2635
    %2637 = vrot.lane.b32.xlu0 %v2630, 127
    %v2638 = vpop.permute.xlu0 %2637
    %v2643 = vadd.f32 %v2493, %v2632
    %v2644 = vadd.f32 %v2494, %v2634
    %v2645 = vadd.f32 %v2495, %v2636
    %v2646 = vadd.f32 %v2496, %v2638
    %v2647 = vstv %s256
    %v2648 = vmul.f32 %v2647, %v2233
    %v2649 = vmul.f32 %v2647, %v2234
    %v2650 = vmul.f32 %v2647, %v2235
    %v2651 = vmul.f32 %v2647, %v2236
    %v2652 = vmul.f32 %v2647, %v2237
    %v2653 = vmul.f32 %v2647, %v2238
    %v2660 = vrot.slane %v2648, 4
    %v2661 = vrot.slane %v2649, 4
    %v2662 = vsel %vm336, %v2660, %v2661
    %v2663 = vrot.slane %v2650, 4
    %v2664 = vsel %vm336, %v2661, %v2663
    %v2665 = vrot.slane %v2651, 4
    %v2666 = vrot.slane %v2652, 4
    %v2667 = vsel %vm336, %v2665, %v2666
    %v2668 = vrot.slane %v2653, 4
    %v2669 = vsel %vm336, %v2666, %v2668
    %2670 = vrot.lane.b32.xlu0 %v2662, 127
    %v2671 = vpop.permute.xlu0 %2670
    %2672 = vrot.lane.b32.xlu0 %v2664, 127
    %v2673 = vpop.permute.xlu0 %2672
    %2674 = vrot.lane.b32.xlu0 %v2663, 127
    %v2675 = vpop.permute.xlu0 %2674
    %2676 = vrot.lane.b32.xlu0 %v2667, 127
    %v2677 = vpop.permute.xlu0 %2676
    %2678 = vrot.lane.b32.xlu0 %v2669, 127
    %v2679 = vpop.permute.xlu0 %2678
    %2680 = vrot.lane.b32.xlu0 %v2668, 127
    %v2681 = vpop.permute.xlu0 %2680
    %v2688 = vadd.f32 %v2528, %v2671
    %v2689 = vadd.f32 %v2529, %v2673
    %v2690 = vadd.f32 %v2530, %v2675
    %v2691 = vadd.f32 %v2531, %v2677
    %v2692 = vadd.f32 %v2532, %v2679
    %v2693 = vadd.f32 %v2533, %v2681
    %v2694 = vstv %s263
    %v2695 = vmul.f32 %v2694, %v2233
    %v2696 = vmul.f32 %v2694, %v2234
    %v2697 = vmul.f32 %v2694, %v2235
    %v2698 = vmul.f32 %v2694, %v2236
    %v2699 = vmul.f32 %v2694, %v2237
    %v2700 = vmul.f32 %v2694, %v2238
    %v2707 = vrot.slane %v2695, 4
    %v2708 = vrot.slane %v2696, 4
    %v2709 = vsel %vm336, %v2707, %v2708
    %v2710 = vrot.slane %v2697, 4
    %v2711 = vsel %vm336, %v2708, %v2710
    %v2712 = vrot.slane %v2698, 4
    %v2713 = vrot.slane %v2699, 4
    %v2714 = vsel %vm336, %v2712, %v2713
    %v2715 = vrot.slane %v2700, 4
    %v2716 = vsel %vm336, %v2713, %v2715
    %2717 = vrot.lane.b32.xlu0 %v2709, 127
    %v2718 = vpop.permute.xlu0 %2717
    %2719 = vrot.lane.b32.xlu0 %v2711, 127
    %v2720 = vpop.permute.xlu0 %2719
    %2721 = vrot.lane.b32.xlu0 %v2710, 127
    %v2722 = vpop.permute.xlu0 %2721
    %2723 = vrot.lane.b32.xlu0 %v2714, 127
    %v2724 = vpop.permute.xlu0 %2723
    %2725 = vrot.lane.b32.xlu0 %v2716, 127
    %v2726 = vpop.permute.xlu0 %2725
    %2727 = vrot.lane.b32.xlu0 %v2715, 127
    %v2728 = vpop.permute.xlu0 %2727
    %v2735 = vadd.f32 %v2565, %v2718
    %v2736 = vadd.f32 %v2566, %v2720
    %v2737 = vadd.f32 %v2567, %v2722
    %v2738 = vadd.f32 %v2568, %v2724
    %v2739 = vadd.f32 %v2569, %v2726
    %v2740 = vadd.f32 %v2570, %v2728
    %v2741 = vstv %s222
    %v2742 = vmul.f32 %v2741, %v2233
    %v2743 = vmul.f32 %v2741, %v2234
    %v2744 = vmul.f32 %v2741, %v2236
    %v2745 = vmul.f32 %v2741, %v2237
    %v2750 = vrot.slane %v2742, 5
    %v2751 = vrot.slane %v2743, 5
    %v2752 = vsel %vm434, %v2750, %v2751
    %v2753 = vrot.slane %v2744, 5
    %v2754 = vrot.slane %v2745, 5
    %v2755 = vsel %vm434, %v2753, %v2754
    %2756 = vrot.lane.b32.xlu0 %v2750, 126
    %v2757 = vpop.permute.xlu0 %2756
    %2758 = vrot.lane.b32.xlu0 %v2752, 126
    %v2759 = vpop.permute.xlu0 %2758
    %2760 = vrot.lane.b32.xlu0 %v2751, 126
    %v2761 = vpop.permute.xlu0 %2760
    %2762 = vrot.lane.b32.xlu0 %v2753, 126
    %v2763 = vpop.permute.xlu0 %2762
    %2764 = vrot.lane.b32.xlu0 %v2755, 126
    %v2765 = vpop.permute.xlu0 %2764
    %2766 = vrot.lane.b32.xlu0 %v2754, 126
    %v2767 = vpop.permute.xlu0 %2766
    %v2774 = vadd.f32 %v2602, %v2757
    %v2775 = vadd.f32 %v2603, %v2759
    %v2776 = vadd.f32 %v2604, %v2761
    %v2777 = vadd.f32 %v2605, %v2763
    %v2778 = vadd.f32 %v2606, %v2765
    %v2779 = vadd.f32 %v2607, %v2767
    %v2780 = vstv %s229
    %v2781 = vmul.f32 %v2780, %v2233
    %v2782 = vmul.f32 %v2780, %v2234
    %v2783 = vmul.f32 %v2780, %v2235
    %v2784 = vmul.f32 %v2780, %v2236
    %v2785 = vmul.f32 %v2780, %v2237
    %v2786 = vmul.f32 %v2780, %v2238
    %v2793 = vrot.slane %v2781, 1
    %v2794 = vrot.slane %v2782, 1
    %v2795 = vsel %vm478, %v2793, %v2794
    %v2796 = vrot.slane %v2783, 1
    %v2797 = vsel %vm478, %v2794, %v2796
    %v2798 = vrot.slane %v2784, 1
    %v2799 = vrot.slane %v2785, 1
    %v2800 = vsel %vm478, %v2798, %v2799
    %v2801 = vrot.slane %v2786, 1
    %v2802 = vsel %vm478, %v2799, %v2801
    %2803 = vrot.lane.b32.xlu0 %v2795, 126
    %v2804 = vpop.permute.xlu0 %2803
    %2805 = vrot.lane.b32.xlu0 %v2797, 126
    %v2806 = vpop.permute.xlu0 %2805
    %2807 = vrot.lane.b32.xlu0 %v2800, 126
    %v2808 = vpop.permute.xlu0 %2807
    %2809 = vrot.lane.b32.xlu0 %v2802, 126
    %v2810 = vpop.permute.xlu0 %2809
    %v2815 = vadd.f32 %v2643, %v2804
    %v2816 = vadd.f32 %v2644, %v2806
    %v2817 = vadd.f32 %v2645, %v2808
    %v2818 = vadd.f32 %v2646, %v2810
    %v2819 = vstv %s236
    %v2820 = vmul.f32 %v2819, %v2233
    %v2821 = vmul.f32 %v2819, %v2234
    %v2822 = vmul.f32 %v2819, %v2235
    %v2823 = vmul.f32 %v2819, %v2236
    %v2824 = vmul.f32 %v2819, %v2237
    %v2825 = vmul.f32 %v2819, %v2238
    %v2832 = vrot.slane %v2820, 1
    %v2833 = vrot.slane %v2821, 1
    %v2834 = vsel %vm478, %v2832, %v2833
    %v2835 = vrot.slane %v2822, 1
    %v2836 = vsel %vm478, %v2833, %v2835
    %v2837 = vrot.slane %v2823, 1
    %v2838 = vrot.slane %v2824, 1
    %v2839 = vsel %vm478, %v2837, %v2838
    %v2840 = vrot.slane %v2825, 1
    %v2841 = vsel %vm478, %v2838, %v2840
    %2842 = vrot.lane.b32.xlu0 %v2834, 126
    %v2843 = vpop.permute.xlu0 %2842
    %2844 = vrot.lane.b32.xlu0 %v2836, 126
    %v2845 = vpop.permute.xlu0 %2844
    %2846 = vrot.lane.b32.xlu0 %v2835, 126
    %v2847 = vpop.permute.xlu0 %2846
    %2848 = vrot.lane.b32.xlu0 %v2839, 126
    %v2849 = vpop.permute.xlu0 %2848
    %2850 = vrot.lane.b32.xlu0 %v2841, 126
    %v2851 = vpop.permute.xlu0 %2850
    %2852 = vrot.lane.b32.xlu0 %v2840, 126
    %v2853 = vpop.permute.xlu0 %2852
    %v2860 = vadd.f32 %v2688, %v2843
    %v2861 = vadd.f32 %v2689, %v2845
    %v2862 = vadd.f32 %v2690, %v2847
    %v2863 = vadd.f32 %v2691, %v2849
    %v2864 = vadd.f32 %v2692, %v2851
    %v2865 = vadd.f32 %v2693, %v2853
    %v2866 = vstv %s243
    %v2867 = vmul.f32 %v2866, %v2233
    %v2868 = vmul.f32 %v2866, %v2234
    %v2869 = vmul.f32 %v2866, %v2235
    %v2870 = vmul.f32 %v2866, %v2236
    %v2871 = vmul.f32 %v2866, %v2237
    %v2872 = vmul.f32 %v2866, %v2238
    %v2879 = vrot.slane %v2867, 1
    %v2880 = vrot.slane %v2868, 1
    %v2881 = vsel %vm478, %v2879, %v2880
    %v2882 = vrot.slane %v2869, 1
    %v2883 = vsel %vm478, %v2880, %v2882
    %v2884 = vrot.slane %v2870, 1
    %v2885 = vrot.slane %v2871, 1
    %v2886 = vsel %vm478, %v2884, %v2885
    %v2887 = vrot.slane %v2872, 1
    %v2888 = vsel %vm478, %v2885, %v2887
    %2889 = vrot.lane.b32.xlu0 %v2881, 126
    %v2890 = vpop.permute.xlu0 %2889
    %2891 = vrot.lane.b32.xlu0 %v2883, 126
    %v2892 = vpop.permute.xlu0 %2891
    %2893 = vrot.lane.b32.xlu0 %v2882, 126
    %v2894 = vpop.permute.xlu0 %2893
    %2895 = vrot.lane.b32.xlu0 %v2886, 126
    %v2896 = vpop.permute.xlu0 %2895
    %2897 = vrot.lane.b32.xlu0 %v2888, 126
    %v2898 = vpop.permute.xlu0 %2897
    %2899 = vrot.lane.b32.xlu0 %v2887, 126
    %v2900 = vpop.permute.xlu0 %2899
    %v2907 = vadd.f32 %v2735, %v2890
    %v2908 = vadd.f32 %v2736, %v2892
    %v2909 = vadd.f32 %v2737, %v2894
    %v2910 = vadd.f32 %v2738, %v2896
    %v2911 = vadd.f32 %v2739, %v2898
    %v2912 = vadd.f32 %v2740, %v2900
    %v2913 = vstv %s250
    %v2914 = vmul.f32 %v2913, %v2233
    %v2915 = vmul.f32 %v2913, %v2234
    %v2916 = vmul.f32 %v2913, %v2235
    %v2917 = vmul.f32 %v2913, %v2236
    %v2918 = vmul.f32 %v2913, %v2237
    %v2919 = vmul.f32 %v2913, %v2238
    %v2926 = vrot.slane %v2914, 1
    %v2927 = vrot.slane %v2915, 1
    %v2928 = vsel %vm478, %v2926, %v2927
    %v2929 = vrot.slane %v2916, 1
    %v2930 = vsel %vm478, %v2927, %v2929
    %v2931 = vrot.slane %v2917, 1
    %v2932 = vrot.slane %v2918, 1
    %v2933 = vsel %vm478, %v2931, %v2932
    %v2934 = vrot.slane %v2919, 1
    %v2935 = vsel %vm478, %v2932, %v2934
    %2936 = vrot.lane.b32.xlu0 %v2928, 126
    %v2937 = vpop.permute.xlu0 %2936
    %2938 = vrot.lane.b32.xlu0 %v2930, 126
    %v2939 = vpop.permute.xlu0 %2938
    %2940 = vrot.lane.b32.xlu0 %v2929, 126
    %v2941 = vpop.permute.xlu0 %2940
    %2942 = vrot.lane.b32.xlu0 %v2933, 126
    %v2943 = vpop.permute.xlu0 %2942
    %2944 = vrot.lane.b32.xlu0 %v2935, 126
    %v2945 = vpop.permute.xlu0 %2944
    %2946 = vrot.lane.b32.xlu0 %v2934, 126
    %v2947 = vpop.permute.xlu0 %2946
    %v2954 = vadd.f32 %v2774, %v2937
    %v2955 = vadd.f32 %v2775, %v2939
    %v2956 = vadd.f32 %v2776, %v2941
    %v2957 = vadd.f32 %v2777, %v2943
    %v2958 = vadd.f32 %v2778, %v2945
    %v2959 = vadd.f32 %v2779, %v2947
    %v2960 = vstv %s257
    %v2961 = vmul.f32 %v2960, %v2233
    %v2962 = vmul.f32 %v2960, %v2234
    %v2963 = vmul.f32 %v2960, %v2235
    %v2964 = vmul.f32 %v2960, %v2236
    %v2965 = vmul.f32 %v2960, %v2237
    %v2966 = vmul.f32 %v2960, %v2238
    %v2973 = vrot.slane %v2961, 5
    %v2974 = vrot.slane %v2962, 5
    %v2975 = vsel %vm434, %v2973, %v2974
    %v2976 = vrot.slane %v2963, 5
    %v2977 = vsel %vm434, %v2974, %v2976
    %v2978 = vrot.slane %v2964, 5
    %v2979 = vrot.slane %v2965, 5
    %v2980 = vsel %vm434, %v2978, %v2979
    %v2981 = vrot.slane %v2966, 5
    %v2982 = vsel %vm434, %v2979, %v2981
    %2983 = vrot.lane.b32.xlu0 %v2975, 126
    %v2984 = vpop.permute.xlu0 %2983
    %2985 = vrot.lane.b32.xlu0 %v2977, 126
    %v2986 = vpop.permute.xlu0 %2985
    %2987 = vrot.lane.b32.xlu0 %v2980, 126
    %v2988 = vpop.permute.xlu0 %2987
    %2989 = vrot.lane.b32.xlu0 %v2982, 126
    %v2990 = vpop.permute.xlu0 %2989
    %v2995 = vadd.f32 %v2815, %v2984
    %v2996 = vadd.f32 %v2816, %v2986
    %v2997 = vadd.f32 %v2817, %v2988
    %v2998 = vadd.f32 %v2818, %v2990
    %v2999 = vstv %s264
    %v3000 = vmul.f32 %v2999, %v2233
    %v3001 = vmul.f32 %v2999, %v2234
    %v3002 = vmul.f32 %v2999, %v2235
    %v3003 = vmul.f32 %v2999, %v2236
    %v3004 = vmul.f32 %v2999, %v2237
    %v3005 = vmul.f32 %v2999, %v2238
    %v3012 = vrot.slane %v3000, 5
    %v3013 = vrot.slane %v3001, 5
    %v3014 = vsel %vm434, %v3012, %v3013
    %v3015 = vrot.slane %v3002, 5
    %v3016 = vsel %vm434, %v3013, %v3015
    %v3017 = vrot.slane %v3003, 5
    %v3018 = vrot.slane %v3004, 5
    %v3019 = vsel %vm434, %v3017, %v3018
    %v3020 = vrot.slane %v3005, 5
    %v3021 = vsel %vm434, %v3018, %v3020
    %3022 = vrot.lane.b32.xlu0 %v3014, 126
    %v3023 = vpop.permute.xlu0 %3022
    %3024 = vrot.lane.b32.xlu0 %v3016, 126
    %v3025 = vpop.permute.xlu0 %3024
    %3026 = vrot.lane.b32.xlu0 %v3015, 126
    %v3027 = vpop.permute.xlu0 %3026
    %3028 = vrot.lane.b32.xlu0 %v3019, 126
    %v3029 = vpop.permute.xlu0 %3028
    %3030 = vrot.lane.b32.xlu0 %v3021, 126
    %v3031 = vpop.permute.xlu0 %3030
    %3032 = vrot.lane.b32.xlu0 %v3020, 126
    %v3033 = vpop.permute.xlu0 %3032
    %v3040 = vadd.f32 %v2860, %v3023
    %v3041 = vadd.f32 %v2861, %v3025
    %v3042 = vadd.f32 %v2862, %v3027
    %v3043 = vadd.f32 %v2863, %v3029
    %v3044 = vadd.f32 %v2864, %v3031
    %v3045 = vadd.f32 %v2865, %v3033
    %v3046 = vstv %s223
    %v3047 = vmul.f32 %v3046, %v2233
    %v3048 = vmul.f32 %v3046, %v2234
    %v3049 = vmul.f32 %v3046, %v2236
    %v3050 = vmul.f32 %v3046, %v2237
    %v3055 = vrot.slane %v3047, 6
    %v3056 = vrot.slane %v3048, 6
    %v3057 = vsel %vm741, %v3055, %v3056
    %v3058 = vrot.slane %v3049, 6
    %v3059 = vrot.slane %v3050, 6
    %v3060 = vsel %vm741, %v3058, %v3059
    %3061 = vrot.lane.b32.xlu0 %v3055, 125
    %v3062 = vpop.permute.xlu0 %3061
    %3063 = vrot.lane.b32.xlu0 %v3057, 125
    %v3064 = vpop.permute.xlu0 %3063
    %3065 = vrot.lane.b32.xlu0 %v3056, 125
    %v3066 = vpop.permute.xlu0 %3065
    %3067 = vrot.lane.b32.xlu0 %v3058, 125
    %v3068 = vpop.permute.xlu0 %3067
    %3069 = vrot.lane.b32.xlu0 %v3060, 125
    %v3070 = vpop.permute.xlu0 %3069
    %3071 = vrot.lane.b32.xlu0 %v3059, 125
    %v3072 = vpop.permute.xlu0 %3071
    %v3079 = vadd.f32 %v2907, %v3062
    %v3080 = vadd.f32 %v2908, %v3064
    %v3081 = vadd.f32 %v2909, %v3066
    %v3082 = vadd.f32 %v2910, %v3068
    %v3083 = vadd.f32 %v2911, %v3070
    %v3084 = vadd.f32 %v2912, %v3072
    %v3085 = vstv %s230
    %v3086 = vmul.f32 %v3085, %v2233
    %v3087 = vmul.f32 %v3085, %v2234
    %v3088 = vmul.f32 %v3085, %v2235
    %v3089 = vmul.f32 %v3085, %v2236
    %v3090 = vmul.f32 %v3085, %v2237
    %v3091 = vmul.f32 %v3085, %v2238
    %v3098 = vrot.slane %v3086, 6
    %v3099 = vrot.slane %v3087, 6
    %v3100 = vsel %vm741, %v3098, %v3099
    %v3101 = vrot.slane %v3088, 6
    %v3102 = vsel %vm741, %v3099, %v3101
    %v3103 = vrot.slane %v3089, 6
    %v3104 = vrot.slane %v3090, 6
    %v3105 = vsel %vm741, %v3103, %v3104
    %v3106 = vrot.slane %v3091, 6
    %v3107 = vsel %vm741, %v3104, %v3106
    %3108 = vrot.lane.b32.xlu0 %v3098, 125
    %v3109 = vpop.permute.xlu0 %3108
    %3110 = vrot.lane.b32.xlu0 %v3100, 125
    %v3111 = vpop.permute.xlu0 %3110
    %3112 = vrot.lane.b32.xlu0 %v3102, 125
    %v3113 = vpop.permute.xlu0 %3112
    %3114 = vrot.lane.b32.xlu0 %v3103, 125
    %v3115 = vpop.permute.xlu0 %3114
    %3116 = vrot.lane.b32.xlu0 %v3105, 125
    %v3117 = vpop.permute.xlu0 %3116
    %3118 = vrot.lane.b32.xlu0 %v3107, 125
    %v3119 = vpop.permute.xlu0 %3118
    %v3126 = vadd.f32 %v2954, %v3109
    %v3127 = vadd.f32 %v2955, %v3111
    %v3128 = vadd.f32 %v2956, %v3113
    %v3129 = vadd.f32 %v2957, %v3115
    %v3130 = vadd.f32 %v2958, %v3117
    %v3131 = vadd.f32 %v2959, %v3119
    %v3132 = vstv %s237
    %v3133 = vmul.f32 %v3132, %v2233
    %v3134 = vmul.f32 %v3132, %v2234
    %v3135 = vmul.f32 %v3132, %v2235
    %v3136 = vmul.f32 %v3132, %v2236
    %v3137 = vmul.f32 %v3132, %v2237
    %v3138 = vmul.f32 %v3132, %v2238
    %v3145 = vrot.slane %v3133, 2
    %v3146 = vrot.slane %v3134, 2
    %v3147 = vsel %vm832, %v3145, %v3146
    %v3148 = vrot.slane %v3135, 2
    %v3149 = vsel %vm832, %v3146, %v3148
    %v3150 = vrot.slane %v3136, 2
    %v3151 = vrot.slane %v3137, 2
    %v3152 = vsel %vm832, %v3150, %v3151
    %v3153 = vrot.slane %v3138, 2
    %v3154 = vsel %vm832, %v3151, %v3153
    %3155 = vrot.lane.b32.xlu0 %v3147, 125
    %v3156 = vpop.permute.xlu0 %3155
    %3157 = vrot.lane.b32.xlu0 %v3149, 125
    %v3158 = vpop.permute.xlu0 %3157
    %3159 = vrot.lane.b32.xlu0 %v3152, 125
    %v3160 = vpop.permute.xlu0 %3159
    %3161 = vrot.lane.b32.xlu0 %v3154, 125
    %v3162 = vpop.permute.xlu0 %3161
    %v3167 = vadd.f32 %v2995, %v3156
    %v3168 = vadd.f32 %v2996, %v3158
    %v3169 = vadd.f32 %v2997, %v3160
    %v3170 = vadd.f32 %v2998, %v3162
    %v3171 = vstv %s244
    %v3172 = vmul.f32 %v3171, %v2233
    %v3173 = vmul.f32 %v3171, %v2234
    %v3174 = vmul.f32 %v3171, %v2235
    %v3175 = vmul.f32 %v3171, %v2236
    %v3176 = vmul.f32 %v3171, %v2237
    %v3177 = vmul.f32 %v3171, %v2238
    %v3184 = vrot.slane %v3172, 2
    %v3185 = vrot.slane %v3173, 2
    %v3186 = vsel %vm832, %v3184, %v3185
    %v3187 = vrot.slane %v3174, 2
    %v3188 = vsel %vm832, %v3185, %v3187
    %v3189 = vrot.slane %v3175, 2
    %v3190 = vrot.slane %v3176, 2
    %v3191 = vsel %vm832, %v3189, %v3190
    %v3192 = vrot.slane %v3177, 2
    %v3193 = vsel %vm832, %v3190, %v3192
    %3194 = vrot.lane.b32.xlu0 %v3186, 125
    %v3195 = vpop.permute.xlu0 %3194
    %3196 = vrot.lane.b32.xlu0 %v3188, 125
    %v3197 = vpop.permute.xlu0 %3196
    %3198 = vrot.lane.b32.xlu0 %v3187, 125
    %v3199 = vpop.permute.xlu0 %3198
    %3200 = vrot.lane.b32.xlu0 %v3191, 125
    %v3201 = vpop.permute.xlu0 %3200
    %3202 = vrot.lane.b32.xlu0 %v3193, 125
    %v3203 = vpop.permute.xlu0 %3202
    %3204 = vrot.lane.b32.xlu0 %v3192, 125
    %v3205 = vpop.permute.xlu0 %3204
    %v3212 = vadd.f32 %v3040, %v3195
    %v3213 = vadd.f32 %v3041, %v3197
    %v3214 = vadd.f32 %v3042, %v3199
    %v3215 = vadd.f32 %v3043, %v3201
    %v3216 = vadd.f32 %v3044, %v3203
    %v3217 = vadd.f32 %v3045, %v3205
    %v3218 = vstv %s251
    %v3219 = vmul.f32 %v3218, %v2233
    %v3220 = vmul.f32 %v3218, %v2234
    %v3221 = vmul.f32 %v3218, %v2235
    %v3222 = vmul.f32 %v3218, %v2236
    %v3223 = vmul.f32 %v3218, %v2237
    %v3224 = vmul.f32 %v3218, %v2238
    %v3231 = vrot.slane %v3219, 2
    %v3232 = vrot.slane %v3220, 2
    %v3233 = vsel %vm832, %v3231, %v3232
    %v3234 = vrot.slane %v3221, 2
    %v3235 = vsel %vm832, %v3232, %v3234
    %v3236 = vrot.slane %v3222, 2
    %v3237 = vrot.slane %v3223, 2
    %v3238 = vsel %vm832, %v3236, %v3237
    %v3239 = vrot.slane %v3224, 2
    %v3240 = vsel %vm832, %v3237, %v3239
    %3241 = vrot.lane.b32.xlu0 %v3233, 125
    %v3242 = vpop.permute.xlu0 %3241
    %3243 = vrot.lane.b32.xlu0 %v3235, 125
    %v3244 = vpop.permute.xlu0 %3243
    %3245 = vrot.lane.b32.xlu0 %v3234, 125
    %v3246 = vpop.permute.xlu0 %3245
    %3247 = vrot.lane.b32.xlu0 %v3238, 125
    %v3248 = vpop.permute.xlu0 %3247
    %3249 = vrot.lane.b32.xlu0 %v3240, 125
    %v3250 = vpop.permute.xlu0 %3249
    %3251 = vrot.lane.b32.xlu0 %v3239, 125
    %v3252 = vpop.permute.xlu0 %3251
    %v3259 = vadd.f32 %v3079, %v3242
    %v3260 = vadd.f32 %v3080, %v3244
    %v3261 = vadd.f32 %v3081, %v3246
    %v3262 = vadd.f32 %v3082, %v3248
    %v3263 = vadd.f32 %v3083, %v3250
    %v3264 = vadd.f32 %v3084, %v3252
    %v3265 = vstv %s258
    %v3266 = vmul.f32 %v3265, %v2233
    %v3267 = vmul.f32 %v3265, %v2234
    %v3268 = vmul.f32 %v3265, %v2235
    %v3269 = vmul.f32 %v3265, %v2236
    %v3270 = vmul.f32 %v3265, %v2237
    %v3271 = vmul.f32 %v3265, %v2238
    %v3278 = vrot.slane %v3266, 2
    %v3279 = vrot.slane %v3267, 2
    %v3280 = vsel %vm832, %v3278, %v3279
    %v3281 = vrot.slane %v3268, 2
    %v3282 = vsel %vm832, %v3279, %v3281
    %v3283 = vrot.slane %v3269, 2
    %v3284 = vrot.slane %v3270, 2
    %v3285 = vsel %vm832, %v3283, %v3284
    %v3286 = vrot.slane %v3271, 2
    %v3287 = vsel %vm832, %v3284, %v3286
    %3288 = vrot.lane.b32.xlu0 %v3280, 125
    %v3289 = vpop.permute.xlu0 %3288
    %3290 = vrot.lane.b32.xlu0 %v3282, 125
    %v3291 = vpop.permute.xlu0 %3290
    %3292 = vrot.lane.b32.xlu0 %v3281, 125
    %v3293 = vpop.permute.xlu0 %3292
    %3294 = vrot.lane.b32.xlu0 %v3285, 125
    %v3295 = vpop.permute.xlu0 %3294
    %3296 = vrot.lane.b32.xlu0 %v3287, 125
    %v3297 = vpop.permute.xlu0 %3296
    %3298 = vrot.lane.b32.xlu0 %v3286, 125
    %v3299 = vpop.permute.xlu0 %3298
    %v3306 = vadd.f32 %v3126, %v3289
    %v3307 = vadd.f32 %v3127, %v3291
    %v3308 = vadd.f32 %v3128, %v3293
    %v3309 = vadd.f32 %v3129, %v3295
    %v3310 = vadd.f32 %v3130, %v3297
    %v3311 = vadd.f32 %v3131, %v3299
    %v3312 = vstv %s265
    %v3313 = vmul.f32 %v3312, %v2233
    %v3314 = vmul.f32 %v3312, %v2234
    %v3315 = vmul.f32 %v3312, %v2235
    %v3316 = vmul.f32 %v3312, %v2236
    %v3317 = vmul.f32 %v3312, %v2237
    %v3318 = vmul.f32 %v3312, %v2238
    %v3325 = vrot.slane %v3313, 6
    %v3326 = vrot.slane %v3314, 6
    %v3327 = vsel %vm741, %v3325, %v3326
    %v3328 = vrot.slane %v3315, 6
    %v3329 = vsel %vm741, %v3326, %v3328
    %v3330 = vrot.slane %v3316, 6
    %v3331 = vrot.slane %v3317, 6
    %v3332 = vsel %vm741, %v3330, %v3331
    %v3333 = vrot.slane %v3318, 6
    %v3334 = vsel %vm741, %v3331, %v3333
    %3335 = vrot.lane.b32.xlu0 %v3327, 125
    %v3336 = vpop.permute.xlu0 %3335
    %3337 = vrot.lane.b32.xlu0 %v3329, 125
    %v3338 = vpop.permute.xlu0 %3337
    %3339 = vrot.lane.b32.xlu0 %v3332, 125
    %v3340 = vpop.permute.xlu0 %3339
    %3341 = vrot.lane.b32.xlu0 %v3334, 125
    %v3342 = vpop.permute.xlu0 %3341
    %v3347 = vadd.f32 %v3167, %v3336
    %v3348 = vadd.f32 %v3168, %v3338
    %v3349 = vadd.f32 %v3169, %v3340
    %v3350 = vadd.f32 %v3170, %v3342
    %v3351 = vstv %s224
    %v3352 = vmul.f32 %v3351, %v2233
    %v3353 = vmul.f32 %v3351, %v2234
    %v3354 = vmul.f32 %v3351, %v2236
    %v3355 = vmul.f32 %v3351, %v2237
    %v3360 = vrot.slane %v3352, 7
    %v3361 = vrot.slane %v3353, 7
    %v3362 = vsel %vm1048, %v3360, %v3361
    %v3363 = vrot.slane %v3354, 7
    %v3364 = vrot.slane %v3355, 7
    %v3365 = vsel %vm1048, %v3363, %v3364
    %3366 = vrot.lane.b32.xlu0 %v3360, 124
    %v3367 = vpop.permute.xlu0 %3366
    %3368 = vrot.lane.b32.xlu0 %v3362, 124
    %v3369 = vpop.permute.xlu0 %3368
    %3370 = vrot.lane.b32.xlu0 %v3361, 124
    %v3371 = vpop.permute.xlu0 %3370
    %3372 = vrot.lane.b32.xlu0 %v3363, 124
    %v3373 = vpop.permute.xlu0 %3372
    %3374 = vrot.lane.b32.xlu0 %v3365, 124
    %v3375 = vpop.permute.xlu0 %3374
    %3376 = vrot.lane.b32.xlu0 %v3364, 124
    %v3377 = vpop.permute.xlu0 %3376
    %v3384 = vadd.f32 %v3212, %v3367
    %v3385 = vadd.f32 %v3213, %v3369
    %v3386 = vadd.f32 %v3214, %v3371
    %v3387 = vadd.f32 %v3215, %v3373
    %v3388 = vadd.f32 %v3216, %v3375
    %v3389 = vadd.f32 %v3217, %v3377
    %v3390 = vstv %s231
    %v3391 = vmul.f32 %v3390, %v2233
    %v3392 = vmul.f32 %v3390, %v2234
    %v3393 = vmul.f32 %v3390, %v2235
    %v3394 = vmul.f32 %v3390, %v2236
    %v3395 = vmul.f32 %v3390, %v2237
    %v3396 = vmul.f32 %v3390, %v2238
    %v3403 = vrot.slane %v3391, 7
    %v3404 = vrot.slane %v3392, 7
    %v3405 = vsel %vm1048, %v3403, %v3404
    %v3406 = vrot.slane %v3393, 7
    %v3407 = vsel %vm1048, %v3404, %v3406
    %v3408 = vrot.slane %v3394, 7
    %v3409 = vrot.slane %v3395, 7
    %v3410 = vsel %vm1048, %v3408, %v3409
    %v3411 = vrot.slane %v3396, 7
    %v3412 = vsel %vm1048, %v3409, %v3411
    %3413 = vrot.lane.b32.xlu0 %v3403, 124
    %v3414 = vpop.permute.xlu0 %3413
    %3415 = vrot.lane.b32.xlu0 %v3405, 124
    %v3416 = vpop.permute.xlu0 %3415
    %3417 = vrot.lane.b32.xlu0 %v3407, 124
    %v3418 = vpop.permute.xlu0 %3417
    %3419 = vrot.lane.b32.xlu0 %v3408, 124
    %v3420 = vpop.permute.xlu0 %3419
    %3421 = vrot.lane.b32.xlu0 %v3410, 124
    %v3422 = vpop.permute.xlu0 %3421
    %3423 = vrot.lane.b32.xlu0 %v3412, 124
    %v3424 = vpop.permute.xlu0 %3423
    %v3431 = vadd.f32 %v3259, %v3414
    %v3432 = vadd.f32 %v3260, %v3416
    %v3433 = vadd.f32 %v3261, %v3418
    %v3434 = vadd.f32 %v3262, %v3420
    %v3435 = vadd.f32 %v3263, %v3422
    %v3436 = vadd.f32 %v3264, %v3424
    %v3437 = vstv %s238
    %v3438 = vmul.f32 %v3437, %v2233
    %v3439 = vmul.f32 %v3437, %v2234
    %v3440 = vmul.f32 %v3437, %v2235
    %v3441 = vmul.f32 %v3437, %v2236
    %v3442 = vmul.f32 %v3437, %v2237
    %v3443 = vmul.f32 %v3437, %v2238
    %v3450 = vrot.slane %v3438, 7
    %v3451 = vrot.slane %v3439, 7
    %v3452 = vsel %vm1048, %v3450, %v3451
    %v3453 = vrot.slane %v3440, 7
    %v3454 = vsel %vm1048, %v3451, %v3453
    %v3455 = vrot.slane %v3441, 7
    %v3456 = vrot.slane %v3442, 7
    %v3457 = vsel %vm1048, %v3455, %v3456
    %v3458 = vrot.slane %v3443, 7
    %v3459 = vsel %vm1048, %v3456, %v3458
    %3460 = vrot.lane.b32.xlu0 %v3450, 124
    %v3461 = vpop.permute.xlu0 %3460
    %3462 = vrot.lane.b32.xlu0 %v3452, 124
    %v3463 = vpop.permute.xlu0 %3462
    %3464 = vrot.lane.b32.xlu0 %v3454, 124
    %v3465 = vpop.permute.xlu0 %3464
    %3466 = vrot.lane.b32.xlu0 %v3455, 124
    %v3467 = vpop.permute.xlu0 %3466
    %3468 = vrot.lane.b32.xlu0 %v3457, 124
    %v3469 = vpop.permute.xlu0 %3468
    %3470 = vrot.lane.b32.xlu0 %v3459, 124
    %v3471 = vpop.permute.xlu0 %3470
    %v3478 = vadd.f32 %v3306, %v3461
    %v3479 = vadd.f32 %v3307, %v3463
    %v3480 = vadd.f32 %v3308, %v3465
    %v3481 = vadd.f32 %v3309, %v3467
    %v3482 = vadd.f32 %v3310, %v3469
    %v3483 = vadd.f32 %v3311, %v3471
    %v3484 = vstv %s245
    %v3485 = vmul.f32 %v3484, %v2233
    %v3486 = vmul.f32 %v3484, %v2234
    %v3487 = vmul.f32 %v3484, %v2235
    %v3488 = vmul.f32 %v3484, %v2236
    %v3489 = vmul.f32 %v3484, %v2237
    %v3490 = vmul.f32 %v3484, %v2238
    %v3497 = vrot.slane %v3485, 3
    %v3498 = vrot.slane %v3486, 3
    %v3499 = vsel %vm1186, %v3497, %v3498
    %v3500 = vrot.slane %v3487, 3
    %v3501 = vsel %vm1186, %v3498, %v3500
    %v3502 = vrot.slane %v3488, 3
    %v3503 = vrot.slane %v3489, 3
    %v3504 = vsel %vm1186, %v3502, %v3503
    %v3505 = vrot.slane %v3490, 3
    %v3506 = vsel %vm1186, %v3503, %v3505
    %3507 = vrot.lane.b32.xlu0 %v3499, 124
    %v3508 = vpop.permute.xlu0 %3507
    %3509 = vrot.lane.b32.xlu0 %v3501, 124
    %v3510 = vpop.permute.xlu0 %3509
    %3511 = vrot.lane.b32.xlu0 %v3504, 124
    %v3512 = vpop.permute.xlu0 %3511
    %3513 = vrot.lane.b32.xlu0 %v3506, 124
    %v3514 = vpop.permute.xlu0 %3513
    %v3519 = vadd.f32 %v3347, %v3508
    %v3520 = vadd.f32 %v3348, %v3510
    %v3521 = vadd.f32 %v3349, %v3512
    %v3522 = vadd.f32 %v3350, %v3514
    %v3523 = vstv %s252
    %v3524 = vmul.f32 %v3523, %v2233
    %v3525 = vmul.f32 %v3523, %v2234
    %v3526 = vmul.f32 %v3523, %v2235
    %v3527 = vmul.f32 %v3523, %v2236
    %v3528 = vmul.f32 %v3523, %v2237
    %v3529 = vmul.f32 %v3523, %v2238
    %v3536 = vrot.slane %v3524, 3
    %v3537 = vrot.slane %v3525, 3
    %v3538 = vsel %vm1186, %v3536, %v3537
    %v3539 = vrot.slane %v3526, 3
    %v3540 = vsel %vm1186, %v3537, %v3539
    %v3541 = vrot.slane %v3527, 3
    %v3542 = vrot.slane %v3528, 3
    %v3543 = vsel %vm1186, %v3541, %v3542
    %v3544 = vrot.slane %v3529, 3
    %v3545 = vsel %vm1186, %v3542, %v3544
    %3546 = vrot.lane.b32.xlu0 %v3538, 124
    %v3547 = vpop.permute.xlu0 %3546
    %3548 = vrot.lane.b32.xlu0 %v3540, 124
    %v3549 = vpop.permute.xlu0 %3548
    %3550 = vrot.lane.b32.xlu0 %v3539, 124
    %v3551 = vpop.permute.xlu0 %3550
    %3552 = vrot.lane.b32.xlu0 %v3543, 124
    %v3553 = vpop.permute.xlu0 %3552
    %3554 = vrot.lane.b32.xlu0 %v3545, 124
    %v3555 = vpop.permute.xlu0 %3554
    %3556 = vrot.lane.b32.xlu0 %v3544, 124
    %v3557 = vpop.permute.xlu0 %3556
    %v3564 = vadd.f32 %v3384, %v3547
    %v3565 = vadd.f32 %v3385, %v3549
    %v3566 = vadd.f32 %v3386, %v3551
    %v3567 = vadd.f32 %v3387, %v3553
    %v3568 = vadd.f32 %v3388, %v3555
    %v3569 = vadd.f32 %v3389, %v3557
    %v3570 = vstv %s259
    %v3571 = vmul.f32 %v3570, %v2233
    %v3572 = vmul.f32 %v3570, %v2234
    %v3573 = vmul.f32 %v3570, %v2235
    %v3574 = vmul.f32 %v3570, %v2236
    %v3575 = vmul.f32 %v3570, %v2237
    %v3576 = vmul.f32 %v3570, %v2238
    %v3583 = vrot.slane %v3571, 3
    %v3584 = vrot.slane %v3572, 3
    %v3585 = vsel %vm1186, %v3583, %v3584
    %v3586 = vrot.slane %v3573, 3
    %v3587 = vsel %vm1186, %v3584, %v3586
    %v3588 = vrot.slane %v3574, 3
    %v3589 = vrot.slane %v3575, 3
    %v3590 = vsel %vm1186, %v3588, %v3589
    %v3591 = vrot.slane %v3576, 3
    %v3592 = vsel %vm1186, %v3589, %v3591
    %3593 = vrot.lane.b32.xlu0 %v3585, 124
    %v3594 = vpop.permute.xlu0 %3593
    %3595 = vrot.lane.b32.xlu0 %v3587, 124
    %v3596 = vpop.permute.xlu0 %3595
    %3597 = vrot.lane.b32.xlu0 %v3586, 124
    %v3598 = vpop.permute.xlu0 %3597
    %3599 = vrot.lane.b32.xlu0 %v3590, 124
    %v3600 = vpop.permute.xlu0 %3599
    %3601 = vrot.lane.b32.xlu0 %v3592, 124
    %v3602 = vpop.permute.xlu0 %3601
    %3603 = vrot.lane.b32.xlu0 %v3591, 124
    %v3604 = vpop.permute.xlu0 %3603
    %v3611 = vadd.f32 %v3431, %v3594
    %v3612 = vadd.f32 %v3432, %v3596
    %v3613 = vadd.f32 %v3433, %v3598
    %v3614 = vadd.f32 %v3434, %v3600
    %v3615 = vadd.f32 %v3435, %v3602
    %v3616 = vadd.f32 %v3436, %v3604
    %v3617 = vstv %s266
    %v3618 = vmul.f32 %v3617, %v2233
    %v3619 = vmul.f32 %v3617, %v2234
    %v3620 = vmul.f32 %v3617, %v2235
    %v3621 = vmul.f32 %v3617, %v2236
    %v3622 = vmul.f32 %v3617, %v2237
    %v3623 = vmul.f32 %v3617, %v2238
    %v3630 = vrot.slane %v3618, 3
    %v3631 = vrot.slane %v3619, 3
    %v3632 = vsel %vm1186, %v3630, %v3631
    %v3633 = vrot.slane %v3620, 3
    %v3634 = vsel %vm1186, %v3631, %v3633
    %v3635 = vrot.slane %v3621, 3
    %v3636 = vrot.slane %v3622, 3
    %v3637 = vsel %vm1186, %v3635, %v3636
    %v3638 = vrot.slane %v3623, 3
    %v3639 = vsel %vm1186, %v3636, %v3638
    %3640 = vrot.lane.b32.xlu0 %v3632, 124
    %v3641 = vpop.permute.xlu0 %3640
    %3642 = vrot.lane.b32.xlu0 %v3634, 124
    %v3643 = vpop.permute.xlu0 %3642
    %3644 = vrot.lane.b32.xlu0 %v3633, 124
    %v3645 = vpop.permute.xlu0 %3644
    %3646 = vrot.lane.b32.xlu0 %v3637, 124
    %v3647 = vpop.permute.xlu0 %3646
    %3648 = vrot.lane.b32.xlu0 %v3639, 124
    %v3649 = vpop.permute.xlu0 %3648
    %3650 = vrot.lane.b32.xlu0 %v3638, 124
    %v3651 = vpop.permute.xlu0 %3650
    %v3658 = vadd.f32 %v3478, %v3641
    %v3659 = vadd.f32 %v3479, %v3643
    %v3660 = vadd.f32 %v3480, %v3645
    %v3661 = vadd.f32 %v3481, %v3647
    %v3662 = vadd.f32 %v3482, %v3649
    %v3663 = vadd.f32 %v3483, %v3651
    %v3664 = vstv %s225
    %v3665 = vmul.f32 %v3664, %v2233
    %v3666 = vmul.f32 %v3664, %v2234
    %v3667 = vmul.f32 %v3664, %v2236
    %v3668 = vmul.f32 %v3664, %v2237
    %3673 = vrot.lane.b32.xlu0 %v3665, 123
    %v3674 = vpop.permute.xlu0 %3673
    %3675 = vrot.lane.b32.xlu0 %v3666, 123
    %v3676 = vpop.permute.xlu0 %3675
    %3677 = vrot.lane.b32.xlu0 %v3667, 123
    %v3678 = vpop.permute.xlu0 %3677
    %3679 = vrot.lane.b32.xlu0 %v3668, 123
    %v3680 = vpop.permute.xlu0 %3679
    %v3685 = vadd.f32 %v3519, %v3674
    %v3686 = vadd.f32 %v3520, %v3676
    %v3687 = vadd.f32 %v3521, %v3678
    %v3688 = vadd.f32 %v3522, %v3680
    %v3689 = vstv %s232
    %v3690 = vmul.f32 %v3689, %v2233
    %v3691 = vmul.f32 %v3689, %v2234
    %v3692 = vmul.f32 %v3689, %v2235
    %v3693 = vmul.f32 %v3689, %v2236
    %v3694 = vmul.f32 %v3689, %v2237
    %v3695 = vmul.f32 %v3689, %v2238
    %3702 = vrot.lane.b32.xlu0 %v3690, 123
    %v3703 = vpop.permute.xlu0 %3702
    %3704 = vrot.lane.b32.xlu0 %v3691, 123
    %v3705 = vpop.permute.xlu0 %3704
    %3706 = vrot.lane.b32.xlu0 %v3692, 123
    %v3707 = vpop.permute.xlu0 %3706
    %3708 = vrot.lane.b32.xlu0 %v3693, 123
    %v3709 = vpop.permute.xlu0 %3708
    %3710 = vrot.lane.b32.xlu0 %v3694, 123
    %v3711 = vpop.permute.xlu0 %3710
    %3712 = vrot.lane.b32.xlu0 %v3695, 123
    %v3713 = vpop.permute.xlu0 %3712
    %v3720 = vadd.f32 %v3564, %v3703
    %v3721 = vadd.f32 %v3565, %v3705
    %v3722 = vadd.f32 %v3566, %v3707
    %v3723 = vadd.f32 %v3567, %v3709
    %v3724 = vadd.f32 %v3568, %v3711
    %v3725 = vadd.f32 %v3569, %v3713
    %v3726 = vstv %s239
    %v3727 = vmul.f32 %v3726, %v2233
    %v3728 = vmul.f32 %v3726, %v2234
    %v3729 = vmul.f32 %v3726, %v2235
    %v3730 = vmul.f32 %v3726, %v2236
    %v3731 = vmul.f32 %v3726, %v2237
    %v3732 = vmul.f32 %v3726, %v2238
    %3739 = vrot.lane.b32.xlu0 %v3727, 123
    %v3740 = vpop.permute.xlu0 %3739
    %3741 = vrot.lane.b32.xlu0 %v3728, 123
    %v3742 = vpop.permute.xlu0 %3741
    %3743 = vrot.lane.b32.xlu0 %v3729, 123
    %v3744 = vpop.permute.xlu0 %3743
    %3745 = vrot.lane.b32.xlu0 %v3730, 123
    %v3746 = vpop.permute.xlu0 %3745
    %3747 = vrot.lane.b32.xlu0 %v3731, 123
    %v3748 = vpop.permute.xlu0 %3747
    %3749 = vrot.lane.b32.xlu0 %v3732, 123
    %v3750 = vpop.permute.xlu0 %3749
    %v3757 = vadd.f32 %v3611, %v3740
    %v3758 = vadd.f32 %v3612, %v3742
    %v3759 = vadd.f32 %v3613, %v3744
    %v3760 = vadd.f32 %v3614, %v3746
    %v3761 = vadd.f32 %v3615, %v3748
    %v3762 = vadd.f32 %v3616, %v3750
    %v3763 = vstv %s246
    %v3764 = vmul.f32 %v3763, %v2233
    %v3765 = vmul.f32 %v3763, %v2234
    %v3766 = vmul.f32 %v3763, %v2235
    %v3767 = vmul.f32 %v3763, %v2236
    %v3768 = vmul.f32 %v3763, %v2237
    %v3769 = vmul.f32 %v3763, %v2238
    %3776 = vrot.lane.b32.xlu0 %v3764, 123
    %v3777 = vpop.permute.xlu0 %3776
    %3778 = vrot.lane.b32.xlu0 %v3765, 123
    %v3779 = vpop.permute.xlu0 %3778
    %3780 = vrot.lane.b32.xlu0 %v3766, 123
    %v3781 = vpop.permute.xlu0 %3780
    %3782 = vrot.lane.b32.xlu0 %v3767, 123
    %v3783 = vpop.permute.xlu0 %3782
    %3784 = vrot.lane.b32.xlu0 %v3768, 123
    %v3785 = vpop.permute.xlu0 %3784
    %3786 = vrot.lane.b32.xlu0 %v3769, 123
    %v3787 = vpop.permute.xlu0 %3786
    %v3794 = vadd.f32 %v3658, %v3777
    %v3795 = vadd.f32 %v3659, %v3779
    %v3796 = vadd.f32 %v3660, %v3781
    %v3797 = vadd.f32 %v3661, %v3783
    %v3798 = vadd.f32 %v3662, %v3785
    %v3799 = vadd.f32 %v3663, %v3787
    %v3800 = vstv %s253
    %v3801 = vmul.f32 %v3800, %v2233
    %v3802 = vmul.f32 %v3800, %v2234
    %v3803 = vmul.f32 %v3800, %v2235
    %v3804 = vmul.f32 %v3800, %v2236
    %v3805 = vmul.f32 %v3800, %v2237
    %v3806 = vmul.f32 %v3800, %v2238
    %v3813 = vrot.slane %v3801, 4
    %v3814 = vrot.slane %v3802, 4
    %v3815 = vsel %vm336, %v3813, %v3814
    %v3816 = vrot.slane %v3803, 4
    %v3817 = vsel %vm336, %v3814, %v3816
    %v3818 = vrot.slane %v3804, 4
    %v3819 = vrot.slane %v3805, 4
    %v3820 = vsel %vm336, %v3818, %v3819
    %v3821 = vrot.slane %v3806, 4
    %v3822 = vsel %vm336, %v3819, %v3821
    %3823 = vrot.lane.b32.xlu0 %v3815, 123
    %v3824 = vpop.permute.xlu0 %3823
    %3825 = vrot.lane.b32.xlu0 %v3817, 123
    %v3826 = vpop.permute.xlu0 %3825
    %3827 = vrot.lane.b32.xlu0 %v3820, 123
    %v3828 = vpop.permute.xlu0 %3827
    %3829 = vrot.lane.b32.xlu0 %v3822, 123
    %v3830 = vpop.permute.xlu0 %3829
    %v3835 = vadd.f32 %v3685, %v3824
    %v3836 = vadd.f32 %v3686, %v3826
    %v3837 = vadd.f32 %v3687, %v3828
    %v3838 = vadd.f32 %v3688, %v3830
    %v3839 = vstv %s260
    %v3840 = vmul.f32 %v3839, %v2233
    %v3841 = vmul.f32 %v3839, %v2234
    %v3842 = vmul.f32 %v3839, %v2235
    %v3843 = vmul.f32 %v3839, %v2236
    %v3844 = vmul.f32 %v3839, %v2237
    %v3845 = vmul.f32 %v3839, %v2238
    %v3852 = vrot.slane %v3840, 4
    %v3853 = vrot.slane %v3841, 4
    %v3854 = vsel %vm336, %v3852, %v3853
    %v3855 = vrot.slane %v3842, 4
    %v3856 = vsel %vm336, %v3853, %v3855
    %v3857 = vrot.slane %v3843, 4
    %v3858 = vrot.slane %v3844, 4
    %v3859 = vsel %vm336, %v3857, %v3858
    %v3860 = vrot.slane %v3845, 4
    %v3861 = vsel %vm336, %v3858, %v3860
    %3862 = vrot.lane.b32.xlu0 %v3854, 123
    %v3863 = vpop.permute.xlu0 %3862
    %3864 = vrot.lane.b32.xlu0 %v3856, 123
    %v3865 = vpop.permute.xlu0 %3864
    %3866 = vrot.lane.b32.xlu0 %v3855, 123
    %v3867 = vpop.permute.xlu0 %3866
    %3868 = vrot.lane.b32.xlu0 %v3859, 123
    %v3869 = vpop.permute.xlu0 %3868
    %3870 = vrot.lane.b32.xlu0 %v3861, 123
    %v3871 = vpop.permute.xlu0 %3870
    %3872 = vrot.lane.b32.xlu0 %v3860, 123
    %v3873 = vpop.permute.xlu0 %3872
    %v3880 = vadd.f32 %v3720, %v3863
    %v3881 = vadd.f32 %v3721, %v3865
    %v3882 = vadd.f32 %v3722, %v3867
    %v3883 = vadd.f32 %v3723, %v3869
    %v3884 = vadd.f32 %v3724, %v3871
    %v3885 = vadd.f32 %v3725, %v3873
    %v3886 = vstv %s267
    %v3887 = vmul.f32 %v3886, %v2233
    %v3888 = vmul.f32 %v3886, %v2234
    %v3889 = vmul.f32 %v3886, %v2235
    %v3890 = vmul.f32 %v3886, %v2236
    %v3891 = vmul.f32 %v3886, %v2237
    %v3892 = vmul.f32 %v3886, %v2238
    %v3899 = vrot.slane %v3887, 4
    %v3900 = vrot.slane %v3888, 4
    %v3901 = vsel %vm336, %v3899, %v3900
    %v3902 = vrot.slane %v3889, 4
    %v3903 = vsel %vm336, %v3900, %v3902
    %v3904 = vrot.slane %v3890, 4
    %v3905 = vrot.slane %v3891, 4
    %v3906 = vsel %vm336, %v3904, %v3905
    %v3907 = vrot.slane %v3892, 4
    %v3908 = vsel %vm336, %v3905, %v3907
    %3909 = vrot.lane.b32.xlu0 %v3901, 123
    %v3910 = vpop.permute.xlu0 %3909
    %3911 = vrot.lane.b32.xlu0 %v3903, 123
    %v3912 = vpop.permute.xlu0 %3911
    %3913 = vrot.lane.b32.xlu0 %v3902, 123
    %v3914 = vpop.permute.xlu0 %3913
    %3915 = vrot.lane.b32.xlu0 %v3906, 123
    %v3916 = vpop.permute.xlu0 %3915
    %3917 = vrot.lane.b32.xlu0 %v3908, 123
    %v3918 = vpop.permute.xlu0 %3917
    %3919 = vrot.lane.b32.xlu0 %v3907, 123
    %v3920 = vpop.permute.xlu0 %3919
    %v3927 = vadd.f32 %v3757, %v3910
    %v3928 = vadd.f32 %v3758, %v3912
    %v3929 = vadd.f32 %v3759, %v3914
    %v3930 = vadd.f32 %v3760, %v3916
    %v3931 = vadd.f32 %v3761, %v3918
    %v3932 = vadd.f32 %v3762, %v3920
    %v3933 = vstv %s226
    %v3934 = vmul.f32 %v3933, %v2233
    %v3935 = vmul.f32 %v3933, %v2234
    %v3936 = vmul.f32 %v3933, %v2236
    %v3937 = vmul.f32 %v3933, %v2237
    %v3942 = vrot.slane %v3934, 5
    %v3943 = vrot.slane %v3935, 5
    %v3944 = vsel %vm434, %v3942, %v3943
    %v3945 = vrot.slane %v3936, 5
    %v3946 = vrot.slane %v3937, 5
    %v3947 = vsel %vm434, %v3945, %v3946
    %3948 = vrot.lane.b32.xlu0 %v3942, 122
    %v3949 = vpop.permute.xlu0 %3948
    %3950 = vrot.lane.b32.xlu0 %v3944, 122
    %v3951 = vpop.permute.xlu0 %3950
    %3952 = vrot.lane.b32.xlu0 %v3943, 122
    %v3953 = vpop.permute.xlu0 %3952
    %3954 = vrot.lane.b32.xlu0 %v3945, 122
    %v3955 = vpop.permute.xlu0 %3954
    %3956 = vrot.lane.b32.xlu0 %v3947, 122
    %v3957 = vpop.permute.xlu0 %3956
    %3958 = vrot.lane.b32.xlu0 %v3946, 122
    %v3959 = vpop.permute.xlu0 %3958
    %v3966 = vadd.f32 %v3794, %v3949
    %v3967 = vadd.f32 %v3795, %v3951
    %v3968 = vadd.f32 %v3796, %v3953
    %v3969 = vadd.f32 %v3797, %v3955
    %v3970 = vadd.f32 %v3798, %v3957
    %v3971 = vadd.f32 %v3799, %v3959
    %v3972 = vstv %s233
    %v3973 = vmul.f32 %v3972, %v2233
    %v3974 = vmul.f32 %v3972, %v2234
    %v3975 = vmul.f32 %v3972, %v2235
    %v3976 = vmul.f32 %v3972, %v2236
    %v3977 = vmul.f32 %v3972, %v2237
    %v3978 = vmul.f32 %v3972, %v2238
    %v3985 = vrot.slane %v3973, 1
    %v3986 = vrot.slane %v3974, 1
    %v3987 = vsel %vm478, %v3985, %v3986
    %v3988 = vrot.slane %v3975, 1
    %v3989 = vsel %vm478, %v3986, %v3988
    %v3990 = vrot.slane %v3976, 1
    %v3991 = vrot.slane %v3977, 1
    %v3992 = vsel %vm478, %v3990, %v3991
    %v3993 = vrot.slane %v3978, 1
    %v3994 = vsel %vm478, %v3991, %v3993
    %3995 = vrot.lane.b32.xlu0 %v3987, 122
    %v3996 = vpop.permute.xlu0 %3995
    %3997 = vrot.lane.b32.xlu0 %v3989, 122
    %v3998 = vpop.permute.xlu0 %3997
    %3999 = vrot.lane.b32.xlu0 %v3992, 122
    %v4000 = vpop.permute.xlu0 %3999
    %4001 = vrot.lane.b32.xlu0 %v3994, 122
    %v4002 = vpop.permute.xlu0 %4001
    %v4007 = vadd.f32 %v3835, %v3996
    %v4008 = vadd.f32 %v3836, %v3998
    %v4009 = vadd.f32 %v3837, %v4000
    %v4010 = vadd.f32 %v3838, %v4002
    %v4011 = vstv %s240
    %v4012 = vmul.f32 %v4011, %v2233
    %v4013 = vmul.f32 %v4011, %v2234
    %v4014 = vmul.f32 %v4011, %v2235
    %v4015 = vmul.f32 %v4011, %v2236
    %v4016 = vmul.f32 %v4011, %v2237
    %v4017 = vmul.f32 %v4011, %v2238
    %v4024 = vrot.slane %v4012, 1
    %v4025 = vrot.slane %v4013, 1
    %v4026 = vsel %vm478, %v4024, %v4025
    %v4027 = vrot.slane %v4014, 1
    %v4028 = vsel %vm478, %v4025, %v4027
    %v4029 = vrot.slane %v4015, 1
    %v4030 = vrot.slane %v4016, 1
    %v4031 = vsel %vm478, %v4029, %v4030
    %v4032 = vrot.slane %v4017, 1
    %v4033 = vsel %vm478, %v4030, %v4032
    %4034 = vrot.lane.b32.xlu0 %v4026, 122
    %v4035 = vpop.permute.xlu0 %4034
    %4036 = vrot.lane.b32.xlu0 %v4028, 122
    %v4037 = vpop.permute.xlu0 %4036
    %4038 = vrot.lane.b32.xlu0 %v4027, 122
    %v4039 = vpop.permute.xlu0 %4038
    %4040 = vrot.lane.b32.xlu0 %v4031, 122
    %v4041 = vpop.permute.xlu0 %4040
    %4042 = vrot.lane.b32.xlu0 %v4033, 122
    %v4043 = vpop.permute.xlu0 %4042
    %4044 = vrot.lane.b32.xlu0 %v4032, 122
    %v4045 = vpop.permute.xlu0 %4044
    %v4052 = vadd.f32 %v3880, %v4035
    %v4053 = vadd.f32 %v3881, %v4037
    %v4054 = vadd.f32 %v3882, %v4039
    %v4055 = vadd.f32 %v3883, %v4041
    %v4056 = vadd.f32 %v3884, %v4043
    %v4057 = vadd.f32 %v3885, %v4045
    %v4058 = vstv %s247
    %v4059 = vmul.f32 %v4058, %v2233
    %v4060 = vmul.f32 %v4058, %v2234
    %v4061 = vmul.f32 %v4058, %v2235
    %v4062 = vmul.f32 %v4058, %v2236
    %v4063 = vmul.f32 %v4058, %v2237
    %v4064 = vmul.f32 %v4058, %v2238
    %v4071 = vrot.slane %v4059, 1
    %v4072 = vrot.slane %v4060, 1
    %v4073 = vsel %vm478, %v4071, %v4072
    %v4074 = vrot.slane %v4061, 1
    %v4075 = vsel %vm478, %v4072, %v4074
    %v4076 = vrot.slane %v4062, 1
    %v4077 = vrot.slane %v4063, 1
    %v4078 = vsel %vm478, %v4076, %v4077
    %v4079 = vrot.slane %v4064, 1
    %v4080 = vsel %vm478, %v4077, %v4079
    %4081 = vrot.lane.b32.xlu0 %v4073, 122
    %v4082 = vpop.permute.xlu0 %4081
    %4083 = vrot.lane.b32.xlu0 %v4075, 122
    %v4084 = vpop.permute.xlu0 %4083
    %4085 = vrot.lane.b32.xlu0 %v4074, 122
    %v4086 = vpop.permute.xlu0 %4085
    %4087 = vrot.lane.b32.xlu0 %v4078, 122
    %v4088 = vpop.permute.xlu0 %4087
    %4089 = vrot.lane.b32.xlu0 %v4080, 122
    %v4090 = vpop.permute.xlu0 %4089
    %4091 = vrot.lane.b32.xlu0 %v4079, 122
    %v4092 = vpop.permute.xlu0 %4091
    %v4099 = vadd.f32 %v3927, %v4082
    %v4100 = vadd.f32 %v3928, %v4084
    %v4101 = vadd.f32 %v3929, %v4086
    %v4102 = vadd.f32 %v3930, %v4088
    %v4103 = vadd.f32 %v3931, %v4090
    %v4104 = vadd.f32 %v3932, %v4092
    %v4105 = vstv %s254
    %v4106 = vmul.f32 %v4105, %v2233
    %v4107 = vmul.f32 %v4105, %v2234
    %v4108 = vmul.f32 %v4105, %v2235
    %v4109 = vmul.f32 %v4105, %v2236
    %v4110 = vmul.f32 %v4105, %v2237
    %v4111 = vmul.f32 %v4105, %v2238
    %v4118 = vrot.slane %v4106, 1
    %v4119 = vrot.slane %v4107, 1
    %v4120 = vsel %vm478, %v4118, %v4119
    %v4121 = vrot.slane %v4108, 1
    %v4122 = vsel %vm478, %v4119, %v4121
    %v4123 = vrot.slane %v4109, 1
    %v4124 = vrot.slane %v4110, 1
    %v4125 = vsel %vm478, %v4123, %v4124
    %v4126 = vrot.slane %v4111, 1
    %v4127 = vsel %vm478, %v4124, %v4126
    %4128 = vrot.lane.b32.xlu0 %v4120, 122
    %v4129 = vpop.permute.xlu0 %4128
    %4130 = vrot.lane.b32.xlu0 %v4122, 122
    %v4131 = vpop.permute.xlu0 %4130
    %4132 = vrot.lane.b32.xlu0 %v4121, 122
    %v4133 = vpop.permute.xlu0 %4132
    %4134 = vrot.lane.b32.xlu0 %v4125, 122
    %v4135 = vpop.permute.xlu0 %4134
    %4136 = vrot.lane.b32.xlu0 %v4127, 122
    %v4137 = vpop.permute.xlu0 %4136
    %4138 = vrot.lane.b32.xlu0 %v4126, 122
    %v4139 = vpop.permute.xlu0 %4138
    %v4146 = vadd.f32 %v3966, %v4129
    %v4147 = vadd.f32 %v3967, %v4131
    %v4148 = vadd.f32 %v3968, %v4133
    %v4149 = vadd.f32 %v3969, %v4135
    %v4150 = vadd.f32 %v3970, %v4137
    %v4151 = vadd.f32 %v3971, %v4139
    %v4152 = vstv %s261
    %v4153 = vmul.f32 %v4152, %v2233
    %v4154 = vmul.f32 %v4152, %v2234
    %v4155 = vmul.f32 %v4152, %v2235
    %v4156 = vmul.f32 %v4152, %v2236
    %v4157 = vmul.f32 %v4152, %v2237
    %v4158 = vmul.f32 %v4152, %v2238
    %v4165 = vrot.slane %v4153, 5
    %v4166 = vrot.slane %v4154, 5
    %v4167 = vsel %vm434, %v4165, %v4166
    %v4168 = vrot.slane %v4155, 5
    %v4169 = vsel %vm434, %v4166, %v4168
    %v4170 = vrot.slane %v4156, 5
    %v4171 = vrot.slane %v4157, 5
    %v4172 = vsel %vm434, %v4170, %v4171
    %v4173 = vrot.slane %v4158, 5
    %v4174 = vsel %vm434, %v4171, %v4173
    %4175 = vrot.lane.b32.xlu0 %v4167, 122
    %v4176 = vpop.permute.xlu0 %4175
    %4177 = vrot.lane.b32.xlu0 %v4169, 122
    %v4178 = vpop.permute.xlu0 %4177
    %4179 = vrot.lane.b32.xlu0 %v4172, 122
    %v4180 = vpop.permute.xlu0 %4179
    %4181 = vrot.lane.b32.xlu0 %v4174, 122
    %v4182 = vpop.permute.xlu0 %4181
    %v4187 = vadd.f32 %v4007, %v4176
    %v4188 = vadd.f32 %v4008, %v4178
    %v4189 = vadd.f32 %v4009, %v4180
    %v4190 = vadd.f32 %v4010, %v4182
    %v4191 = vstv %s268
    %v4192 = vmul.f32 %v4191, %v2233
    %v4193 = vmul.f32 %v4191, %v2234
    %v4194 = vmul.f32 %v4191, %v2235
    %v4195 = vmul.f32 %v4191, %v2236
    %v4196 = vmul.f32 %v4191, %v2237
    %v4197 = vmul.f32 %v4191, %v2238
    %v4204 = vrot.slane %v4192, 5
    %v4205 = vrot.slane %v4193, 5
    %v4206 = vsel %vm434, %v4204, %v4205
    %v4207 = vrot.slane %v4194, 5
    %v4208 = vsel %vm434, %v4205, %v4207
    %v4209 = vrot.slane %v4195, 5
    %v4210 = vrot.slane %v4196, 5
    %v4211 = vsel %vm434, %v4209, %v4210
    %v4212 = vrot.slane %v4197, 5
    %v4213 = vsel %vm434, %v4210, %v4212
    %4214 = vrot.lane.b32.xlu0 %v4206, 122
    %v4215 = vpop.permute.xlu0 %4214
    %4216 = vrot.lane.b32.xlu0 %v4208, 122
    %v4217 = vpop.permute.xlu0 %4216
    %4218 = vrot.lane.b32.xlu0 %v4207, 122
    %v4219 = vpop.permute.xlu0 %4218
    %4220 = vrot.lane.b32.xlu0 %v4211, 122
    %v4221 = vpop.permute.xlu0 %4220
    %4222 = vrot.lane.b32.xlu0 %v4213, 122
    %v4223 = vpop.permute.xlu0 %4222
    %4224 = vrot.lane.b32.xlu0 %v4212, 122
    %v4225 = vpop.permute.xlu0 %4224
    %v4232 = vadd.f32 %v4052, %v4215
    %v4233 = vadd.f32 %v4053, %v4217
    %v4234 = vadd.f32 %v4054, %v4219
    %v4235 = vadd.f32 %v4055, %v4221
    %v4236 = vadd.f32 %v4056, %v4223
    %v4237 = vadd.f32 %v4057, %v4225
    %v4244 = vrot.slane %v4232, 1
    %v4245 = vrot.slane %v4233, 1
    %v4246 = vsel %vm478, %v4244, %v4245
    %v4247 = vrot.slane %v4234, 1
    %v4248 = vsel %vm478, %v4245, %v4247
    %v4249 = vrot.slane %v4235, 1
    %v4250 = vrot.slane %v4236, 1
    %v4251 = vsel %vm478, %v4249, %v4250
    %v4252 = vrot.slane %v4237, 1
    %v4253 = vsel %vm478, %v4250, %v4252
    %v4258 = vadd.f32 %v4187, %v4246
    %v4259 = vadd.f32 %v4188, %v4248
    %v4260 = vadd.f32 %v4189, %v4251
    %v4261 = vadd.f32 %v4190, %v4253
    %v4268 = vrot.slane %v4146, 1
    %v4269 = vrot.slane %v4147, 1
    %v4270 = vsel %vm478, %v4268, %v4269
    %v4271 = vrot.slane %v4148, 1
    %v4272 = vsel %vm478, %v4269, %v4271
    %v4273 = vrot.slane %v4149, 1
    %v4274 = vrot.slane %v4150, 1
    %v4275 = vsel %vm478, %v4273, %v4274
    %v4276 = vrot.slane %v4151, 1
    %v4277 = vsel %vm478, %v4274, %v4276
    %v4284 = vadd.f32 %v4099, %v4270
    %v4285 = vadd.f32 %v4100, %v4272
    %v4286 = vadd.f32 %v4101, %v4271
    %v4287 = vadd.f32 %v4102, %v4275
    %v4288 = vadd.f32 %v4103, %v4277
    %v4289 = vadd.f32 %v4104, %v4276
    %v4296 = vrot.slane %v4284, 2
    %v4297 = vrot.slane %v4285, 2
    %v4298 = vsel %vm832, %v4296, %v4297
    %v4299 = vrot.slane %v4286, 2
    %v4300 = vsel %vm832, %v4297, %v4299
    %v4301 = vrot.slane %v4287, 2
    %v4302 = vrot.slane %v4288, 2
    %v4303 = vsel %vm832, %v4301, %v4302
    %v4304 = vrot.slane %v4289, 2
    %v4305 = vsel %vm832, %v4302, %v4304
    %v4310 = vadd.f32 %v4258, %v4298
    %v4311 = vadd.f32 %v4259, %v4300
    %v4312 = vadd.f32 %v4260, %v4303
    %v4313 = vadd.f32 %v4261, %v4305
    %4314 = vst.msk [vmem:[#allocation8] sm:$0xff] %vm53, %v4310
    %4315 = vst.msk [vmem:[#allocation8 + $0x8] sm:$0xff] %vm53, %v4311
    %4316 = vst.msk [vmem:[#allocation8 + $0x10] sm:$0xff] %vm53, %v4312
    %4317 = vst.msk [vmem:[#allocation8 + $0x18] sm:$0xff] %vm53, %v4313
    // Predicated region
    $region18: #{tpu_custom_call.1} parent=1 // pred_check
      _
    $region19: #{tpu_custom_call.1} parent=1 // pred_check_branch
      %4319 = sbr.rel (0) target = $region21
    $region20: #{tpu_custom_call.1} parent=1 // pred_region
      %s4321 = ssub.s32 512, 512
      %4322 = vsyncadd [#allocation5], %s4321
      %s4323 = sshll.u32 [#allocation8], 4
      %s4324 = int_to_ptr.vmem [resolvable:$true] %s4323
      %4329 = dma.vmem_to_hbm [thread:$0]  %s4324, 512, %s2, [#allocation5], 128, 128, 8
    $region21: #{tpu_custom_call.1} parent=1 // pred_fallthru
      _
    // Predicated region
    $region22: #{tpu_custom_call.1} parent=1 // pred_check
      _
    $region23: #{tpu_custom_call.1} parent=1 // pred_check_branch
      %4331 = sbr.rel (0) target = $region25
    $region24: #{tpu_custom_call.1} parent=1 // pred_region
      %4332 = dma.done [#allocation5], 512
    $region25: #{tpu_custom_call.1} parent=1 // pred_fallthru
      _
    %4333 = vsyncpa [#allocation4], 1
    %4334 = vsyncpa [#allocation5], 1
    %4335 = vsyncpa [#allocation6], 1

</llo_original>
